<compile_context>
chip_gen: v7x
topology: tpu7x:2x2x1
jax: 0.10.0
libtpu: 0.0.40
codegen_flags: <defaults>
</compile_context>

<pallas_src>
import numpy as np
import jax
import jax.numpy as jnp
from jax import lax
from jax.experimental import pallas as pl
from jax.experimental.pallas import tpu as pltpu


# ----------------------------------------------------------------------------- kernel
def dynamics_kernel(
    # ---- inputs (time-major, flattened over T*B rows) ----
    x0_ref,        # (T*B, D)   f32   D = state_dim + action_dim
    stp_ref,       # (T*B, S+3) f32   states padded with 3 zero cols (state residual)
    w_ih0_ref,     # (D, 4H)    bf16  layer-0 input weights (pre-transposed)
    w_ihr_ref,     # (L-1, H, 4H) bf16
    w_hh_ref,      # (L, H, 4H) bf16
    b_lstm_ref,    # (L, 1, 4H) f32   b_ih + b_hh combined
    res_w_ref,     # (D, H)     bf16
    res_b_ref,     # (1, H)     f32
    ln_g_ref,      # (1, H)     f32
    ln_b_ref,      # (1, H)     f32
    sh_w_ref,      # (H, H)     bf16  shared_base linear
    sh_b_ref,      # (1, H)     f32
    stw_ref,       # (H, S+3)   bf16  state_head weights, zero-padded to S+3 cols
    hd_w1_ref,     # (H, 3*H2)  bf16  fused [deg|range|speed] first linear
    hd_b1_ref,     # (1, 3*H2)  f32
    hd_w2_ref,     # (3*H2, S+3) bf16 block-diag second linear, zero-padded left
    b_pack_ref,    # (1, S+3)   f32   [state_b | deg_b2 | range_b2 | speed_b2]
    # ---- outputs ----
    out_ref,       # (T*B, S+3) f32   [state_pred | deg | range | speed]
    hn_ref,        # (L, B, H)  f32
    cn_ref,        # (L, B, H)  f32
    # ---- scratch ----
    seq_ref,       # (T*B, H)   current LSTM layer's output sequence
    gin_ref,       # (T*B, 4H)  precomputed input-projection gates for current layer
    h_ref,         # (B, H)
    c_ref,         # (B, H)
):
    TB = x0_ref.shape[0]
    B, H = h_ref.shape
    T = TB // B
    L = w_hh_ref.shape[0]
    bf16 = jnp.bfloat16

    def lstm_layer(layer, w_ih_bf, x_in_f32):
        # Hoisted input projection: ONE batched matmul over all T*B rows
        # (reads the previous layer's full seq_ref BEFORE this layer overwrites it).
        gin_ref[...] = (
            jnp.dot(x_in_f32.astype(bf16), w_ih_bf, preferred_element_type=jnp.float32)
            + b_lstm_ref[layer]
        )
        w_hh_bf = w_hh_ref[layer]                              # (H, 4H) bf16, hoisted
        h_ref[...] = jnp.zeros_like(h_ref)
        c_ref[...] = jnp.zeros_like(c_ref)

        def step(t, carry):
            row = pl.multiple_of(t * B, B)
            gates = gin_ref[pl.ds(row, B), :] + jnp.dot(
                h_ref[...].astype(bf16), w_hh_bf, preferred_element_type=jnp.float32
            )                                                  # (B, 4H) f32
            # One sigmoid + one tanh over the full 4H vreg, then slice (i,f,g,o order).
            sig = jax.nn.sigmoid(gates)
            tnh = jnp.tanh(gates)
            i_g = sig[:, 0 * H:1 * H]
            f_g = sig[:, 1 * H:2 * H]
            o_g = sig[:, 3 * H:4 * H]
            g_g = tnh[:, 2 * H:3 * H]
            c_new = f_g * c_ref[...] + i_g * g_g
            h_new = o_g * jnp.tanh(c_new)
            c_ref[...] = c_new
            h_ref[...] = h_new
            seq_ref[pl.ds(row, B), :] = h_new
            return carry

        # T is small & static: fully unroll so the LLO scheduler can overlap steps.
        lax.fori_loop(0, T, step, 0, unroll=True)
        hn_ref[layer] = h_ref[...]
        cn_ref[layer] = c_ref[...]

    lstm_layer(0, w_ih0_ref[...], x0_ref[...])
    for l in range(1, L):
        lstm_layer(l, w_ihr_ref[l - 1], seq_ref[...])

    # ---- heads: fully vectorized over all T*B rows (no time dependence) ----
    y = seq_ref[...]                                           # (T*B, H)  lstm_out
    residual = (
        jnp.dot(x0_ref[...].astype(bf16), res_w_ref[...],
                preferred_element_type=jnp.float32)
        + res_b_ref[...]
    )
    z = y + residual
    mu = jnp.mean(z, axis=-1, keepdims=True)
    var = jnp.mean((z - mu) ** 2, axis=-1, keepdims=True)
    out = (z - mu) * lax.rsqrt(var + 1e-5) * ln_g_ref[...] + ln_b_ref[...]
    out_bf = out.astype(bf16)

    shared = jnp.maximum(
        jnp.dot(out_bf, sh_w_ref[...], preferred_element_type=jnp.float32)
        + sh_b_ref[...], 0.0)
    h1 = jnp.maximum(
        jnp.dot(out_bf, hd_w1_ref[...], preferred_element_type=jnp.float32)
        + hd_b1_ref[...], 0.0)

    # Lane-packed result: cols [:S] = state_head(shared) + states,
    #                     cols [S:] = block-diag scalar heads on h1.
    out_ref[...] = (
        jnp.dot(shared.astype(bf16), stw_ref[...], preferred_element_type=jnp.float32)
        + jnp.dot(h1.astype(bf16), hd_w2_ref[...], preferred_element_type=jnp.float32)
        + b_pack_ref[...]
        + stp_ref[...]
    )


# ----------------------------------------------------------------------------- wrapper
def dynamics_forward(states, actions, params):
    """states: (B, T, S), actions: (B, T, A) -> PyTorch-equivalent outputs."""
    B, T, S = states.shape
    A = actions.shape[-1]
    L, H = params["w_hh"].shape[0], params["w_hh"].shape[1]
    H2 = H // 2
    D = S + A
    f32 = jnp.float32
    bf = lambda a: a.astype(jnp.bfloat16)

    # time-major, flattened over T*B rows
    x0 = jnp.concatenate([states, actions], axis=-1)                       # (B, T, D)
    x0_tm = jnp.transpose(x0, (1, 0, 2)).reshape(T * B, D).astype(f32)
    st_tm = jnp.transpose(states, (1, 0, 2)).reshape(T * B, S).astype(f32)
    st_pack = jnp.pad(st_tm, ((0, 0), (0, 3)))                             # (T*B, S+3)

    # fused scalar heads: one (H, 3*H2) first layer + block-diagonal second layer
    hw1 = jnp.concatenate([params["head_w1"][i] for i in range(3)], axis=1)   # (H, 3H2)
    hb1 = jnp.concatenate([params["head_b1"][i] for i in range(3)], axis=1)   # (1, 3H2)
    hw2_bd = jnp.zeros((3 * H2, 3), f32)
    for i in range(3):
        hw2_bd = hw2_bd.at[i * H2:(i + 1) * H2, i].set(params["head_w2"][i][:, 0])
    hb2 = params["head_b2"].reshape(1, 3)

    # lane-pack state_head + scalar heads into a single (·, S+3) output
    stw_pack = jnp.pad(params["state_w"], ((0, 0), (0, 3)))                # (H, S+3)
    hdw2_pack = jnp.pad(hw2_bd, ((0, 0), (S, 0)))                          # (3H2, S+3)
    b_pack = jnp.concatenate([params["state_b"], hb2], axis=1)             # (1, S+3)

    out_shapes = (
        jax.ShapeDtypeStruct((T * B, S + 3), f32),   # [state_pred | deg | range | speed]
        jax.ShapeDtypeStruct((L, B, H), f32),        # h_n
        jax.ShapeDtypeStruct((L, B, H), f32),        # c_n
    )

    out_pack, hn, cn = pl.pallas_call(
        dynamics_kernel,
        out_shape=out_shapes,
        scratch_shapes=[
            pltpu.VMEM((T * B, H), f32),        # seq (current layer output sequence)
            pltpu.VMEM((T * B, 4 * H), f32),    # gin (hoisted input projection)
            pltpu.VMEM((B, H), f32),            # h
            pltpu.VMEM((B, H), f32),            # c
        ],
    )(
        x0_tm, st_pack,
        bf(params["w_ih0"]), bf(params["w_ih_rest"]), bf(params["w_hh"]),
        params["b_lstm"],
        bf(params["res_w"]), params["res_b"], params["ln_g"], params["ln_b"],
        bf(params["shared_w"]), params["shared_b"],
        bf(stw_pack),
        bf(hw1), hb1, bf(hdw2_pack), b_pack,
    )

    out_bt = jnp.transpose(out_pack.reshape(T, B, S + 3), (1, 0, 2))       # (B, T, S+3)
    state_pred = out_bt[..., :S]
    deg = out_bt[..., S:S + 1]
    rng = out_bt[..., S + 1:S + 2]
    spd = out_bt[..., S + 2:S + 3]
    return state_pred, deg, rng, spd, (hn, cn)


# ----------------------------------------------------------------------------- params
def init_params(key, S, A, H, L):
    D = S + A
    H2 = H // 2
    ks = jax.random.split(key, 16)
    nrm = lambda k, shape, s=0.1: s * jax.random.normal(k, shape, dtype=jnp.float32)
    return dict(
        # LSTM weights stored pre-transposed: (input, 4H); gate order i, f, g, o.
        w_ih0=nrm(ks[0], (D, 4 * H)),
        w_ih_rest=nrm(ks[1], (L - 1, H, 4 * H)),
        w_hh=nrm(ks[2], (L, H, 4 * H)),
        b_lstm=nrm(ks[3], (L, 1, 4 * H)),          # b_ih + b_hh combined
        res_w=0.02 * jax.random.normal(ks[4], (D, H), dtype=jnp.float32),  # normal_(std=0.02)
        res_b=jnp.zeros((1, H), jnp.float32),                              # constant_(0)
        ln_g=jnp.ones((1, H), jnp.float32),
        ln_b=jnp.zeros((1, H), jnp.float32),
        shared_w=nrm(ks[5], (H, H)),
        shared_b=nrm(ks[6], (1, H)),
        state_w=nrm(ks[7], (H, S)),
        state_b=nrm(ks[8], (1, S)),
        head_w1=nrm(ks[9], (3, H, H2)),
        head_b1=nrm(ks[10], (3, 1, H2)),
        head_w2=nrm(ks[11], (3, H2, 1)),
        head_b2=nrm(ks[12], (3, 1, 1)),
    )


# ----------------------------------------------------------------------------- reference
def reference_forward(states, actions, params):
    """Pure-JAX (f32) re-implementation of DynamicsModel.forward (eval mode)."""
    x0 = jnp.concatenate([states, actions], axis=-1)
    B, T, D = x0.shape
    L = params["w_hh"].shape[0]
    H = params["w_hh"].shape[1]

    residual = x0 @ params["res_w"] + params["res_b"][0]
    inp = x0
    hs, cs = [], []
    for l in range(L):
        w_ih = params["w_ih0"] if l == 0 else params["w_ih_rest"][l - 1]
        w_hh = params["w_hh"][l]
        b = params["b_lstm"][l][0]
        h = jnp.zeros((B, H), jnp.float32)
        c = jnp.zeros((B, H), jnp.float32)
        outs = []
        for t in range(T):
            g = inp[:, t, :] @ w_ih + h @ w_hh + b
            i_ = jax.nn.sigmoid(g[:, :H])
            f_ = jax.nn.sigmoid(g[:, H:2 * H])
            gg = jnp.tanh(g[:, 2 * H:3 * H])
            o_ = jax.nn.sigmoid(g[:, 3 * H:])
            c = f_ * c + i_ * gg
            h = o_ * jnp.tanh(c)
            outs.append(h)
        inp = jnp.stack(outs, axis=1)
        hs.append(h)
        cs.append(c)
    lstm_out = inp
    z = lstm_out + residual
    mu = z.mean(-1, keepdims=True)
    var = ((z - mu) ** 2).mean(-1, keepdims=True)
    out = (z - mu) / jnp.sqrt(var + 1e-5) * params["ln_g"][0] + params["ln_b"][0]
    shared = jax.nn.relu(out @ params["shared_w"] + params["shared_b"][0])
    state_pred = shared @ params["state_w"] + params["state_b"][0] + states

    def head(i):
        h1 = jax.nn.relu(out @ params["head_w1"][i] + params["head_b1"][i][0])
        return h1 @ params["head_w2"][i] + params["head_b2"][i][0]

    return (state_pred, head(0), head(1), head(2),
            (jnp.stack(hs, 0), jnp.stack(cs, 0)))


# ----------------------------------------------------------------------------- main
if __name__ == "__main__":
    S, A, H, L = 6, 2, 32, 3       # state_dim, action_dim, hidden_size, num_layers
    B, T = 2, 8

    key = jax.random.PRNGKey(0)
    kp, ks, ka = jax.random.split(key, 3)
    params = init_params(kp, S, A, H, L)
    states = jax.random.normal(ks, (B, T, S), dtype=jnp.float32)
    actions = jax.random.normal(ka, (B, T, A), dtype=jnp.float32)

    outs = dynamics_forward(states, actions, params)
    jax.block_until_ready(outs)

    ref = reference_forward(states, actions, params)
    for got, want in zip(jax.tree_util.tree_leaves(outs), jax.tree_util.tree_leaves(ref)):
        np.testing.assert_allclose(np.asarray(got), np.asarray(want), rtol=5e-2, atol=5e-2)

    print("KERNEL_OK")
</pallas_src>

<mosaic_0001>
module attributes {stable_mosaic.version = 11 : i64} {
  func.func @dynamics_kernel(%arg0: memref<16x8xf32, #tpu.memory_space<vmem>>, %arg1: memref<16x9xf32, #tpu.memory_space<vmem>>, %arg2: memref<8x128xbf16, #tpu.memory_space<vmem>>, %arg3: memref<2x32x128xbf16, #tpu.memory_space<vmem>>, %arg4: memref<3x32x128xbf16, #tpu.memory_space<vmem>>, %arg5: memref<3x1x128xf32, #tpu.memory_space<vmem>>, %arg6: memref<8x32xbf16, #tpu.memory_space<vmem>>, %arg7: memref<1x32xf32, #tpu.memory_space<vmem>>, %arg8: memref<1x32xf32, #tpu.memory_space<vmem>>, %arg9: memref<1x32xf32, #tpu.memory_space<vmem>>, %arg10: memref<32x32xbf16, #tpu.memory_space<vmem>>, %arg11: memref<1x32xf32, #tpu.memory_space<vmem>>, %arg12: memref<32x9xbf16, #tpu.memory_space<vmem>>, %arg13: memref<32x48xbf16, #tpu.memory_space<vmem>>, %arg14: memref<1x48xf32, #tpu.memory_space<vmem>>, %arg15: memref<48x9xbf16, #tpu.memory_space<vmem>>, %arg16: memref<1x9xf32, #tpu.memory_space<vmem>>, %arg17: memref<16x9xf32, #tpu.memory_space<vmem>>, %arg18: memref<3x2x32xf32, #tpu.memory_space<vmem>>, %arg19: memref<3x2x32xf32, #tpu.memory_space<vmem>>, %arg20: memref<16x32xf32, #tpu.memory_space<vmem>>, %arg21: memref<16x128xf32, #tpu.memory_space<vmem>>, %arg22: memref<2x32xf32, #tpu.memory_space<vmem>>, %arg23: memref<2x32xf32, #tpu.memory_space<vmem>>) attributes {dimension_semantics = [], scalar_prefetch = 0 : i64, scratch_operands = 4 : i64, tpu.core_type = #tpu.core_type<tc>} {
    %c0 = arith.constant 0 : index
    %c0_0 = arith.constant 0 : index
    %0 = vector.load %arg2[%c0, %c0_0] : memref<8x128xbf16, #tpu.memory_space<vmem>>, vector<8x128xbf16>
    %c0_1 = arith.constant 0 : index
    %c0_2 = arith.constant 0 : index
    %1 = vector.load %arg0[%c0_1, %c0_2] : memref<16x8xf32, #tpu.memory_space<vmem>>, vector<16x8xf32>
    %2 = arith.truncf %1 : vector<16x8xf32> to vector<16x8xbf16>
    %cst = arith.constant dense<0.000000e+00> : vector<16x128xf32>
    %3 = tpu.matmul %2, %0, %cst {dimension_numbers = #tpu.dot_dimension_numbers<[1], [0], [0], [1], [0, 0, 1, 1], [], []>} : vector<16x8xbf16>, vector<8x128xbf16>, vector<16x128xf32> -> vector<16x128xf32>
    %c0_3 = arith.constant 0 : index
    %c0_4 = arith.constant 0 : index
    %c0_5 = arith.constant 0 : index
    %4 = vector.load %arg5[%c0_3, %c0_4, %c0_5] : memref<3x1x128xf32, #tpu.memory_space<vmem>>, vector<1x1x128xf32>
    %5 = vector.shape_cast %4 : vector<1x1x128xf32> to vector<1x128xf32>
    %6 = vector.broadcast %5 : vector<1x128xf32> to vector<16x128xf32>
    %7 = arith.addf %3, %6 : vector<16x128xf32>
    %c0_6 = arith.constant 0 : index
    %c0_7 = arith.constant 0 : index
    %8 = vector.load %arg21[%c0_6, %c0_7] : memref<16x128xf32, #tpu.memory_space<vmem>>, vector<16x128xf32>
    tpu.vector_store %arg21[%c0_6, %c0_7], %7 {strides = array<i32>} : memref<16x128xf32, #tpu.memory_space<vmem>>, vector<16x128xf32>,
    %c0_8 = arith.constant 0 : index
    %c0_9 = arith.constant 0 : index
    %c0_10 = arith.constant 0 : index
    %9 = vector.load %arg4[%c0_8, %c0_9, %c0_10] : memref<3x32x128xbf16, #tpu.memory_space<vmem>>, vector<1x32x128xbf16>
    %10 = vector.shape_cast %9 : vector<1x32x128xbf16> to vector<32x128xbf16>
    %cst_11 = arith.constant 0.000000e+00 : f32
    %11 = vector.broadcast %cst_11 : f32 to vector<2x32xf32>
    %c0_12 = arith.constant 0 : index
    %c0_13 = arith.constant 0 : index
    %12 = vector.load %arg22[%c0_12, %c0_13] : memref<2x32xf32, #tpu.memory_space<vmem>>, vector<2x32xf32>
    tpu.vector_store %arg22[%c0_12, %c0_13], %11 {strides = array<i32>} : memref<2x32xf32, #tpu.memory_space<vmem>>, vector<2x32xf32>,
    %cst_14 = arith.constant 0.000000e+00 : f32
    %13 = vector.broadcast %cst_14 : f32 to vector<2x32xf32>
    %c0_15 = arith.constant 0 : index
    %c0_16 = arith.constant 0 : index
    %14 = vector.load %arg23[%c0_15, %c0_16] : memref<2x32xf32, #tpu.memory_space<vmem>>, vector<2x32xf32>
    tpu.vector_store %arg23[%c0_15, %c0_16], %13 {strides = array<i32>} : memref<2x32xf32, #tpu.memory_space<vmem>>, vector<2x32xf32>,
    %c0_i32 = arith.constant 0 : i32
    %c2_i32 = arith.constant 2 : i32
    %15 = arith.muli %c0_i32, %c2_i32 : i32
    %16 = tpu.assume_multiple %15, 2 : i32
    %17 = arith.index_cast %16 : i32 to index
    %c0_17 = arith.constant 0 : index
    %18 = vector.load %arg21[%17, %c0_17] : memref<16x128xf32, #tpu.memory_space<vmem>>, vector<2x128xf32>
    %c0_18 = arith.constant 0 : index
    %c0_19 = arith.constant 0 : index
    %19 = vector.load %arg22[%c0_18, %c0_19] : memref<2x32xf32, #tpu.memory_space<vmem>>, vector<2x32xf32>
    %20 = arith.truncf %19 : vector<2x32xf32> to vector<2x32xbf16>
    %cst_20 = arith.constant dense<0.000000e+00> : vector<2x128xf32>
    %21 = tpu.matmul %20, %10, %cst_20 {dimension_numbers = #tpu.dot_dimension_numbers<[1], [0], [0], [1], [0, 0, 1, 1], [], []>} : vector<2x32xbf16>, vector<32x128xbf16>, vector<2x128xf32> -> vector<2x128xf32>
    %22 = arith.addf %18, %21 : vector<2x128xf32>
    %23 = arith.negf %22 : vector<2x128xf32>
    %24 = math.exp %23 : vector<2x128xf32>
    %cst_21 = arith.constant 1.000000e+00 : f32
    %25 = vector.broadcast %cst_21 : f32 to vector<2x128xf32>
    %26 = arith.addf %25, %24 : vector<2x128xf32>
    %27 = arith.divf %25, %26 : vector<2x128xf32>
    %28 = math.tanh %22 : vector<2x128xf32>
    %29 = vector.extract_strided_slice %27 {offsets = [0, 0], sizes = [2, 32], strides = [1, 1]} : vector<2x128xf32> to vector<2x32xf32>
    %30 = vector.extract_strided_slice %27 {offsets = [0, 32], sizes = [2, 32], strides = [1, 1]} : vector<2x128xf32> to vector<2x32xf32>
    %31 = vector.extract_strided_slice %27 {offsets = [0, 96], sizes = [2, 32], strides = [1, 1]} : vector<2x128xf32> to vector<2x32xf32>
    %32 = vector.extract_strided_slice %28 {offsets = [0, 64], sizes = [2, 32], strides = [1, 1]} : vector<2x128xf32> to vector<2x32xf32>
    %c0_22 = arith.constant 0 : index
    %c0_23 = arith.constant 0 : index
    %33 = vector.load %arg23[%c0_22, %c0_23] : memref<2x32xf32, #tpu.memory_space<vmem>>, vector<2x32xf32>
    %34 = arith.mulf %30, %33 : vector<2x32xf32>
    %35 = arith.mulf %29, %32 : vector<2x32xf32>
    %36 = arith.addf %34, %35 : vector<2x32xf32>
    %37 = math.tanh %36 : vector<2x32xf32>
    %38 = arith.mulf %31, %37 : vector<2x32xf32>
    %c0_24 = arith.constant 0 : index
    %c0_25 = arith.constant 0 : index
    %39 = vector.load %arg23[%c0_24, %c0_25] : memref<2x32xf32, #tpu.memory_space<vmem>>, vector<2x32xf32>
    tpu.vector_store %arg23[%c0_24, %c0_25], %36 {strides = array<i32>} : memref<2x32xf32, #tpu.memory_space<vmem>>, vector<2x32xf32>,
    %c0_26 = arith.constant 0 : index
    %c0_27 = arith.constant 0 : index
    %40 = vector.load %arg22[%c0_26, %c0_27] : memref<2x32xf32, #tpu.memory_space<vmem>>, vector<2x32xf32>
    tpu.vector_store %arg22[%c0_26, %c0_27], %38 {strides = array<i32>} : memref<2x32xf32, #tpu.memory_space<vmem>>, vector<2x32xf32>,
    %41 = arith.index_cast %16 : i32 to index
    %c0_28 = arith.constant 0 : index
    %42 = vector.load %arg20[%41, %c0_28] : memref<16x32xf32, #tpu.memory_space<vmem>>, vector<2x32xf32>
    tpu.vector_store %arg20[%41, %c0_28], %38 {strides = array<i32>} : memref<16x32xf32, #tpu.memory_space<vmem>>, vector<2x32xf32>,
    %c1_i32 = arith.constant 1 : i32
    %c2_i32_29 = arith.constant 2 : i32
    %43 = arith.muli %c1_i32, %c2_i32_29 : i32
    %44 = tpu.assume_multiple %43, 2 : i32
    %45 = arith.index_cast %44 : i32 to index
    %c0_30 = arith.constant 0 : index
    %46 = vector.load %arg21[%45, %c0_30] : memref<16x128xf32, #tpu.memory_space<vmem>>, vector<2x128xf32>
    %c0_31 = arith.constant 0 : index
    %c0_32 = arith.constant 0 : index
    %47 = vector.load %arg22[%c0_31, %c0_32] : memref<2x32xf32, #tpu.memory_space<vmem>>, vector<2x32xf32>
    %48 = arith.truncf %47 : vector<2x32xf32> to vector<2x32xbf16>
    %cst_33 = arith.constant dense<0.000000e+00> : vector<2x128xf32>
    %49 = tpu.matmul %48, %10, %cst_33 {dimension_numbers = #tpu.dot_dimension_numbers<[1], [0], [0], [1], [0, 0, 1, 1], [], []>} : vector<2x32xbf16>, vector<32x128xbf16>, vector<2x128xf32> -> vector<2x128xf32>
    %50 = arith.addf %46, %49 : vector<2x128xf32>
    %51 = arith.negf %50 : vector<2x128xf32>
    %52 = math.exp %51 : vector<2x128xf32>
    %cst_34 = arith.constant 1.000000e+00 : f32
    %53 = vector.broadcast %cst_34 : f32 to vector<2x128xf32>
    %54 = arith.addf %53, %52 : vector<2x128xf32>
    %55 = arith.divf %53, %54 : vector<2x128xf32>
    %56 = math.tanh %50 : vector<2x128xf32>
    %57 = vector.extract_strided_slice %55 {offsets = [0, 0], sizes = [2, 32], strides = [1, 1]} : vector<2x128xf32> to vector<2x32xf32>
    %58 = vector.extract_strided_slice %55 {offsets = [0, 32], sizes = [2, 32], strides = [1, 1]} : vector<2x128xf32> to vector<2x32xf32>
    %59 = vector.extract_strided_slice %55 {offsets = [0, 96], sizes = [2, 32], strides = [1, 1]} : vector<2x128xf32> to vector<2x32xf32>
    %60 = vector.extract_strided_slice %56 {offsets = [0, 64], sizes = [2, 32], strides = [1, 1]} : vector<2x128xf32> to vector<2x32xf32>
    %c0_35 = arith.constant 0 : index
    %c0_36 = arith.constant 0 : index
    %61 = vector.load %arg23[%c0_35, %c0_36] : memref<2x32xf32, #tpu.memory_space<vmem>>, vector<2x32xf32>
    %62 = arith.mulf %58, %61 : vector<2x32xf32>
    %63 = arith.mulf %57, %60 : vector<2x32xf32>
    %64 = arith.addf %62, %63 : vector<2x32xf32>
    %65 = math.tanh %64 : vector<2x32xf32>
    %66 = arith.mulf %59, %65 : vector<2x32xf32>
    %c0_37 = arith.constant 0 : index
    %c0_38 = arith.constant 0 : index
    %67 = vector.load %arg23[%c0_37, %c0_38] : memref<2x32xf32, #tpu.memory_space<vmem>>, vector<2x32xf32>
    tpu.vector_store %arg23[%c0_37, %c0_38], %64 {strides = array<i32>} : memref<2x32xf32, #tpu.memory_space<vmem>>, vector<2x32xf32>,
    %c0_39 = arith.constant 0 : index
    %c0_40 = arith.constant 0 : index
    %68 = vector.load %arg22[%c0_39, %c0_40] : memref<2x32xf32, #tpu.memory_space<vmem>>, vector<2x32xf32>
    tpu.vector_store %arg22[%c0_39, %c0_40], %66 {strides = array<i32>} : memref<2x32xf32, #tpu.memory_space<vmem>>, vector<2x32xf32>,
    %69 = arith.index_cast %44 : i32 to index
    %c0_41 = arith.constant 0 : index
    %70 = vector.load %arg20[%69, %c0_41] : memref<16x32xf32, #tpu.memory_space<vmem>>, vector<2x32xf32>
    tpu.vector_store %arg20[%69, %c0_41], %66 {strides = array<i32>} : memref<16x32xf32, #tpu.memory_space<vmem>>, vector<2x32xf32>,
    %c2_i32_42 = arith.constant 2 : i32
    %c2_i32_43 = arith.constant 2 : i32
    %71 = arith.muli %c2_i32_42, %c2_i32_43 : i32
    %72 = tpu.assume_multiple %71, 2 : i32
    %73 = arith.index_cast %72 : i32 to index
    %c0_44 = arith.constant 0 : index
    %74 = vector.load %arg21[%73, %c0_44] : memref<16x128xf32, #tpu.memory_space<vmem>>, vector<2x128xf32>
    %c0_45 = arith.constant 0 : index
    %c0_46 = arith.constant 0 : index
    %75 = vector.load %arg22[%c0_45, %c0_46] : memref<2x32xf32, #tpu.memory_space<vmem>>, vector<2x32xf32>
    %76 = arith.truncf %75 : vector<2x32xf32> to vector<2x32xbf16>
    %cst_47 = arith.constant dense<0.000000e+00> : vector<2x128xf32>
    %77 = tpu.matmul %76, %10, %cst_47 {dimension_numbers = #tpu.dot_dimension_numbers<[1], [0], [0], [1], [0, 0, 1, 1], [], []>} : vector<2x32xbf16>, vector<32x128xbf16>, vector<2x128xf32> -> vector<2x128xf32>
    %78 = arith.addf %74, %77 : vector<2x128xf32>
    %79 = arith.negf %78 : vector<2x128xf32>
    %80 = math.exp %79 : vector<2x128xf32>
    %cst_48 = arith.constant 1.000000e+00 : f32
    %81 = vector.broadcast %cst_48 : f32 to vector<2x128xf32>
    %82 = arith.addf %81, %80 : vector<2x128xf32>
    %83 = arith.divf %81, %82 : vector<2x128xf32>
    %84 = math.tanh %78 : vector<2x128xf32>
    %85 = vector.extract_strided_slice %83 {offsets = [0, 0], sizes = [2, 32], strides = [1, 1]} : vector<2x128xf32> to vector<2x32xf32>
    %86 = vector.extract_strided_slice %83 {offsets = [0, 32], sizes = [2, 32], strides = [1, 1]} : vector<2x128xf32> to vector<2x32xf32>
    %87 = vector.extract_strided_slice %83 {offsets = [0, 96], sizes = [2, 32], strides = [1, 1]} : vector<2x128xf32> to vector<2x32xf32>
    %88 = vector.extract_strided_slice %84 {offsets = [0, 64], sizes = [2, 32], strides = [1, 1]} : vector<2x128xf32> to vector<2x32xf32>
    %c0_49 = arith.constant 0 : index
    %c0_50 = arith.constant 0 : index
    %89 = vector.load %arg23[%c0_49, %c0_50] : memref<2x32xf32, #tpu.memory_space<vmem>>, vector<2x32xf32>
    %90 = arith.mulf %86, %89 : vector<2x32xf32>
    %91 = arith.mulf %85, %88 : vector<2x32xf32>
    %92 = arith.addf %90, %91 : vector<2x32xf32>
    %93 = math.tanh %92 : vector<2x32xf32>
    %94 = arith.mulf %87, %93 : vector<2x32xf32>
    %c0_51 = arith.constant 0 : index
    %c0_52 = arith.constant 0 : index
    %95 = vector.load %arg23[%c0_51, %c0_52] : memref<2x32xf32, #tpu.memory_space<vmem>>, vector<2x32xf32>
    tpu.vector_store %arg23[%c0_51, %c0_52], %92 {strides = array<i32>} : memref<2x32xf32, #tpu.memory_space<vmem>>, vector<2x32xf32>,
    %c0_53 = arith.constant 0 : index
    %c0_54 = arith.constant 0 : index
    %96 = vector.load %arg22[%c0_53, %c0_54] : memref<2x32xf32, #tpu.memory_space<vmem>>, vector<2x32xf32>
    tpu.vector_store %arg22[%c0_53, %c0_54], %94 {strides = array<i32>} : memref<2x32xf32, #tpu.memory_space<vmem>>, vector<2x32xf32>,
    %97 = arith.index_cast %72 : i32 to index
    %c0_55 = arith.constant 0 : index
    %98 = vector.load %arg20[%97, %c0_55] : memref<16x32xf32, #tpu.memory_space<vmem>>, vector<2x32xf32>
    tpu.vector_store %arg20[%97, %c0_55], %94 {strides = array<i32>} : memref<16x32xf32, #tpu.memory_space<vmem>>, vector<2x32xf32>,
    %c3_i32 = arith.constant 3 : i32
    %c2_i32_56 = arith.constant 2 : i32
    %99 = arith.muli %c3_i32, %c2_i32_56 : i32
    %100 = tpu.assume_multiple %99, 2 : i32
    %101 = arith.index_cast %100 : i32 to index
    %c0_57 = arith.constant 0 : index
    %102 = vector.load %arg21[%101, %c0_57] : memref<16x128xf32, #tpu.memory_space<vmem>>, vector<2x128xf32>
    %c0_58 = arith.constant 0 : index
    %c0_59 = arith.constant 0 : index
    %103 = vector.load %arg22[%c0_58, %c0_59] : memref<2x32xf32, #tpu.memory_space<vmem>>, vector<2x32xf32>
    %104 = arith.truncf %103 : vector<2x32xf32> to vector<2x32xbf16>
    %cst_60 = arith.constant dense<0.000000e+00> : vector<2x128xf32>
    %105 = tpu.matmul %104, %10, %cst_60 {dimension_numbers = #tpu.dot_dimension_numbers<[1], [0], [0], [1], [0, 0, 1, 1], [], []>} : vector<2x32xbf16>, vector<32x128xbf16>, vector<2x128xf32> -> vector<2x128xf32>
    %106 = arith.addf %102, %105 : vector<2x128xf32>
    %107 = arith.negf %106 : vector<2x128xf32>
    %108 = math.exp %107 : vector<2x128xf32>
    %cst_61 = arith.constant 1.000000e+00 : f32
    %109 = vector.broadcast %cst_61 : f32 to vector<2x128xf32>
    %110 = arith.addf %109, %108 : vector<2x128xf32>
    %111 = arith.divf %109, %110 : vector<2x128xf32>
    %112 = math.tanh %106 : vector<2x128xf32>
    %113 = vector.extract_strided_slice %111 {offsets = [0, 0], sizes = [2, 32], strides = [1, 1]} : vector<2x128xf32> to vector<2x32xf32>
    %114 = vector.extract_strided_slice %111 {offsets = [0, 32], sizes = [2, 32], strides = [1, 1]} : vector<2x128xf32> to vector<2x32xf32>
    %115 = vector.extract_strided_slice %111 {offsets = [0, 96], sizes = [2, 32], strides = [1, 1]} : vector<2x128xf32> to vector<2x32xf32>
    %116 = vector.extract_strided_slice %112 {offsets = [0, 64], sizes = [2, 32], strides = [1, 1]} : vector<2x128xf32> to vector<2x32xf32>
    %c0_62 = arith.constant 0 : index
    %c0_63 = arith.constant 0 : index
    %117 = vector.load %arg23[%c0_62, %c0_63] : memref<2x32xf32, #tpu.memory_space<vmem>>, vector<2x32xf32>
    %118 = arith.mulf %114, %117 : vector<2x32xf32>
    %119 = arith.mulf %113, %116 : vector<2x32xf32>
    %120 = arith.addf %118, %119 : vector<2x32xf32>
    %121 = math.tanh %120 : vector<2x32xf32>
    %122 = arith.mulf %115, %121 : vector<2x32xf32>
    %c0_64 = arith.constant 0 : index
    %c0_65 = arith.constant 0 : index
    %123 = vector.load %arg23[%c0_64, %c0_65] : memref<2x32xf32, #tpu.memory_space<vmem>>, vector<2x32xf32>
    tpu.vector_store %arg23[%c0_64, %c0_65], %120 {strides = array<i32>} : memref<2x32xf32, #tpu.memory_space<vmem>>, vector<2x32xf32>,
    %c0_66 = arith.constant 0 : index
    %c0_67 = arith.constant 0 : index
    %124 = vector.load %arg22[%c0_66, %c0_67] : memref<2x32xf32, #tpu.memory_space<vmem>>, vector<2x32xf32>
    tpu.vector_store %arg22[%c0_66, %c0_67], %122 {strides = array<i32>} : memref<2x32xf32, #tpu.memory_space<vmem>>, vector<2x32xf32>,
    %125 = arith.index_cast %100 : i32 to index
    %c0_68 = arith.constant 0 : index
    %126 = vector.load %arg20[%125, %c0_68] : memref<16x32xf32, #tpu.memory_space<vmem>>, vector<2x32xf32>
    tpu.vector_store %arg20[%125, %c0_68], %122 {strides = array<i32>} : memref<16x32xf32, #tpu.memory_space<vmem>>, vector<2x32xf32>,
    %c4_i32 = arith.constant 4 : i32
    %c2_i32_69 = arith.constant 2 : i32
    %127 = arith.muli %c4_i32, %c2_i32_69 : i32
    %128 = tpu.assume_multiple %127, 2 : i32
    %129 = arith.index_cast %128 : i32 to index
    %c0_70 = arith.constant 0 : index
    %130 = vector.load %arg21[%129, %c0_70] : memref<16x128xf32, #tpu.memory_space<vmem>>, vector<2x128xf32>
    %c0_71 = arith.constant 0 : index
    %c0_72 = arith.constant 0 : index
    %131 = vector.load %arg22[%c0_71, %c0_72] : memref<2x32xf32, #tpu.memory_space<vmem>>, vector<2x32xf32>
    %132 = arith.truncf %131 : vector<2x32xf32> to vector<2x32xbf16>
    %cst_73 = arith.constant dense<0.000000e+00> : vector<2x128xf32>
    %133 = tpu.matmul %132, %10, %cst_73 {dimension_numbers = #tpu.dot_dimension_numbers<[1], [0], [0], [1], [0, 0, 1, 1], [], []>} : vector<2x32xbf16>, vector<32x128xbf16>, vector<2x128xf32> -> vector<2x128xf32>
    %134 = arith.addf %130, %133 : vector<2x128xf32>
    %135 = arith.negf %134 : vector<2x128xf32>
    %136 = math.exp %135 : vector<2x128xf32>
    %cst_74 = arith.constant 1.000000e+00 : f32
    %137 = vector.broadcast %cst_74 : f32 to vector<2x128xf32>
    %138 = arith.addf %137, %136 : vector<2x128xf32>
    %139 = arith.divf %137, %138 : vector<2x128xf32>
    %140 = math.tanh %134 : vector<2x128xf32>
    %141 = vector.extract_strided_slice %139 {offsets = [0, 0], sizes = [2, 32], strides = [1, 1]} : vector<2x128xf32> to vector<2x32xf32>
    %142 = vector.extract_strided_slice %139 {offsets = [0, 32], sizes = [2, 32], strides = [1, 1]} : vector<2x128xf32> to vector<2x32xf32>
    %143 = vector.extract_strided_slice %139 {offsets = [0, 96], sizes = [2, 32], strides = [1, 1]} : vector<2x128xf32> to vector<2x32xf32>
    %144 = vector.extract_strided_slice %140 {offsets = [0, 64], sizes = [2, 32], strides = [1, 1]} : vector<2x128xf32> to vector<2x32xf32>
    %c0_75 = arith.constant 0 : index
    %c0_76 = arith.constant 0 : index
    %145 = vector.load %arg23[%c0_75, %c0_76] : memref<2x32xf32, #tpu.memory_space<vmem>>, vector<2x32xf32>
    %146 = arith.mulf %142, %145 : vector<2x32xf32>
    %147 = arith.mulf %141, %144 : vector<2x32xf32>
    %148 = arith.addf %146, %147 : vector<2x32xf32>
    %149 = math.tanh %148 : vector<2x32xf32>
    %150 = arith.mulf %143, %149 : vector<2x32xf32>
    %c0_77 = arith.constant 0 : index
    %c0_78 = arith.constant 0 : index
    %151 = vector.load %arg23[%c0_77, %c0_78] : memref<2x32xf32, #tpu.memory_space<vmem>>, vector<2x32xf32>
    tpu.vector_store %arg23[%c0_77, %c0_78], %148 {strides = array<i32>} : memref<2x32xf32, #tpu.memory_space<vmem>>, vector<2x32xf32>,
    %c0_79 = arith.constant 0 : index
    %c0_80 = arith.constant 0 : index
    %152 = vector.load %arg22[%c0_79, %c0_80] : memref<2x32xf32, #tpu.memory_space<vmem>>, vector<2x32xf32>
    tpu.vector_store %arg22[%c0_79, %c0_80], %150 {strides = array<i32>} : memref<2x32xf32, #tpu.memory_space<vmem>>, vector<2x32xf32>,
    %153 = arith.index_cast %128 : i32 to index
    %c0_81 = arith.constant 0 : index
    %154 = vector.load %arg20[%153, %c0_81] : memref<16x32xf32, #tpu.memory_space<vmem>>, vector<2x32xf32>
    tpu.vector_store %arg20[%153, %c0_81], %150 {strides = array<i32>} : memref<16x32xf32, #tpu.memory_space<vmem>>, vector<2x32xf32>,
    %c5_i32 = arith.constant 5 : i32
    %c2_i32_82 = arith.constant 2 : i32
    %155 = arith.muli %c5_i32, %c2_i32_82 : i32
    %156 = tpu.assume_multiple %155, 2 : i32
    %157 = arith.index_cast %156 : i32 to index
    %c0_83 = arith.constant 0 : index
    %158 = vector.load %arg21[%157, %c0_83] : memref<16x128xf32, #tpu.memory_space<vmem>>, vector<2x128xf32>
    %c0_84 = arith.constant 0 : index
    %c0_85 = arith.constant 0 : index
    %159 = vector.load %arg22[%c0_84, %c0_85] : memref<2x32xf32, #tpu.memory_space<vmem>>, vector<2x32xf32>
    %160 = arith.truncf %159 : vector<2x32xf32> to vector<2x32xbf16>
    %cst_86 = arith.constant dense<0.000000e+00> : vector<2x128xf32>
    %161 = tpu.matmul %160, %10, %cst_86 {dimension_numbers = #tpu.dot_dimension_numbers<[1], [0], [0], [1], [0, 0, 1, 1], [], []>} : vector<2x32xbf16>, vector<32x128xbf16>, vector<2x128xf32> -> vector<2x128xf32>
    %162 = arith.addf %158, %161 : vector<2x128xf32>
    %163 = arith.negf %162 : vector<2x128xf32>
    %164 = math.exp %163 : vector<2x128xf32>
    %cst_87 = arith.constant 1.000000e+00 : f32
    %165 = vector.broadcast %cst_87 : f32 to vector<2x128xf32>
    %166 = arith.addf %165, %164 : vector<2x128xf32>
    %167 = arith.divf %165, %166 : vector<2x128xf32>
    %168 = math.tanh %162 : vector<2x128xf32>
    %169 = vector.extract_strided_slice %167 {offsets = [0, 0], sizes = [2, 32], strides = [1, 1]} : vector<2x128xf32> to vector<2x32xf32>
    %170 = vector.extract_strided_slice %167 {offsets = [0, 32], sizes = [2, 32], strides = [1, 1]} : vector<2x128xf32> to vector<2x32xf32>
    %171 = vector.extract_strided_slice %167 {offsets = [0, 96], sizes = [2, 32], strides = [1, 1]} : vector<2x128xf32> to vector<2x32xf32>
    %172 = vector.extract_strided_slice %168 {offsets = [0, 64], sizes = [2, 32], strides = [1, 1]} : vector<2x128xf32> to vector<2x32xf32>
    %c0_88 = arith.constant 0 : index
    %c0_89 = arith.constant 0 : index
    %173 = vector.load %arg23[%c0_88, %c0_89] : memref<2x32xf32, #tpu.memory_space<vmem>>, vector<2x32xf32>
    %174 = arith.mulf %170, %173 : vector<2x32xf32>
    %175 = arith.mulf %169, %172 : vector<2x32xf32>
    %176 = arith.addf %174, %175 : vector<2x32xf32>
    %177 = math.tanh %176 : vector<2x32xf32>
    %178 = arith.mulf %171, %177 : vector<2x32xf32>
    %c0_90 = arith.constant 0 : index
    %c0_91 = arith.constant 0 : index
    %179 = vector.load %arg23[%c0_90, %c0_91] : memref<2x32xf32, #tpu.memory_space<vmem>>, vector<2x32xf32>
    tpu.vector_store %arg23[%c0_90, %c0_91], %176 {strides = array<i32>} : memref<2x32xf32, #tpu.memory_space<vmem>>, vector<2x32xf32>,
    %c0_92 = arith.constant 0 : index
    %c0_93 = arith.constant 0 : index
    %180 = vector.load %arg22[%c0_92, %c0_93] : memref<2x32xf32, #tpu.memory_space<vmem>>, vector<2x32xf32>
    tpu.vector_store %arg22[%c0_92, %c0_93], %178 {strides = array<i32>} : memref<2x32xf32, #tpu.memory_space<vmem>>, vector<2x32xf32>,
    %181 = arith.index_cast %156 : i32 to index
    %c0_94 = arith.constant 0 : index
    %182 = vector.load %arg20[%181, %c0_94] : memref<16x32xf32, #tpu.memory_space<vmem>>, vector<2x32xf32>
    tpu.vector_store %arg20[%181, %c0_94], %178 {strides = array<i32>} : memref<16x32xf32, #tpu.memory_space<vmem>>, vector<2x32xf32>,
    %c6_i32 = arith.constant 6 : i32
    %c2_i32_95 = arith.constant 2 : i32
    %183 = arith.muli %c6_i32, %c2_i32_95 : i32
    %184 = tpu.assume_multiple %183, 2 : i32
    %185 = arith.index_cast %184 : i32 to index
    %c0_96 = arith.constant 0 : index
    %186 = vector.load %arg21[%185, %c0_96] : memref<16x128xf32, #tpu.memory_space<vmem>>, vector<2x128xf32>
    %c0_97 = arith.constant 0 : index
    %c0_98 = arith.constant 0 : index
    %187 = vector.load %arg22[%c0_97, %c0_98] : memref<2x32xf32, #tpu.memory_space<vmem>>, vector<2x32xf32>
    %188 = arith.truncf %187 : vector<2x32xf32> to vector<2x32xbf16>
    %cst_99 = arith.constant dense<0.000000e+00> : vector<2x128xf32>
    %189 = tpu.matmul %188, %10, %cst_99 {dimension_numbers = #tpu.dot_dimension_numbers<[1], [0], [0], [1], [0, 0, 1, 1], [], []>} : vector<2x32xbf16>, vector<32x128xbf16>, vector<2x128xf32> -> vector<2x128xf32>
    %190 = arith.addf %186, %189 : vector<2x128xf32>
    %191 = arith.negf %190 : vector<2x128xf32>
    %192 = math.exp %191 : vector<2x128xf32>
    %cst_100 = arith.constant 1.000000e+00 : f32
    %193 = vector.broadcast %cst_100 : f32 to vector<2x128xf32>
    %194 = arith.addf %193, %192 : vector<2x128xf32>
    %195 = arith.divf %193, %194 : vector<2x128xf32>
    %196 = math.tanh %190 : vector<2x128xf32>
    %197 = vector.extract_strided_slice %195 {offsets = [0, 0], sizes = [2, 32], strides = [1, 1]} : vector<2x128xf32> to vector<2x32xf32>
    %198 = vector.extract_strided_slice %195 {offsets = [0, 32], sizes = [2, 32], strides = [1, 1]} : vector<2x128xf32> to vector<2x32xf32>
    %199 = vector.extract_strided_slice %195 {offsets = [0, 96], sizes = [2, 32], strides = [1, 1]} : vector<2x128xf32> to vector<2x32xf32>
    %200 = vector.extract_strided_slice %196 {offsets = [0, 64], sizes = [2, 32], strides = [1, 1]} : vector<2x128xf32> to vector<2x32xf32>
    %c0_101 = arith.constant 0 : index
    %c0_102 = arith.constant 0 : index
    %201 = vector.load %arg23[%c0_101, %c0_102] : memref<2x32xf32, #tpu.memory_space<vmem>>, vector<2x32xf32>
    %202 = arith.mulf %198, %201 : vector<2x32xf32>
    %203 = arith.mulf %197, %200 : vector<2x32xf32>
    %204 = arith.addf %202, %203 : vector<2x32xf32>
    %205 = math.tanh %204 : vector<2x32xf32>
    %206 = arith.mulf %199, %205 : vector<2x32xf32>
    %c0_103 = arith.constant 0 : index
    %c0_104 = arith.constant 0 : index
    %207 = vector.load %arg23[%c0_103, %c0_104] : memref<2x32xf32, #tpu.memory_space<vmem>>, vector<2x32xf32>
    tpu.vector_store %arg23[%c0_103, %c0_104], %204 {strides = array<i32>} : memref<2x32xf32, #tpu.memory_space<vmem>>, vector<2x32xf32>,
    %c0_105 = arith.constant 0 : index
    %c0_106 = arith.constant 0 : index
    %208 = vector.load %arg22[%c0_105, %c0_106] : memref<2x32xf32, #tpu.memory_space<vmem>>, vector<2x32xf32>
    tpu.vector_store %arg22[%c0_105, %c0_106], %206 {strides = array<i32>} : memref<2x32xf32, #tpu.memory_space<vmem>>, vector<2x32xf32>,
    %209 = arith.index_cast %184 : i32 to index
    %c0_107 = arith.constant 0 : index
    %210 = vector.load %arg20[%209, %c0_107] : memref<16x32xf32, #tpu.memory_space<vmem>>, vector<2x32xf32>
    tpu.vector_store %arg20[%209, %c0_107], %206 {strides = array<i32>} : memref<16x32xf32, #tpu.memory_space<vmem>>, vector<2x32xf32>,
    %c7_i32 = arith.constant 7 : i32
    %c2_i32_108 = arith.constant 2 : i32
    %211 = arith.muli %c7_i32, %c2_i32_108 : i32
    %212 = tpu.assume_multiple %211, 2 : i32
    %213 = arith.index_cast %212 : i32 to index
    %c0_109 = arith.constant 0 : index
    %214 = vector.load %arg21[%213, %c0_109] : memref<16x128xf32, #tpu.memory_space<vmem>>, vector<2x128xf32>
    %c0_110 = arith.constant 0 : index
    %c0_111 = arith.constant 0 : index
    %215 = vector.load %arg22[%c0_110, %c0_111] : memref<2x32xf32, #tpu.memory_space<vmem>>, vector<2x32xf32>
    %216 = arith.truncf %215 : vector<2x32xf32> to vector<2x32xbf16>
    %cst_112 = arith.constant dense<0.000000e+00> : vector<2x128xf32>
    %217 = tpu.matmul %216, %10, %cst_112 {dimension_numbers = #tpu.dot_dimension_numbers<[1], [0], [0], [1], [0, 0, 1, 1], [], []>} : vector<2x32xbf16>, vector<32x128xbf16>, vector<2x128xf32> -> vector<2x128xf32>
    %218 = arith.addf %214, %217 : vector<2x128xf32>
    %219 = arith.negf %218 : vector<2x128xf32>
    %220 = math.exp %219 : vector<2x128xf32>
    %cst_113 = arith.constant 1.000000e+00 : f32
    %221 = vector.broadcast %cst_113 : f32 to vector<2x128xf32>
    %222 = arith.addf %221, %220 : vector<2x128xf32>
    %223 = arith.divf %221, %222 : vector<2x128xf32>
    %224 = math.tanh %218 : vector<2x128xf32>
    %225 = vector.extract_strided_slice %223 {offsets = [0, 0], sizes = [2, 32], strides = [1, 1]} : vector<2x128xf32> to vector<2x32xf32>
    %226 = vector.extract_strided_slice %223 {offsets = [0, 32], sizes = [2, 32], strides = [1, 1]} : vector<2x128xf32> to vector<2x32xf32>
    %227 = vector.extract_strided_slice %223 {offsets = [0, 96], sizes = [2, 32], strides = [1, 1]} : vector<2x128xf32> to vector<2x32xf32>
    %228 = vector.extract_strided_slice %224 {offsets = [0, 64], sizes = [2, 32], strides = [1, 1]} : vector<2x128xf32> to vector<2x32xf32>
    %c0_114 = arith.constant 0 : index
    %c0_115 = arith.constant 0 : index
    %229 = vector.load %arg23[%c0_114, %c0_115] : memref<2x32xf32, #tpu.memory_space<vmem>>, vector<2x32xf32>
    %230 = arith.mulf %226, %229 : vector<2x32xf32>
    %231 = arith.mulf %225, %228 : vector<2x32xf32>
    %232 = arith.addf %230, %231 : vector<2x32xf32>
    %233 = math.tanh %232 : vector<2x32xf32>
    %234 = arith.mulf %227, %233 : vector<2x32xf32>
    %c0_116 = arith.constant 0 : index
    %c0_117 = arith.constant 0 : index
    %235 = vector.load %arg23[%c0_116, %c0_117] : memref<2x32xf32, #tpu.memory_space<vmem>>, vector<2x32xf32>
    tpu.vector_store %arg23[%c0_116, %c0_117], %232 {strides = array<i32>} : memref<2x32xf32, #tpu.memory_space<vmem>>, vector<2x32xf32>,
    %c0_118 = arith.constant 0 : index
    %c0_119 = arith.constant 0 : index
    %236 = vector.load %arg22[%c0_118, %c0_119] : memref<2x32xf32, #tpu.memory_space<vmem>>, vector<2x32xf32>
    tpu.vector_store %arg22[%c0_118, %c0_119], %234 {strides = array<i32>} : memref<2x32xf32, #tpu.memory_space<vmem>>, vector<2x32xf32>,
    %237 = arith.index_cast %212 : i32 to index
    %c0_120 = arith.constant 0 : index
    %238 = vector.load %arg20[%237, %c0_120] : memref<16x32xf32, #tpu.memory_space<vmem>>, vector<2x32xf32>
    tpu.vector_store %arg20[%237, %c0_120], %234 {strides = array<i32>} : memref<16x32xf32, #tpu.memory_space<vmem>>, vector<2x32xf32>,
    %c8_i32 = arith.constant 8 : i32
    %c0_121 = arith.constant 0 : index
    %c0_122 = arith.constant 0 : index
    %239 = vector.load %arg22[%c0_121, %c0_122] : memref<2x32xf32, #tpu.memory_space<vmem>>, vector<2x32xf32>
    %c0_123 = arith.constant 0 : index
    %c0_124 = arith.constant 0 : index
    %c0_125 = arith.constant 0 : index
    %240 = vector.load %arg18[%c0_123, %c0_124, %c0_125] : memref<3x2x32xf32, #tpu.memory_space<vmem>>, vector<1x2x32xf32>
    %241 = vector.shape_cast %240 : vector<1x2x32xf32> to vector<2x32xf32>
    %242 = vector.shape_cast %239 : vector<2x32xf32> to vector<1x2x32xf32>
    tpu.vector_store %arg18[%c0_123, %c0_124, %c0_125], %242 {strides = array<i32>} : memref<3x2x32xf32, #tpu.memory_space<vmem>>, vector<1x2x32xf32>,
    %c0_126 = arith.constant 0 : index
    %c0_127 = arith.constant 0 : index
    %243 = vector.load %arg23[%c0_126, %c0_127] : memref<2x32xf32, #tpu.memory_space<vmem>>, vector<2x32xf32>
    %c0_128 = arith.constant 0 : index
    %c0_129 = arith.constant 0 : index
    %c0_130 = arith.constant 0 : index
    %244 = vector.load %arg19[%c0_128, %c0_129, %c0_130] : memref<3x2x32xf32, #tpu.memory_space<vmem>>, vector<1x2x32xf32>
    %245 = vector.shape_cast %244 : vector<1x2x32xf32> to vector<2x32xf32>
    %246 = vector.shape_cast %243 : vector<2x32xf32> to vector<1x2x32xf32>
    tpu.vector_store %arg19[%c0_128, %c0_129, %c0_130], %246 {strides = array<i32>} : memref<3x2x32xf32, #tpu.memory_space<vmem>>, vector<1x2x32xf32>,
    %c0_131 = arith.constant 0 : index
    %c0_132 = arith.constant 0 : index
    %c0_133 = arith.constant 0 : index
    %247 = vector.load %arg3[%c0_131, %c0_132, %c0_133] : memref<2x32x128xbf16, #tpu.memory_space<vmem>>, vector<1x32x128xbf16>
    %248 = vector.shape_cast %247 : vector<1x32x128xbf16> to vector<32x128xbf16>
    %c0_134 = arith.constant 0 : index
    %c0_135 = arith.constant 0 : index
    %249 = vector.load %arg20[%c0_134, %c0_135] : memref<16x32xf32, #tpu.memory_space<vmem>>, vector<16x32xf32>
    %250 = arith.truncf %249 : vector<16x32xf32> to vector<16x32xbf16>
    %cst_136 = arith.constant dense<0.000000e+00> : vector<16x128xf32>
    %251 = tpu.matmul %250, %248, %cst_136 {dimension_numbers = #tpu.dot_dimension_numbers<[1], [0], [0], [1], [0, 0, 1, 1], [], []>} : vector<16x32xbf16>, vector<32x128xbf16>, vector<16x128xf32> -> vector<16x128xf32>
    %c1 = arith.constant 1 : index
    %c0_137 = arith.constant 0 : index
    %c0_138 = arith.constant 0 : index
    %252 = vector.load %arg5[%c1, %c0_137, %c0_138] : memref<3x1x128xf32, #tpu.memory_space<vmem>>, vector<1x1x128xf32>
    %253 = vector.shape_cast %252 : vector<1x1x128xf32> to vector<1x128xf32>
    %254 = vector.broadcast %253 : vector<1x128xf32> to vector<16x128xf32>
    %255 = arith.addf %251, %254 : vector<16x128xf32>
    %c0_139 = arith.constant 0 : index
    %c0_140 = arith.constant 0 : index
    %256 = vector.load %arg21[%c0_139, %c0_140] : memref<16x128xf32, #tpu.memory_space<vmem>>, vector<16x128xf32>
    tpu.vector_store %arg21[%c0_139, %c0_140], %255 {strides = array<i32>} : memref<16x128xf32, #tpu.memory_space<vmem>>, vector<16x128xf32>,
    %c1_141 = arith.constant 1 : index
    %c0_142 = arith.constant 0 : index
    %c0_143 = arith.constant 0 : index
    %257 = vector.load %arg4[%c1_141, %c0_142, %c0_143] : memref<3x32x128xbf16, #tpu.memory_space<vmem>>, vector<1x32x128xbf16>
    %258 = vector.shape_cast %257 : vector<1x32x128xbf16> to vector<32x128xbf16>
    %cst_144 = arith.constant 0.000000e+00 : f32
    %259 = vector.broadcast %cst_144 : f32 to vector<2x32xf32>
    %c0_145 = arith.constant 0 : index
    %c0_146 = arith.constant 0 : index
    %260 = vector.load %arg22[%c0_145, %c0_146] : memref<2x32xf32, #tpu.memory_space<vmem>>, vector<2x32xf32>
    tpu.vector_store %arg22[%c0_145, %c0_146], %259 {strides = array<i32>} : memref<2x32xf32, #tpu.memory_space<vmem>>, vector<2x32xf32>,
    %cst_147 = arith.constant 0.000000e+00 : f32
    %261 = vector.broadcast %cst_147 : f32 to vector<2x32xf32>
    %c0_148 = arith.constant 0 : index
    %c0_149 = arith.constant 0 : index
    %262 = vector.load %arg23[%c0_148, %c0_149] : memref<2x32xf32, #tpu.memory_space<vmem>>, vector<2x32xf32>
    tpu.vector_store %arg23[%c0_148, %c0_149], %261 {strides = array<i32>} : memref<2x32xf32, #tpu.memory_space<vmem>>, vector<2x32xf32>,
    %c0_i32_150 = arith.constant 0 : i32
    %c2_i32_151 = arith.constant 2 : i32
    %263 = arith.muli %c0_i32_150, %c2_i32_151 : i32
    %264 = tpu.assume_multiple %263, 2 : i32
    %265 = arith.index_cast %264 : i32 to index
    %c0_152 = arith.constant 0 : index
    %266 = vector.load %arg21[%265, %c0_152] : memref<16x128xf32, #tpu.memory_space<vmem>>, vector<2x128xf32>
    %c0_153 = arith.constant 0 : index
    %c0_154 = arith.constant 0 : index
    %267 = vector.load %arg22[%c0_153, %c0_154] : memref<2x32xf32, #tpu.memory_space<vmem>>, vector<2x32xf32>
    %268 = arith.truncf %267 : vector<2x32xf32> to vector<2x32xbf16>
    %cst_155 = arith.constant dense<0.000000e+00> : vector<2x128xf32>
    %269 = tpu.matmul %268, %258, %cst_155 {dimension_numbers = #tpu.dot_dimension_numbers<[1], [0], [0], [1], [0, 0, 1, 1], [], []>} : vector<2x32xbf16>, vector<32x128xbf16>, vector<2x128xf32> -> vector<2x128xf32>
    %270 = arith.addf %266, %269 : vector<2x128xf32>
    %271 = arith.negf %270 : vector<2x128xf32>
    %272 = math.exp %271 : vector<2x128xf32>
    %cst_156 = arith.constant 1.000000e+00 : f32
    %273 = vector.broadcast %cst_156 : f32 to vector<2x128xf32>
    %274 = arith.addf %273, %272 : vector<2x128xf32>
    %275 = arith.divf %273, %274 : vector<2x128xf32>
    %276 = math.tanh %270 : vector<2x128xf32>
    %277 = vector.extract_strided_slice %275 {offsets = [0, 0], sizes = [2, 32], strides = [1, 1]} : vector<2x128xf32> to vector<2x32xf32>
    %278 = vector.extract_strided_slice %275 {offsets = [0, 32], sizes = [2, 32], strides = [1, 1]} : vector<2x128xf32> to vector<2x32xf32>
    %279 = vector.extract_strided_slice %275 {offsets = [0, 96], sizes = [2, 32], strides = [1, 1]} : vector<2x128xf32> to vector<2x32xf32>
    %280 = vector.extract_strided_slice %276 {offsets = [0, 64], sizes = [2, 32], strides = [1, 1]} : vector<2x128xf32> to vector<2x32xf32>
    %c0_157 = arith.constant 0 : index
    %c0_158 = arith.constant 0 : index
    %281 = vector.load %arg23[%c0_157, %c0_158] : memref<2x32xf32, #tpu.memory_space<vmem>>, vector<2x32xf32>
    %282 = arith.mulf %278, %281 : vector<2x32xf32>
    %283 = arith.mulf %277, %280 : vector<2x32xf32>
    %284 = arith.addf %282, %283 : vector<2x32xf32>
    %285 = math.tanh %284 : vector<2x32xf32>
    %286 = arith.mulf %279, %285 : vector<2x32xf32>
    %c0_159 = arith.constant 0 : index
    %c0_160 = arith.constant 0 : index
    %287 = vector.load %arg23[%c0_159, %c0_160] : memref<2x32xf32, #tpu.memory_space<vmem>>, vector<2x32xf32>
    tpu.vector_store %arg23[%c0_159, %c0_160], %284 {strides = array<i32>} : memref<2x32xf32, #tpu.memory_space<vmem>>, vector<2x32xf32>,
    %c0_161 = arith.constant 0 : index
    %c0_162 = arith.constant 0 : index
    %288 = vector.load %arg22[%c0_161, %c0_162] : memref<2x32xf32, #tpu.memory_space<vmem>>, vector<2x32xf32>
    tpu.vector_store %arg22[%c0_161, %c0_162], %286 {strides = array<i32>} : memref<2x32xf32, #tpu.memory_space<vmem>>, vector<2x32xf32>,
    %289 = arith.index_cast %264 : i32 to index
    %c0_163 = arith.constant 0 : index
    %290 = vector.load %arg20[%289, %c0_163] : memref<16x32xf32, #tpu.memory_space<vmem>>, vector<2x32xf32>
    tpu.vector_store %arg20[%289, %c0_163], %286 {strides = array<i32>} : memref<16x32xf32, #tpu.memory_space<vmem>>, vector<2x32xf32>,
    %c1_i32_164 = arith.constant 1 : i32
    %c2_i32_165 = arith.constant 2 : i32
    %291 = arith.muli %c1_i32_164, %c2_i32_165 : i32
    %292 = tpu.assume_multiple %291, 2 : i32
    %293 = arith.index_cast %292 : i32 to index
    %c0_166 = arith.constant 0 : index
    %294 = vector.load %arg21[%293, %c0_166] : memref<16x128xf32, #tpu.memory_space<vmem>>, vector<2x128xf32>
    %c0_167 = arith.constant 0 : index
    %c0_168 = arith.constant 0 : index
    %295 = vector.load %arg22[%c0_167, %c0_168] : memref<2x32xf32, #tpu.memory_space<vmem>>, vector<2x32xf32>
    %296 = arith.truncf %295 : vector<2x32xf32> to vector<2x32xbf16>
    %cst_169 = arith.constant dense<0.000000e+00> : vector<2x128xf32>
    %297 = tpu.matmul %296, %258, %cst_169 {dimension_numbers = #tpu.dot_dimension_numbers<[1], [0], [0], [1], [0, 0, 1, 1], [], []>} : vector<2x32xbf16>, vector<32x128xbf16>, vector<2x128xf32> -> vector<2x128xf32>
    %298 = arith.addf %294, %297 : vector<2x128xf32>
    %299 = arith.negf %298 : vector<2x128xf32>
    %300 = math.exp %299 : vector<2x128xf32>
    %cst_170 = arith.constant 1.000000e+00 : f32
    %301 = vector.broadcast %cst_170 : f32 to vector<2x128xf32>
    %302 = arith.addf %301, %300 : vector<2x128xf32>
    %303 = arith.divf %301, %302 : vector<2x128xf32>
    %304 = math.tanh %298 : vector<2x128xf32>
    %305 = vector.extract_strided_slice %303 {offsets = [0, 0], sizes = [2, 32], strides = [1, 1]} : vector<2x128xf32> to vector<2x32xf32>
    %306 = vector.extract_strided_slice %303 {offsets = [0, 32], sizes = [2, 32], strides = [1, 1]} : vector<2x128xf32> to vector<2x32xf32>
    %307 = vector.extract_strided_slice %303 {offsets = [0, 96], sizes = [2, 32], strides = [1, 1]} : vector<2x128xf32> to vector<2x32xf32>
    %308 = vector.extract_strided_slice %304 {offsets = [0, 64], sizes = [2, 32], strides = [1, 1]} : vector<2x128xf32> to vector<2x32xf32>
    %c0_171 = arith.constant 0 : index
    %c0_172 = arith.constant 0 : index
    %309 = vector.load %arg23[%c0_171, %c0_172] : memref<2x32xf32, #tpu.memory_space<vmem>>, vector<2x32xf32>
    %310 = arith.mulf %306, %309 : vector<2x32xf32>
    %311 = arith.mulf %305, %308 : vector<2x32xf32>
    %312 = arith.addf %310, %311 : vector<2x32xf32>
    %313 = math.tanh %312 : vector<2x32xf32>
    %314 = arith.mulf %307, %313 : vector<2x32xf32>
    %c0_173 = arith.constant 0 : index
    %c0_174 = arith.constant 0 : index
    %315 = vector.load %arg23[%c0_173, %c0_174] : memref<2x32xf32, #tpu.memory_space<vmem>>, vector<2x32xf32>
    tpu.vector_store %arg23[%c0_173, %c0_174], %312 {strides = array<i32>} : memref<2x32xf32, #tpu.memory_space<vmem>>, vector<2x32xf32>,
    %c0_175 = arith.constant 0 : index
    %c0_176 = arith.constant 0 : index
    %316 = vector.load %arg22[%c0_175, %c0_176] : memref<2x32xf32, #tpu.memory_space<vmem>>, vector<2x32xf32>
    tpu.vector_store %arg22[%c0_175, %c0_176], %314 {strides = array<i32>} : memref<2x32xf32, #tpu.memory_space<vmem>>, vector<2x32xf32>,
    %317 = arith.index_cast %292 : i32 to index
    %c0_177 = arith.constant 0 : index
    %318 = vector.load %arg20[%317, %c0_177] : memref<16x32xf32, #tpu.memory_space<vmem>>, vector<2x32xf32>
    tpu.vector_store %arg20[%317, %c0_177], %314 {strides = array<i32>} : memref<16x32xf32, #tpu.memory_space<vmem>>, vector<2x32xf32>,
    %c2_i32_178 = arith.constant 2 : i32
    %c2_i32_179 = arith.constant 2 : i32
    %319 = arith.muli %c2_i32_178, %c2_i32_179 : i32
    %320 = tpu.assume_multiple %319, 2 : i32
    %321 = arith.index_cast %320 : i32 to index
    %c0_180 = arith.constant 0 : index
    %322 = vector.load %arg21[%321, %c0_180] : memref<16x128xf32, #tpu.memory_space<vmem>>, vector<2x128xf32>
    %c0_181 = arith.constant 0 : index
    %c0_182 = arith.constant 0 : index
    %323 = vector.load %arg22[%c0_181, %c0_182] : memref<2x32xf32, #tpu.memory_space<vmem>>, vector<2x32xf32>
    %324 = arith.truncf %323 : vector<2x32xf32> to vector<2x32xbf16>
    %cst_183 = arith.constant dense<0.000000e+00> : vector<2x128xf32>
    %325 = tpu.matmul %324, %258, %cst_183 {dimension_numbers = #tpu.dot_dimension_numbers<[1], [0], [0], [1], [0, 0, 1, 1], [], []>} : vector<2x32xbf16>, vector<32x128xbf16>, vector<2x128xf32> -> vector<2x128xf32>
    %326 = arith.addf %322, %325 : vector<2x128xf32>
    %327 = arith.negf %326 : vector<2x128xf32>
    %328 = math.exp %327 : vector<2x128xf32>
    %cst_184 = arith.constant 1.000000e+00 : f32
    %329 = vector.broadcast %cst_184 : f32 to vector<2x128xf32>
    %330 = arith.addf %329, %328 : vector<2x128xf32>
    %331 = arith.divf %329, %330 : vector<2x128xf32>
    %332 = math.tanh %326 : vector<2x128xf32>
    %333 = vector.extract_strided_slice %331 {offsets = [0, 0], sizes = [2, 32], strides = [1, 1]} : vector<2x128xf32> to vector<2x32xf32>
    %334 = vector.extract_strided_slice %331 {offsets = [0, 32], sizes = [2, 32], strides = [1, 1]} : vector<2x128xf32> to vector<2x32xf32>
    %335 = vector.extract_strided_slice %331 {offsets = [0, 96], sizes = [2, 32], strides = [1, 1]} : vector<2x128xf32> to vector<2x32xf32>
    %336 = vector.extract_strided_slice %332 {offsets = [0, 64], sizes = [2, 32], strides = [1, 1]} : vector<2x128xf32> to vector<2x32xf32>
    %c0_185 = arith.constant 0 : index
    %c0_186 = arith.constant 0 : index
    %337 = vector.load %arg23[%c0_185, %c0_186] : memref<2x32xf32, #tpu.memory_space<vmem>>, vector<2x32xf32>
    %338 = arith.mulf %334, %337 : vector<2x32xf32>
    %339 = arith.mulf %333, %336 : vector<2x32xf32>
    %340 = arith.addf %338, %339 : vector<2x32xf32>
    %341 = math.tanh %340 : vector<2x32xf32>
    %342 = arith.mulf %335, %341 : vector<2x32xf32>
    %c0_187 = arith.constant 0 : index
    %c0_188 = arith.constant 0 : index
    %343 = vector.load %arg23[%c0_187, %c0_188] : memref<2x32xf32, #tpu.memory_space<vmem>>, vector<2x32xf32>
    tpu.vector_store %arg23[%c0_187, %c0_188], %340 {strides = array<i32>} : memref<2x32xf32, #tpu.memory_space<vmem>>, vector<2x32xf32>,
    %c0_189 = arith.constant 0 : index
    %c0_190 = arith.constant 0 : index
    %344 = vector.load %arg22[%c0_189, %c0_190] : memref<2x32xf32, #tpu.memory_space<vmem>>, vector<2x32xf32>
    tpu.vector_store %arg22[%c0_189, %c0_190], %342 {strides = array<i32>} : memref<2x32xf32, #tpu.memory_space<vmem>>, vector<2x32xf32>,
    %345 = arith.index_cast %320 : i32 to index
    %c0_191 = arith.constant 0 : index
    %346 = vector.load %arg20[%345, %c0_191] : memref<16x32xf32, #tpu.memory_space<vmem>>, vector<2x32xf32>
    tpu.vector_store %arg20[%345, %c0_191], %342 {strides = array<i32>} : memref<16x32xf32, #tpu.memory_space<vmem>>, vector<2x32xf32>,
    %c3_i32_192 = arith.constant 3 : i32
    %c2_i32_193 = arith.constant 2 : i32
    %347 = arith.muli %c3_i32_192, %c2_i32_193 : i32
    %348 = tpu.assume_multiple %347, 2 : i32
    %349 = arith.index_cast %348 : i32 to index
    %c0_194 = arith.constant 0 : index
    %350 = vector.load %arg21[%349, %c0_194] : memref<16x128xf32, #tpu.memory_space<vmem>>, vector<2x128xf32>
    %c0_195 = arith.constant 0 : index
    %c0_196 = arith.constant 0 : index
    %351 = vector.load %arg22[%c0_195, %c0_196] : memref<2x32xf32, #tpu.memory_space<vmem>>, vector<2x32xf32>
    %352 = arith.truncf %351 : vector<2x32xf32> to vector<2x32xbf16>
    %cst_197 = arith.constant dense<0.000000e+00> : vector<2x128xf32>
    %353 = tpu.matmul %352, %258, %cst_197 {dimension_numbers = #tpu.dot_dimension_numbers<[1], [0], [0], [1], [0, 0, 1, 1], [], []>} : vector<2x32xbf16>, vector<32x128xbf16>, vector<2x128xf32> -> vector<2x128xf32>
    %354 = arith.addf %350, %353 : vector<2x128xf32>
    %355 = arith.negf %354 : vector<2x128xf32>
    %356 = math.exp %355 : vector<2x128xf32>
    %cst_198 = arith.constant 1.000000e+00 : f32
    %357 = vector.broadcast %cst_198 : f32 to vector<2x128xf32>
    %358 = arith.addf %357, %356 : vector<2x128xf32>
    %359 = arith.divf %357, %358 : vector<2x128xf32>
    %360 = math.tanh %354 : vector<2x128xf32>
    %361 = vector.extract_strided_slice %359 {offsets = [0, 0], sizes = [2, 32], strides = [1, 1]} : vector<2x128xf32> to vector<2x32xf32>
    %362 = vector.extract_strided_slice %359 {offsets = [0, 32], sizes = [2, 32], strides = [1, 1]} : vector<2x128xf32> to vector<2x32xf32>
    %363 = vector.extract_strided_slice %359 {offsets = [0, 96], sizes = [2, 32], strides = [1, 1]} : vector<2x128xf32> to vector<2x32xf32>
    %364 = vector.extract_strided_slice %360 {offsets = [0, 64], sizes = [2, 32], strides = [1, 1]} : vector<2x128xf32> to vector<2x32xf32>
    %c0_199 = arith.constant 0 : index
    %c0_200 = arith.constant 0 : index
    %365 = vector.load %arg23[%c0_199, %c0_200] : memref<2x32xf32, #tpu.memory_space<vmem>>, vector<2x32xf32>
    %366 = arith.mulf %362, %365 : vector<2x32xf32>
    %367 = arith.mulf %361, %364 : vector<2x32xf32>
    %368 = arith.addf %366, %367 : vector<2x32xf32>
    %369 = math.tanh %368 : vector<2x32xf32>
    %370 = arith.mulf %363, %369 : vector<2x32xf32>
    %c0_201 = arith.constant 0 : index
    %c0_202 = arith.constant 0 : index
    %371 = vector.load %arg23[%c0_201, %c0_202] : memref<2x32xf32, #tpu.memory_space<vmem>>, vector<2x32xf32>
    tpu.vector_store %arg23[%c0_201, %c0_202], %368 {strides = array<i32>} : memref<2x32xf32, #tpu.memory_space<vmem>>, vector<2x32xf32>,
    %c0_203 = arith.constant 0 : index
    %c0_204 = arith.constant 0 : index
    %372 = vector.load %arg22[%c0_203, %c0_204] : memref<2x32xf32, #tpu.memory_space<vmem>>, vector<2x32xf32>
    tpu.vector_store %arg22[%c0_203, %c0_204], %370 {strides = array<i32>} : memref<2x32xf32, #tpu.memory_space<vmem>>, vector<2x32xf32>,
    %373 = arith.index_cast %348 : i32 to index
    %c0_205 = arith.constant 0 : index
    %374 = vector.load %arg20[%373, %c0_205] : memref<16x32xf32, #tpu.memory_space<vmem>>, vector<2x32xf32>
    tpu.vector_store %arg20[%373, %c0_205], %370 {strides = array<i32>} : memref<16x32xf32, #tpu.memory_space<vmem>>, vector<2x32xf32>,
    %c4_i32_206 = arith.constant 4 : i32
    %c2_i32_207 = arith.constant 2 : i32
    %375 = arith.muli %c4_i32_206, %c2_i32_207 : i32
    %376 = tpu.assume_multiple %375, 2 : i32
    %377 = arith.index_cast %376 : i32 to index
    %c0_208 = arith.constant 0 : index
    %378 = vector.load %arg21[%377, %c0_208] : memref<16x128xf32, #tpu.memory_space<vmem>>, vector<2x128xf32>
    %c0_209 = arith.constant 0 : index
    %c0_210 = arith.constant 0 : index
    %379 = vector.load %arg22[%c0_209, %c0_210] : memref<2x32xf32, #tpu.memory_space<vmem>>, vector<2x32xf32>
    %380 = arith.truncf %379 : vector<2x32xf32> to vector<2x32xbf16>
    %cst_211 = arith.constant dense<0.000000e+00> : vector<2x128xf32>
    %381 = tpu.matmul %380, %258, %cst_211 {dimension_numbers = #tpu.dot_dimension_numbers<[1], [0], [0], [1], [0, 0, 1, 1], [], []>} : vector<2x32xbf16>, vector<32x128xbf16>, vector<2x128xf32> -> vector<2x128xf32>
    %382 = arith.addf %378, %381 : vector<2x128xf32>
    %383 = arith.negf %382 : vector<2x128xf32>
    %384 = math.exp %383 : vector<2x128xf32>
    %cst_212 = arith.constant 1.000000e+00 : f32
    %385 = vector.broadcast %cst_212 : f32 to vector<2x128xf32>
    %386 = arith.addf %385, %384 : vector<2x128xf32>
    %387 = arith.divf %385, %386 : vector<2x128xf32>
    %388 = math.tanh %382 : vector<2x128xf32>
    %389 = vector.extract_strided_slice %387 {offsets = [0, 0], sizes = [2, 32], strides = [1, 1]} : vector<2x128xf32> to vector<2x32xf32>
    %390 = vector.extract_strided_slice %387 {offsets = [0, 32], sizes = [2, 32], strides = [1, 1]} : vector<2x128xf32> to vector<2x32xf32>
    %391 = vector.extract_strided_slice %387 {offsets = [0, 96], sizes = [2, 32], strides = [1, 1]} : vector<2x128xf32> to vector<2x32xf32>
    %392 = vector.extract_strided_slice %388 {offsets = [0, 64], sizes = [2, 32], strides = [1, 1]} : vector<2x128xf32> to vector<2x32xf32>
    %c0_213 = arith.constant 0 : index
    %c0_214 = arith.constant 0 : index
    %393 = vector.load %arg23[%c0_213, %c0_214] : memref<2x32xf32, #tpu.memory_space<vmem>>, vector<2x32xf32>
    %394 = arith.mulf %390, %393 : vector<2x32xf32>
    %395 = arith.mulf %389, %392 : vector<2x32xf32>
    %396 = arith.addf %394, %395 : vector<2x32xf32>
    %397 = math.tanh %396 : vector<2x32xf32>
    %398 = arith.mulf %391, %397 : vector<2x32xf32>
    %c0_215 = arith.constant 0 : index
    %c0_216 = arith.constant 0 : index
    %399 = vector.load %arg23[%c0_215, %c0_216] : memref<2x32xf32, #tpu.memory_space<vmem>>, vector<2x32xf32>
    tpu.vector_store %arg23[%c0_215, %c0_216], %396 {strides = array<i32>} : memref<2x32xf32, #tpu.memory_space<vmem>>, vector<2x32xf32>,
    %c0_217 = arith.constant 0 : index
    %c0_218 = arith.constant 0 : index
    %400 = vector.load %arg22[%c0_217, %c0_218] : memref<2x32xf32, #tpu.memory_space<vmem>>, vector<2x32xf32>
    tpu.vector_store %arg22[%c0_217, %c0_218], %398 {strides = array<i32>} : memref<2x32xf32, #tpu.memory_space<vmem>>, vector<2x32xf32>,
    %401 = arith.index_cast %376 : i32 to index
    %c0_219 = arith.constant 0 : index
    %402 = vector.load %arg20[%401, %c0_219] : memref<16x32xf32, #tpu.memory_space<vmem>>, vector<2x32xf32>
    tpu.vector_store %arg20[%401, %c0_219], %398 {strides = array<i32>} : memref<16x32xf32, #tpu.memory_space<vmem>>, vector<2x32xf32>,
    %c5_i32_220 = arith.constant 5 : i32
    %c2_i32_221 = arith.constant 2 : i32
    %403 = arith.muli %c5_i32_220, %c2_i32_221 : i32
    %404 = tpu.assume_multiple %403, 2 : i32
    %405 = arith.index_cast %404 : i32 to index
    %c0_222 = arith.constant 0 : index
    %406 = vector.load %arg21[%405, %c0_222] : memref<16x128xf32, #tpu.memory_space<vmem>>, vector<2x128xf32>
    %c0_223 = arith.constant 0 : index
    %c0_224 = arith.constant 0 : index
    %407 = vector.load %arg22[%c0_223, %c0_224] : memref<2x32xf32, #tpu.memory_space<vmem>>, vector<2x32xf32>
    %408 = arith.truncf %407 : vector<2x32xf32> to vector<2x32xbf16>
    %cst_225 = arith.constant dense<0.000000e+00> : vector<2x128xf32>
    %409 = tpu.matmul %408, %258, %cst_225 {dimension_numbers = #tpu.dot_dimension_numbers<[1], [0], [0], [1], [0, 0, 1, 1], [], []>} : vector<2x32xbf16>, vector<32x128xbf16>, vector<2x128xf32> -> vector<2x128xf32>
    %410 = arith.addf %406, %409 : vector<2x128xf32>
    %411 = arith.negf %410 : vector<2x128xf32>
    %412 = math.exp %411 : vector<2x128xf32>
    %cst_226 = arith.constant 1.000000e+00 : f32
    %413 = vector.broadcast %cst_226 : f32 to vector<2x128xf32>
    %414 = arith.addf %413, %412 : vector<2x128xf32>
    %415 = arith.divf %413, %414 : vector<2x128xf32>
    %416 = math.tanh %410 : vector<2x128xf32>
    %417 = vector.extract_strided_slice %415 {offsets = [0, 0], sizes = [2, 32], strides = [1, 1]} : vector<2x128xf32> to vector<2x32xf32>
    %418 = vector.extract_strided_slice %415 {offsets = [0, 32], sizes = [2, 32], strides = [1, 1]} : vector<2x128xf32> to vector<2x32xf32>
    %419 = vector.extract_strided_slice %415 {offsets = [0, 96], sizes = [2, 32], strides = [1, 1]} : vector<2x128xf32> to vector<2x32xf32>
    %420 = vector.extract_strided_slice %416 {offsets = [0, 64], sizes = [2, 32], strides = [1, 1]} : vector<2x128xf32> to vector<2x32xf32>
    %c0_227 = arith.constant 0 : index
    %c0_228 = arith.constant 0 : index
    %421 = vector.load %arg23[%c0_227, %c0_228] : memref<2x32xf32, #tpu.memory_space<vmem>>, vector<2x32xf32>
    %422 = arith.mulf %418, %421 : vector<2x32xf32>
    %423 = arith.mulf %417, %420 : vector<2x32xf32>
    %424 = arith.addf %422, %423 : vector<2x32xf32>
    %425 = math.tanh %424 : vector<2x32xf32>
    %426 = arith.mulf %419, %425 : vector<2x32xf32>
    %c0_229 = arith.constant 0 : index
    %c0_230 = arith.constant 0 : index
    %427 = vector.load %arg23[%c0_229, %c0_230] : memref<2x32xf32, #tpu.memory_space<vmem>>, vector<2x32xf32>
    tpu.vector_store %arg23[%c0_229, %c0_230], %424 {strides = array<i32>} : memref<2x32xf32, #tpu.memory_space<vmem>>, vector<2x32xf32>,
    %c0_231 = arith.constant 0 : index
    %c0_232 = arith.constant 0 : index
    %428 = vector.load %arg22[%c0_231, %c0_232] : memref<2x32xf32, #tpu.memory_space<vmem>>, vector<2x32xf32>
    tpu.vector_store %arg22[%c0_231, %c0_232], %426 {strides = array<i32>} : memref<2x32xf32, #tpu.memory_space<vmem>>, vector<2x32xf32>,
    %429 = arith.index_cast %404 : i32 to index
    %c0_233 = arith.constant 0 : index
    %430 = vector.load %arg20[%429, %c0_233] : memref<16x32xf32, #tpu.memory_space<vmem>>, vector<2x32xf32>
    tpu.vector_store %arg20[%429, %c0_233], %426 {strides = array<i32>} : memref<16x32xf32, #tpu.memory_space<vmem>>, vector<2x32xf32>,
    %c6_i32_234 = arith.constant 6 : i32
    %c2_i32_235 = arith.constant 2 : i32
    %431 = arith.muli %c6_i32_234, %c2_i32_235 : i32
    %432 = tpu.assume_multiple %431, 2 : i32
    %433 = arith.index_cast %432 : i32 to index
    %c0_236 = arith.constant 0 : index
    %434 = vector.load %arg21[%433, %c0_236] : memref<16x128xf32, #tpu.memory_space<vmem>>, vector<2x128xf32>
    %c0_237 = arith.constant 0 : index
    %c0_238 = arith.constant 0 : index
    %435 = vector.load %arg22[%c0_237, %c0_238] : memref<2x32xf32, #tpu.memory_space<vmem>>, vector<2x32xf32>
    %436 = arith.truncf %435 : vector<2x32xf32> to vector<2x32xbf16>
    %cst_239 = arith.constant dense<0.000000e+00> : vector<2x128xf32>
    %437 = tpu.matmul %436, %258, %cst_239 {dimension_numbers = #tpu.dot_dimension_numbers<[1], [0], [0], [1], [0, 0, 1, 1], [], []>} : vector<2x32xbf16>, vector<32x128xbf16>, vector<2x128xf32> -> vector<2x128xf32>
    %438 = arith.addf %434, %437 : vector<2x128xf32>
    %439 = arith.negf %438 : vector<2x128xf32>
    %440 = math.exp %439 : vector<2x128xf32>
    %cst_240 = arith.constant 1.000000e+00 : f32
    %441 = vector.broadcast %cst_240 : f32 to vector<2x128xf32>
    %442 = arith.addf %441, %440 : vector<2x128xf32>
    %443 = arith.divf %441, %442 : vector<2x128xf32>
    %444 = math.tanh %438 : vector<2x128xf32>
    %445 = vector.extract_strided_slice %443 {offsets = [0, 0], sizes = [2, 32], strides = [1, 1]} : vector<2x128xf32> to vector<2x32xf32>
    %446 = vector.extract_strided_slice %443 {offsets = [0, 32], sizes = [2, 32], strides = [1, 1]} : vector<2x128xf32> to vector<2x32xf32>
    %447 = vector.extract_strided_slice %443 {offsets = [0, 96], sizes = [2, 32], strides = [1, 1]} : vector<2x128xf32> to vector<2x32xf32>
    %448 = vector.extract_strided_slice %444 {offsets = [0, 64], sizes = [2, 32], strides = [1, 1]} : vector<2x128xf32> to vector<2x32xf32>
    %c0_241 = arith.constant 0 : index
    %c0_242 = arith.constant 0 : index
    %449 = vector.load %arg23[%c0_241, %c0_242] : memref<2x32xf32, #tpu.memory_space<vmem>>, vector<2x32xf32>
    %450 = arith.mulf %446, %449 : vector<2x32xf32>
    %451 = arith.mulf %445, %448 : vector<2x32xf32>
    %452 = arith.addf %450, %451 : vector<2x32xf32>
    %453 = math.tanh %452 : vector<2x32xf32>
    %454 = arith.mulf %447, %453 : vector<2x32xf32>
    %c0_243 = arith.constant 0 : index
    %c0_244 = arith.constant 0 : index
    %455 = vector.load %arg23[%c0_243, %c0_244] : memref<2x32xf32, #tpu.memory_space<vmem>>, vector<2x32xf32>
    tpu.vector_store %arg23[%c0_243, %c0_244], %452 {strides = array<i32>} : memref<2x32xf32, #tpu.memory_space<vmem>>, vector<2x32xf32>,
    %c0_245 = arith.constant 0 : index
    %c0_246 = arith.constant 0 : index
    %456 = vector.load %arg22[%c0_245, %c0_246] : memref<2x32xf32, #tpu.memory_space<vmem>>, vector<2x32xf32>
    tpu.vector_store %arg22[%c0_245, %c0_246], %454 {strides = array<i32>} : memref<2x32xf32, #tpu.memory_space<vmem>>, vector<2x32xf32>,
    %457 = arith.index_cast %432 : i32 to index
    %c0_247 = arith.constant 0 : index
    %458 = vector.load %arg20[%457, %c0_247] : memref<16x32xf32, #tpu.memory_space<vmem>>, vector<2x32xf32>
    tpu.vector_store %arg20[%457, %c0_247], %454 {strides = array<i32>} : memref<16x32xf32, #tpu.memory_space<vmem>>, vector<2x32xf32>,
    %c7_i32_248 = arith.constant 7 : i32
    %c2_i32_249 = arith.constant 2 : i32
    %459 = arith.muli %c7_i32_248, %c2_i32_249 : i32
    %460 = tpu.assume_multiple %459, 2 : i32
    %461 = arith.index_cast %460 : i32 to index
    %c0_250 = arith.constant 0 : index
    %462 = vector.load %arg21[%461, %c0_250] : memref<16x128xf32, #tpu.memory_space<vmem>>, vector<2x128xf32>
    %c0_251 = arith.constant 0 : index
    %c0_252 = arith.constant 0 : index
    %463 = vector.load %arg22[%c0_251, %c0_252] : memref<2x32xf32, #tpu.memory_space<vmem>>, vector<2x32xf32>
    %464 = arith.truncf %463 : vector<2x32xf32> to vector<2x32xbf16>
    %cst_253 = arith.constant dense<0.000000e+00> : vector<2x128xf32>
    %465 = tpu.matmul %464, %258, %cst_253 {dimension_numbers = #tpu.dot_dimension_numbers<[1], [0], [0], [1], [0, 0, 1, 1], [], []>} : vector<2x32xbf16>, vector<32x128xbf16>, vector<2x128xf32> -> vector<2x128xf32>
    %466 = arith.addf %462, %465 : vector<2x128xf32>
    %467 = arith.negf %466 : vector<2x128xf32>
    %468 = math.exp %467 : vector<2x128xf32>
    %cst_254 = arith.constant 1.000000e+00 : f32
    %469 = vector.broadcast %cst_254 : f32 to vector<2x128xf32>
    %470 = arith.addf %469, %468 : vector<2x128xf32>
    %471 = arith.divf %469, %470 : vector<2x128xf32>
    %472 = math.tanh %466 : vector<2x128xf32>
    %473 = vector.extract_strided_slice %471 {offsets = [0, 0], sizes = [2, 32], strides = [1, 1]} : vector<2x128xf32> to vector<2x32xf32>
    %474 = vector.extract_strided_slice %471 {offsets = [0, 32], sizes = [2, 32], strides = [1, 1]} : vector<2x128xf32> to vector<2x32xf32>
    %475 = vector.extract_strided_slice %471 {offsets = [0, 96], sizes = [2, 32], strides = [1, 1]} : vector<2x128xf32> to vector<2x32xf32>
    %476 = vector.extract_strided_slice %472 {offsets = [0, 64], sizes = [2, 32], strides = [1, 1]} : vector<2x128xf32> to vector<2x32xf32>
    %c0_255 = arith.constant 0 : index
    %c0_256 = arith.constant 0 : index
    %477 = vector.load %arg23[%c0_255, %c0_256] : memref<2x32xf32, #tpu.memory_space<vmem>>, vector<2x32xf32>
    %478 = arith.mulf %474, %477 : vector<2x32xf32>
    %479 = arith.mulf %473, %476 : vector<2x32xf32>
    %480 = arith.addf %478, %479 : vector<2x32xf32>
    %481 = math.tanh %480 : vector<2x32xf32>
    %482 = arith.mulf %475, %481 : vector<2x32xf32>
    %c0_257 = arith.constant 0 : index
    %c0_258 = arith.constant 0 : index
    %483 = vector.load %arg23[%c0_257, %c0_258] : memref<2x32xf32, #tpu.memory_space<vmem>>, vector<2x32xf32>
    tpu.vector_store %arg23[%c0_257, %c0_258], %480 {strides = array<i32>} : memref<2x32xf32, #tpu.memory_space<vmem>>, vector<2x32xf32>,
    %c0_259 = arith.constant 0 : index
    %c0_260 = arith.constant 0 : index
    %484 = vector.load %arg22[%c0_259, %c0_260] : memref<2x32xf32, #tpu.memory_space<vmem>>, vector<2x32xf32>
    tpu.vector_store %arg22[%c0_259, %c0_260], %482 {strides = array<i32>} : memref<2x32xf32, #tpu.memory_space<vmem>>, vector<2x32xf32>,
    %485 = arith.index_cast %460 : i32 to index
    %c0_261 = arith.constant 0 : index
    %486 = vector.load %arg20[%485, %c0_261] : memref<16x32xf32, #tpu.memory_space<vmem>>, vector<2x32xf32>
    tpu.vector_store %arg20[%485, %c0_261], %482 {strides = array<i32>} : memref<16x32xf32, #tpu.memory_space<vmem>>, vector<2x32xf32>,
    %c8_i32_262 = arith.constant 8 : i32
    %c0_263 = arith.constant 0 : index
    %c0_264 = arith.constant 0 : index
    %487 = vector.load %arg22[%c0_263, %c0_264] : memref<2x32xf32, #tpu.memory_space<vmem>>, vector<2x32xf32>
    %c1_265 = arith.constant 1 : index
    %c0_266 = arith.constant 0 : index
    %c0_267 = arith.constant 0 : index
    %488 = vector.load %arg18[%c1_265, %c0_266, %c0_267] : memref<3x2x32xf32, #tpu.memory_space<vmem>>, vector<1x2x32xf32>
    %489 = vector.shape_cast %488 : vector<1x2x32xf32> to vector<2x32xf32>
    %490 = vector.shape_cast %487 : vector<2x32xf32> to vector<1x2x32xf32>
    tpu.vector_store %arg18[%c1_265, %c0_266, %c0_267], %490 {strides = array<i32>} : memref<3x2x32xf32, #tpu.memory_space<vmem>>, vector<1x2x32xf32>,
    %c0_268 = arith.constant 0 : index
    %c0_269 = arith.constant 0 : index
    %491 = vector.load %arg23[%c0_268, %c0_269] : memref<2x32xf32, #tpu.memory_space<vmem>>, vector<2x32xf32>
    %c1_270 = arith.constant 1 : index
    %c0_271 = arith.constant 0 : index
    %c0_272 = arith.constant 0 : index
    %492 = vector.load %arg19[%c1_270, %c0_271, %c0_272] : memref<3x2x32xf32, #tpu.memory_space<vmem>>, vector<1x2x32xf32>
    %493 = vector.shape_cast %492 : vector<1x2x32xf32> to vector<2x32xf32>
    %494 = vector.shape_cast %491 : vector<2x32xf32> to vector<1x2x32xf32>
    tpu.vector_store %arg19[%c1_270, %c0_271, %c0_272], %494 {strides = array<i32>} : memref<3x2x32xf32, #tpu.memory_space<vmem>>, vector<1x2x32xf32>,
    %c1_273 = arith.constant 1 : index
    %c0_274 = arith.constant 0 : index
    %c0_275 = arith.constant 0 : index
    %495 = vector.load %arg3[%c1_273, %c0_274, %c0_275] : memref<2x32x128xbf16, #tpu.memory_space<vmem>>, vector<1x32x128xbf16>
    %496 = vector.shape_cast %495 : vector<1x32x128xbf16> to vector<32x128xbf16>
    %c0_276 = arith.constant 0 : index
    %c0_277 = arith.constant 0 : index
    %497 = vector.load %arg20[%c0_276, %c0_277] : memref<16x32xf32, #tpu.memory_space<vmem>>, vector<16x32xf32>
    %498 = arith.truncf %497 : vector<16x32xf32> to vector<16x32xbf16>
    %cst_278 = arith.constant dense<0.000000e+00> : vector<16x128xf32>
    %499 = tpu.matmul %498, %496, %cst_278 {dimension_numbers = #tpu.dot_dimension_numbers<[1], [0], [0], [1], [0, 0, 1, 1], [], []>} : vector<16x32xbf16>, vector<32x128xbf16>, vector<16x128xf32> -> vector<16x128xf32>
    %c2 = arith.constant 2 : index
    %c0_279 = arith.constant 0 : index
    %c0_280 = arith.constant 0 : index
    %500 = vector.load %arg5[%c2, %c0_279, %c0_280] : memref<3x1x128xf32, #tpu.memory_space<vmem>>, vector<1x1x128xf32>
    %501 = vector.shape_cast %500 : vector<1x1x128xf32> to vector<1x128xf32>
    %502 = vector.broadcast %501 : vector<1x128xf32> to vector<16x128xf32>
    %503 = arith.addf %499, %502 : vector<16x128xf32>
    %c0_281 = arith.constant 0 : index
    %c0_282 = arith.constant 0 : index
    %504 = vector.load %arg21[%c0_281, %c0_282] : memref<16x128xf32, #tpu.memory_space<vmem>>, vector<16x128xf32>
    tpu.vector_store %arg21[%c0_281, %c0_282], %503 {strides = array<i32>} : memref<16x128xf32, #tpu.memory_space<vmem>>, vector<16x128xf32>,
    %c2_283 = arith.constant 2 : index
    %c0_284 = arith.constant 0 : index
    %c0_285 = arith.constant 0 : index
    %505 = vector.load %arg4[%c2_283, %c0_284, %c0_285] : memref<3x32x128xbf16, #tpu.memory_space<vmem>>, vector<1x32x128xbf16>
    %506 = vector.shape_cast %505 : vector<1x32x128xbf16> to vector<32x128xbf16>
    %cst_286 = arith.constant 0.000000e+00 : f32
    %507 = vector.broadcast %cst_286 : f32 to vector<2x32xf32>
    %c0_287 = arith.constant 0 : index
    %c0_288 = arith.constant 0 : index
    %508 = vector.load %arg22[%c0_287, %c0_288] : memref<2x32xf32, #tpu.memory_space<vmem>>, vector<2x32xf32>
    tpu.vector_store %arg22[%c0_287, %c0_288], %507 {strides = array<i32>} : memref<2x32xf32, #tpu.memory_space<vmem>>, vector<2x32xf32>,
    %cst_289 = arith.constant 0.000000e+00 : f32
    %509 = vector.broadcast %cst_289 : f32 to vector<2x32xf32>
    %c0_290 = arith.constant 0 : index
    %c0_291 = arith.constant 0 : index
    %510 = vector.load %arg23[%c0_290, %c0_291] : memref<2x32xf32, #tpu.memory_space<vmem>>, vector<2x32xf32>
    tpu.vector_store %arg23[%c0_290, %c0_291], %509 {strides = array<i32>} : memref<2x32xf32, #tpu.memory_space<vmem>>, vector<2x32xf32>,
    %c0_i32_292 = arith.constant 0 : i32
    %c2_i32_293 = arith.constant 2 : i32
    %511 = arith.muli %c0_i32_292, %c2_i32_293 : i32
    %512 = tpu.assume_multiple %511, 2 : i32
    %513 = arith.index_cast %512 : i32 to index
    %c0_294 = arith.constant 0 : index
    %514 = vector.load %arg21[%513, %c0_294] : memref<16x128xf32, #tpu.memory_space<vmem>>, vector<2x128xf32>
    %c0_295 = arith.constant 0 : index
    %c0_296 = arith.constant 0 : index
    %515 = vector.load %arg22[%c0_295, %c0_296] : memref<2x32xf32, #tpu.memory_space<vmem>>, vector<2x32xf32>
    %516 = arith.truncf %515 : vector<2x32xf32> to vector<2x32xbf16>
    %cst_297 = arith.constant dense<0.000000e+00> : vector<2x128xf32>
    %517 = tpu.matmul %516, %506, %cst_297 {dimension_numbers = #tpu.dot_dimension_numbers<[1], [0], [0], [1], [0, 0, 1, 1], [], []>} : vector<2x32xbf16>, vector<32x128xbf16>, vector<2x128xf32> -> vector<2x128xf32>
    %518 = arith.addf %514, %517 : vector<2x128xf32>
    %519 = arith.negf %518 : vector<2x128xf32>
    %520 = math.exp %519 : vector<2x128xf32>
    %cst_298 = arith.constant 1.000000e+00 : f32
    %521 = vector.broadcast %cst_298 : f32 to vector<2x128xf32>
    %522 = arith.addf %521, %520 : vector<2x128xf32>
    %523 = arith.divf %521, %522 : vector<2x128xf32>
    %524 = math.tanh %518 : vector<2x128xf32>
    %525 = vector.extract_strided_slice %523 {offsets = [0, 0], sizes = [2, 32], strides = [1, 1]} : vector<2x128xf32> to vector<2x32xf32>
    %526 = vector.extract_strided_slice %523 {offsets = [0, 32], sizes = [2, 32], strides = [1, 1]} : vector<2x128xf32> to vector<2x32xf32>
    %527 = vector.extract_strided_slice %523 {offsets = [0, 96], sizes = [2, 32], strides = [1, 1]} : vector<2x128xf32> to vector<2x32xf32>
    %528 = vector.extract_strided_slice %524 {offsets = [0, 64], sizes = [2, 32], strides = [1, 1]} : vector<2x128xf32> to vector<2x32xf32>
    %c0_299 = arith.constant 0 : index
    %c0_300 = arith.constant 0 : index
    %529 = vector.load %arg23[%c0_299, %c0_300] : memref<2x32xf32, #tpu.memory_space<vmem>>, vector<2x32xf32>
    %530 = arith.mulf %526, %529 : vector<2x32xf32>
    %531 = arith.mulf %525, %528 : vector<2x32xf32>
    %532 = arith.addf %530, %531 : vector<2x32xf32>
    %533 = math.tanh %532 : vector<2x32xf32>
    %534 = arith.mulf %527, %533 : vector<2x32xf32>
    %c0_301 = arith.constant 0 : index
    %c0_302 = arith.constant 0 : index
    %535 = vector.load %arg23[%c0_301, %c0_302] : memref<2x32xf32, #tpu.memory_space<vmem>>, vector<2x32xf32>
    tpu.vector_store %arg23[%c0_301, %c0_302], %532 {strides = array<i32>} : memref<2x32xf32, #tpu.memory_space<vmem>>, vector<2x32xf32>,
    %c0_303 = arith.constant 0 : index
    %c0_304 = arith.constant 0 : index
    %536 = vector.load %arg22[%c0_303, %c0_304] : memref<2x32xf32, #tpu.memory_space<vmem>>, vector<2x32xf32>
    tpu.vector_store %arg22[%c0_303, %c0_304], %534 {strides = array<i32>} : memref<2x32xf32, #tpu.memory_space<vmem>>, vector<2x32xf32>,
    %537 = arith.index_cast %512 : i32 to index
    %c0_305 = arith.constant 0 : index
    %538 = vector.load %arg20[%537, %c0_305] : memref<16x32xf32, #tpu.memory_space<vmem>>, vector<2x32xf32>
    tpu.vector_store %arg20[%537, %c0_305], %534 {strides = array<i32>} : memref<16x32xf32, #tpu.memory_space<vmem>>, vector<2x32xf32>,
    %c1_i32_306 = arith.constant 1 : i32
    %c2_i32_307 = arith.constant 2 : i32
    %539 = arith.muli %c1_i32_306, %c2_i32_307 : i32
    %540 = tpu.assume_multiple %539, 2 : i32
    %541 = arith.index_cast %540 : i32 to index
    %c0_308 = arith.constant 0 : index
    %542 = vector.load %arg21[%541, %c0_308] : memref<16x128xf32, #tpu.memory_space<vmem>>, vector<2x128xf32>
    %c0_309 = arith.constant 0 : index
    %c0_310 = arith.constant 0 : index
    %543 = vector.load %arg22[%c0_309, %c0_310] : memref<2x32xf32, #tpu.memory_space<vmem>>, vector<2x32xf32>
    %544 = arith.truncf %543 : vector<2x32xf32> to vector<2x32xbf16>
    %cst_311 = arith.constant dense<0.000000e+00> : vector<2x128xf32>
    %545 = tpu.matmul %544, %506, %cst_311 {dimension_numbers = #tpu.dot_dimension_numbers<[1], [0], [0], [1], [0, 0, 1, 1], [], []>} : vector<2x32xbf16>, vector<32x128xbf16>, vector<2x128xf32> -> vector<2x128xf32>
    %546 = arith.addf %542, %545 : vector<2x128xf32>
    %547 = arith.negf %546 : vector<2x128xf32>
    %548 = math.exp %547 : vector<2x128xf32>
    %cst_312 = arith.constant 1.000000e+00 : f32
    %549 = vector.broadcast %cst_312 : f32 to vector<2x128xf32>
    %550 = arith.addf %549, %548 : vector<2x128xf32>
    %551 = arith.divf %549, %550 : vector<2x128xf32>
    %552 = math.tanh %546 : vector<2x128xf32>
    %553 = vector.extract_strided_slice %551 {offsets = [0, 0], sizes = [2, 32], strides = [1, 1]} : vector<2x128xf32> to vector<2x32xf32>
    %554 = vector.extract_strided_slice %551 {offsets = [0, 32], sizes = [2, 32], strides = [1, 1]} : vector<2x128xf32> to vector<2x32xf32>
    %555 = vector.extract_strided_slice %551 {offsets = [0, 96], sizes = [2, 32], strides = [1, 1]} : vector<2x128xf32> to vector<2x32xf32>
    %556 = vector.extract_strided_slice %552 {offsets = [0, 64], sizes = [2, 32], strides = [1, 1]} : vector<2x128xf32> to vector<2x32xf32>
    %c0_313 = arith.constant 0 : index
    %c0_314 = arith.constant 0 : index
    %557 = vector.load %arg23[%c0_313, %c0_314] : memref<2x32xf32, #tpu.memory_space<vmem>>, vector<2x32xf32>
    %558 = arith.mulf %554, %557 : vector<2x32xf32>
    %559 = arith.mulf %553, %556 : vector<2x32xf32>
    %560 = arith.addf %558, %559 : vector<2x32xf32>
    %561 = math.tanh %560 : vector<2x32xf32>
    %562 = arith.mulf %555, %561 : vector<2x32xf32>
    %c0_315 = arith.constant 0 : index
    %c0_316 = arith.constant 0 : index
    %563 = vector.load %arg23[%c0_315, %c0_316] : memref<2x32xf32, #tpu.memory_space<vmem>>, vector<2x32xf32>
    tpu.vector_store %arg23[%c0_315, %c0_316], %560 {strides = array<i32>} : memref<2x32xf32, #tpu.memory_space<vmem>>, vector<2x32xf32>,
    %c0_317 = arith.constant 0 : index
    %c0_318 = arith.constant 0 : index
    %564 = vector.load %arg22[%c0_317, %c0_318] : memref<2x32xf32, #tpu.memory_space<vmem>>, vector<2x32xf32>
    tpu.vector_store %arg22[%c0_317, %c0_318], %562 {strides = array<i32>} : memref<2x32xf32, #tpu.memory_space<vmem>>, vector<2x32xf32>,
    %565 = arith.index_cast %540 : i32 to index
    %c0_319 = arith.constant 0 : index
    %566 = vector.load %arg20[%565, %c0_319] : memref<16x32xf32, #tpu.memory_space<vmem>>, vector<2x32xf32>
    tpu.vector_store %arg20[%565, %c0_319], %562 {strides = array<i32>} : memref<16x32xf32, #tpu.memory_space<vmem>>, vector<2x32xf32>,
    %c2_i32_320 = arith.constant 2 : i32
    %c2_i32_321 = arith.constant 2 : i32
    %567 = arith.muli %c2_i32_320, %c2_i32_321 : i32
    %568 = tpu.assume_multiple %567, 2 : i32
    %569 = arith.index_cast %568 : i32 to index
    %c0_322 = arith.constant 0 : index
    %570 = vector.load %arg21[%569, %c0_322] : memref<16x128xf32, #tpu.memory_space<vmem>>, vector<2x128xf32>
    %c0_323 = arith.constant 0 : index
    %c0_324 = arith.constant 0 : index
    %571 = vector.load %arg22[%c0_323, %c0_324] : memref<2x32xf32, #tpu.memory_space<vmem>>, vector<2x32xf32>
    %572 = arith.truncf %571 : vector<2x32xf32> to vector<2x32xbf16>
    %cst_325 = arith.constant dense<0.000000e+00> : vector<2x128xf32>
    %573 = tpu.matmul %572, %506, %cst_325 {dimension_numbers = #tpu.dot_dimension_numbers<[1], [0], [0], [1], [0, 0, 1, 1], [], []>} : vector<2x32xbf16>, vector<32x128xbf16>, vector<2x128xf32> -> vector<2x128xf32>
    %574 = arith.addf %570, %573 : vector<2x128xf32>
    %575 = arith.negf %574 : vector<2x128xf32>
    %576 = math.exp %575 : vector<2x128xf32>
    %cst_326 = arith.constant 1.000000e+00 : f32
    %577 = vector.broadcast %cst_326 : f32 to vector<2x128xf32>
    %578 = arith.addf %577, %576 : vector<2x128xf32>
    %579 = arith.divf %577, %578 : vector<2x128xf32>
    %580 = math.tanh %574 : vector<2x128xf32>
    %581 = vector.extract_strided_slice %579 {offsets = [0, 0], sizes = [2, 32], strides = [1, 1]} : vector<2x128xf32> to vector<2x32xf32>
    %582 = vector.extract_strided_slice %579 {offsets = [0, 32], sizes = [2, 32], strides = [1, 1]} : vector<2x128xf32> to vector<2x32xf32>
    %583 = vector.extract_strided_slice %579 {offsets = [0, 96], sizes = [2, 32], strides = [1, 1]} : vector<2x128xf32> to vector<2x32xf32>
    %584 = vector.extract_strided_slice %580 {offsets = [0, 64], sizes = [2, 32], strides = [1, 1]} : vector<2x128xf32> to vector<2x32xf32>
    %c0_327 = arith.constant 0 : index
    %c0_328 = arith.constant 0 : index
    %585 = vector.load %arg23[%c0_327, %c0_328] : memref<2x32xf32, #tpu.memory_space<vmem>>, vector<2x32xf32>
    %586 = arith.mulf %582, %585 : vector<2x32xf32>
    %587 = arith.mulf %581, %584 : vector<2x32xf32>
    %588 = arith.addf %586, %587 : vector<2x32xf32>
    %589 = math.tanh %588 : vector<2x32xf32>
    %590 = arith.mulf %583, %589 : vector<2x32xf32>
    %c0_329 = arith.constant 0 : index
    %c0_330 = arith.constant 0 : index
    %591 = vector.load %arg23[%c0_329, %c0_330] : memref<2x32xf32, #tpu.memory_space<vmem>>, vector<2x32xf32>
    tpu.vector_store %arg23[%c0_329, %c0_330], %588 {strides = array<i32>} : memref<2x32xf32, #tpu.memory_space<vmem>>, vector<2x32xf32>,
    %c0_331 = arith.constant 0 : index
    %c0_332 = arith.constant 0 : index
    %592 = vector.load %arg22[%c0_331, %c0_332] : memref<2x32xf32, #tpu.memory_space<vmem>>, vector<2x32xf32>
    tpu.vector_store %arg22[%c0_331, %c0_332], %590 {strides = array<i32>} : memref<2x32xf32, #tpu.memory_space<vmem>>, vector<2x32xf32>,
    %593 = arith.index_cast %568 : i32 to index
    %c0_333 = arith.constant 0 : index
    %594 = vector.load %arg20[%593, %c0_333] : memref<16x32xf32, #tpu.memory_space<vmem>>, vector<2x32xf32>
    tpu.vector_store %arg20[%593, %c0_333], %590 {strides = array<i32>} : memref<16x32xf32, #tpu.memory_space<vmem>>, vector<2x32xf32>,
    %c3_i32_334 = arith.constant 3 : i32
    %c2_i32_335 = arith.constant 2 : i32
    %595 = arith.muli %c3_i32_334, %c2_i32_335 : i32
    %596 = tpu.assume_multiple %595, 2 : i32
    %597 = arith.index_cast %596 : i32 to index
    %c0_336 = arith.constant 0 : index
    %598 = vector.load %arg21[%597, %c0_336] : memref<16x128xf32, #tpu.memory_space<vmem>>, vector<2x128xf32>
    %c0_337 = arith.constant 0 : index
    %c0_338 = arith.constant 0 : index
    %599 = vector.load %arg22[%c0_337, %c0_338] : memref<2x32xf32, #tpu.memory_space<vmem>>, vector<2x32xf32>
    %600 = arith.truncf %599 : vector<2x32xf32> to vector<2x32xbf16>
    %cst_339 = arith.constant dense<0.000000e+00> : vector<2x128xf32>
    %601 = tpu.matmul %600, %506, %cst_339 {dimension_numbers = #tpu.dot_dimension_numbers<[1], [0], [0], [1], [0, 0, 1, 1], [], []>} : vector<2x32xbf16>, vector<32x128xbf16>, vector<2x128xf32> -> vector<2x128xf32>
    %602 = arith.addf %598, %601 : vector<2x128xf32>
    %603 = arith.negf %602 : vector<2x128xf32>
    %604 = math.exp %603 : vector<2x128xf32>
    %cst_340 = arith.constant 1.000000e+00 : f32
    %605 = vector.broadcast %cst_340 : f32 to vector<2x128xf32>
    %606 = arith.addf %605, %604 : vector<2x128xf32>
    %607 = arith.divf %605, %606 : vector<2x128xf32>
    %608 = math.tanh %602 : vector<2x128xf32>
    %609 = vector.extract_strided_slice %607 {offsets = [0, 0], sizes = [2, 32], strides = [1, 1]} : vector<2x128xf32> to vector<2x32xf32>
    %610 = vector.extract_strided_slice %607 {offsets = [0, 32], sizes = [2, 32], strides = [1, 1]} : vector<2x128xf32> to vector<2x32xf32>
    %611 = vector.extract_strided_slice %607 {offsets = [0, 96], sizes = [2, 32], strides = [1, 1]} : vector<2x128xf32> to vector<2x32xf32>
    %612 = vector.extract_strided_slice %608 {offsets = [0, 64], sizes = [2, 32], strides = [1, 1]} : vector<2x128xf32> to vector<2x32xf32>
    %c0_341 = arith.constant 0 : index
    %c0_342 = arith.constant 0 : index
    %613 = vector.load %arg23[%c0_341, %c0_342] : memref<2x32xf32, #tpu.memory_space<vmem>>, vector<2x32xf32>
    %614 = arith.mulf %610, %613 : vector<2x32xf32>
    %615 = arith.mulf %609, %612 : vector<2x32xf32>
    %616 = arith.addf %614, %615 : vector<2x32xf32>
    %617 = math.tanh %616 : vector<2x32xf32>
    %618 = arith.mulf %611, %617 : vector<2x32xf32>
    %c0_343 = arith.constant 0 : index
    %c0_344 = arith.constant 0 : index
    %619 = vector.load %arg23[%c0_343, %c0_344] : memref<2x32xf32, #tpu.memory_space<vmem>>, vector<2x32xf32>
    tpu.vector_store %arg23[%c0_343, %c0_344], %616 {strides = array<i32>} : memref<2x32xf32, #tpu.memory_space<vmem>>, vector<2x32xf32>,
    %c0_345 = arith.constant 0 : index
    %c0_346 = arith.constant 0 : index
    %620 = vector.load %arg22[%c0_345, %c0_346] : memref<2x32xf32, #tpu.memory_space<vmem>>, vector<2x32xf32>
    tpu.vector_store %arg22[%c0_345, %c0_346], %618 {strides = array<i32>} : memref<2x32xf32, #tpu.memory_space<vmem>>, vector<2x32xf32>,
    %621 = arith.index_cast %596 : i32 to index
    %c0_347 = arith.constant 0 : index
    %622 = vector.load %arg20[%621, %c0_347] : memref<16x32xf32, #tpu.memory_space<vmem>>, vector<2x32xf32>
    tpu.vector_store %arg20[%621, %c0_347], %618 {strides = array<i32>} : memref<16x32xf32, #tpu.memory_space<vmem>>, vector<2x32xf32>,
    %c4_i32_348 = arith.constant 4 : i32
    %c2_i32_349 = arith.constant 2 : i32
    %623 = arith.muli %c4_i32_348, %c2_i32_349 : i32
    %624 = tpu.assume_multiple %623, 2 : i32
    %625 = arith.index_cast %624 : i32 to index
    %c0_350 = arith.constant 0 : index
    %626 = vector.load %arg21[%625, %c0_350] : memref<16x128xf32, #tpu.memory_space<vmem>>, vector<2x128xf32>
    %c0_351 = arith.constant 0 : index
    %c0_352 = arith.constant 0 : index
    %627 = vector.load %arg22[%c0_351, %c0_352] : memref<2x32xf32, #tpu.memory_space<vmem>>, vector<2x32xf32>
    %628 = arith.truncf %627 : vector<2x32xf32> to vector<2x32xbf16>
    %cst_353 = arith.constant dense<0.000000e+00> : vector<2x128xf32>
    %629 = tpu.matmul %628, %506, %cst_353 {dimension_numbers = #tpu.dot_dimension_numbers<[1], [0], [0], [1], [0, 0, 1, 1], [], []>} : vector<2x32xbf16>, vector<32x128xbf16>, vector<2x128xf32> -> vector<2x128xf32>
    %630 = arith.addf %626, %629 : vector<2x128xf32>
    %631 = arith.negf %630 : vector<2x128xf32>
    %632 = math.exp %631 : vector<2x128xf32>
    %cst_354 = arith.constant 1.000000e+00 : f32
    %633 = vector.broadcast %cst_354 : f32 to vector<2x128xf32>
    %634 = arith.addf %633, %632 : vector<2x128xf32>
    %635 = arith.divf %633, %634 : vector<2x128xf32>
    %636 = math.tanh %630 : vector<2x128xf32>
    %637 = vector.extract_strided_slice %635 {offsets = [0, 0], sizes = [2, 32], strides = [1, 1]} : vector<2x128xf32> to vector<2x32xf32>
    %638 = vector.extract_strided_slice %635 {offsets = [0, 32], sizes = [2, 32], strides = [1, 1]} : vector<2x128xf32> to vector<2x32xf32>
    %639 = vector.extract_strided_slice %635 {offsets = [0, 96], sizes = [2, 32], strides = [1, 1]} : vector<2x128xf32> to vector<2x32xf32>
    %640 = vector.extract_strided_slice %636 {offsets = [0, 64], sizes = [2, 32], strides = [1, 1]} : vector<2x128xf32> to vector<2x32xf32>
    %c0_355 = arith.constant 0 : index
    %c0_356 = arith.constant 0 : index
    %641 = vector.load %arg23[%c0_355, %c0_356] : memref<2x32xf32, #tpu.memory_space<vmem>>, vector<2x32xf32>
    %642 = arith.mulf %638, %641 : vector<2x32xf32>
    %643 = arith.mulf %637, %640 : vector<2x32xf32>
    %644 = arith.addf %642, %643 : vector<2x32xf32>
    %645 = math.tanh %644 : vector<2x32xf32>
    %646 = arith.mulf %639, %645 : vector<2x32xf32>
    %c0_357 = arith.constant 0 : index
    %c0_358 = arith.constant 0 : index
    %647 = vector.load %arg23[%c0_357, %c0_358] : memref<2x32xf32, #tpu.memory_space<vmem>>, vector<2x32xf32>
    tpu.vector_store %arg23[%c0_357, %c0_358], %644 {strides = array<i32>} : memref<2x32xf32, #tpu.memory_space<vmem>>, vector<2x32xf32>,
    %c0_359 = arith.constant 0 : index
    %c0_360 = arith.constant 0 : index
    %648 = vector.load %arg22[%c0_359, %c0_360] : memref<2x32xf32, #tpu.memory_space<vmem>>, vector<2x32xf32>
    tpu.vector_store %arg22[%c0_359, %c0_360], %646 {strides = array<i32>} : memref<2x32xf32, #tpu.memory_space<vmem>>, vector<2x32xf32>,
    %649 = arith.index_cast %624 : i32 to index
    %c0_361 = arith.constant 0 : index
    %650 = vector.load %arg20[%649, %c0_361] : memref<16x32xf32, #tpu.memory_space<vmem>>, vector<2x32xf32>
    tpu.vector_store %arg20[%649, %c0_361], %646 {strides = array<i32>} : memref<16x32xf32, #tpu.memory_space<vmem>>, vector<2x32xf32>,
    %c5_i32_362 = arith.constant 5 : i32
    %c2_i32_363 = arith.constant 2 : i32
    %651 = arith.muli %c5_i32_362, %c2_i32_363 : i32
    %652 = tpu.assume_multiple %651, 2 : i32
    %653 = arith.index_cast %652 : i32 to index
    %c0_364 = arith.constant 0 : index
    %654 = vector.load %arg21[%653, %c0_364] : memref<16x128xf32, #tpu.memory_space<vmem>>, vector<2x128xf32>
    %c0_365 = arith.constant 0 : index
    %c0_366 = arith.constant 0 : index
    %655 = vector.load %arg22[%c0_365, %c0_366] : memref<2x32xf32, #tpu.memory_space<vmem>>, vector<2x32xf32>
    %656 = arith.truncf %655 : vector<2x32xf32> to vector<2x32xbf16>
    %cst_367 = arith.constant dense<0.000000e+00> : vector<2x128xf32>
    %657 = tpu.matmul %656, %506, %cst_367 {dimension_numbers = #tpu.dot_dimension_numbers<[1], [0], [0], [1], [0, 0, 1, 1], [], []>} : vector<2x32xbf16>, vector<32x128xbf16>, vector<2x128xf32> -> vector<2x128xf32>
    %658 = arith.addf %654, %657 : vector<2x128xf32>
    %659 = arith.negf %658 : vector<2x128xf32>
    %660 = math.exp %659 : vector<2x128xf32>
    %cst_368 = arith.constant 1.000000e+00 : f32
    %661 = vector.broadcast %cst_368 : f32 to vector<2x128xf32>
    %662 = arith.addf %661, %660 : vector<2x128xf32>
    %663 = arith.divf %661, %662 : vector<2x128xf32>
    %664 = math.tanh %658 : vector<2x128xf32>
    %665 = vector.extract_strided_slice %663 {offsets = [0, 0], sizes = [2, 32], strides = [1, 1]} : vector<2x128xf32> to vector<2x32xf32>
    %666 = vector.extract_strided_slice %663 {offsets = [0, 32], sizes = [2, 32], strides = [1, 1]} : vector<2x128xf32> to vector<2x32xf32>
    %667 = vector.extract_strided_slice %663 {offsets = [0, 96], sizes = [2, 32], strides = [1, 1]} : vector<2x128xf32> to vector<2x32xf32>
    %668 = vector.extract_strided_slice %664 {offsets = [0, 64], sizes = [2, 32], strides = [1, 1]} : vector<2x128xf32> to vector<2x32xf32>
    %c0_369 = arith.constant 0 : index
    %c0_370 = arith.constant 0 : index
    %669 = vector.load %arg23[%c0_369, %c0_370] : memref<2x32xf32, #tpu.memory_space<vmem>>, vector<2x32xf32>
    %670 = arith.mulf %666, %669 : vector<2x32xf32>
    %671 = arith.mulf %665, %668 : vector<2x32xf32>
    %672 = arith.addf %670, %671 : vector<2x32xf32>
    %673 = math.tanh %672 : vector<2x32xf32>
    %674 = arith.mulf %667, %673 : vector<2x32xf32>
    %c0_371 = arith.constant 0 : index
    %c0_372 = arith.constant 0 : index
    %675 = vector.load %arg23[%c0_371, %c0_372] : memref<2x32xf32, #tpu.memory_space<vmem>>, vector<2x32xf32>
    tpu.vector_store %arg23[%c0_371, %c0_372], %672 {strides = array<i32>} : memref<2x32xf32, #tpu.memory_space<vmem>>, vector<2x32xf32>,
    %c0_373 = arith.constant 0 : index
    %c0_374 = arith.constant 0 : index
    %676 = vector.load %arg22[%c0_373, %c0_374] : memref<2x32xf32, #tpu.memory_space<vmem>>, vector<2x32xf32>
    tpu.vector_store %arg22[%c0_373, %c0_374], %674 {strides = array<i32>} : memref<2x32xf32, #tpu.memory_space<vmem>>, vector<2x32xf32>,
    %677 = arith.index_cast %652 : i32 to index
    %c0_375 = arith.constant 0 : index
    %678 = vector.load %arg20[%677, %c0_375] : memref<16x32xf32, #tpu.memory_space<vmem>>, vector<2x32xf32>
    tpu.vector_store %arg20[%677, %c0_375], %674 {strides = array<i32>} : memref<16x32xf32, #tpu.memory_space<vmem>>, vector<2x32xf32>,
    %c6_i32_376 = arith.constant 6 : i32
    %c2_i32_377 = arith.constant 2 : i32
    %679 = arith.muli %c6_i32_376, %c2_i32_377 : i32
    %680 = tpu.assume_multiple %679, 2 : i32
    %681 = arith.index_cast %680 : i32 to index
    %c0_378 = arith.constant 0 : index
    %682 = vector.load %arg21[%681, %c0_378] : memref<16x128xf32, #tpu.memory_space<vmem>>, vector<2x128xf32>
    %c0_379 = arith.constant 0 : index
    %c0_380 = arith.constant 0 : index
    %683 = vector.load %arg22[%c0_379, %c0_380] : memref<2x32xf32, #tpu.memory_space<vmem>>, vector<2x32xf32>
    %684 = arith.truncf %683 : vector<2x32xf32> to vector<2x32xbf16>
    %cst_381 = arith.constant dense<0.000000e+00> : vector<2x128xf32>
    %685 = tpu.matmul %684, %506, %cst_381 {dimension_numbers = #tpu.dot_dimension_numbers<[1], [0], [0], [1], [0, 0, 1, 1], [], []>} : vector<2x32xbf16>, vector<32x128xbf16>, vector<2x128xf32> -> vector<2x128xf32>
    %686 = arith.addf %682, %685 : vector<2x128xf32>
    %687 = arith.negf %686 : vector<2x128xf32>
    %688 = math.exp %687 : vector<2x128xf32>
    %cst_382 = arith.constant 1.000000e+00 : f32
    %689 = vector.broadcast %cst_382 : f32 to vector<2x128xf32>
    %690 = arith.addf %689, %688 : vector<2x128xf32>
    %691 = arith.divf %689, %690 : vector<2x128xf32>
    %692 = math.tanh %686 : vector<2x128xf32>
    %693 = vector.extract_strided_slice %691 {offsets = [0, 0], sizes = [2, 32], strides = [1, 1]} : vector<2x128xf32> to vector<2x32xf32>
    %694 = vector.extract_strided_slice %691 {offsets = [0, 32], sizes = [2, 32], strides = [1, 1]} : vector<2x128xf32> to vector<2x32xf32>
    %695 = vector.extract_strided_slice %691 {offsets = [0, 96], sizes = [2, 32], strides = [1, 1]} : vector<2x128xf32> to vector<2x32xf32>
    %696 = vector.extract_strided_slice %692 {offsets = [0, 64], sizes = [2, 32], strides = [1, 1]} : vector<2x128xf32> to vector<2x32xf32>
    %c0_383 = arith.constant 0 : index
    %c0_384 = arith.constant 0 : index
    %697 = vector.load %arg23[%c0_383, %c0_384] : memref<2x32xf32, #tpu.memory_space<vmem>>, vector<2x32xf32>
    %698 = arith.mulf %694, %697 : vector<2x32xf32>
    %699 = arith.mulf %693, %696 : vector<2x32xf32>
    %700 = arith.addf %698, %699 : vector<2x32xf32>
    %701 = math.tanh %700 : vector<2x32xf32>
    %702 = arith.mulf %695, %701 : vector<2x32xf32>
    %c0_385 = arith.constant 0 : index
    %c0_386 = arith.constant 0 : index
    %703 = vector.load %arg23[%c0_385, %c0_386] : memref<2x32xf32, #tpu.memory_space<vmem>>, vector<2x32xf32>
    tpu.vector_store %arg23[%c0_385, %c0_386], %700 {strides = array<i32>} : memref<2x32xf32, #tpu.memory_space<vmem>>, vector<2x32xf32>,
    %c0_387 = arith.constant 0 : index
    %c0_388 = arith.constant 0 : index
    %704 = vector.load %arg22[%c0_387, %c0_388] : memref<2x32xf32, #tpu.memory_space<vmem>>, vector<2x32xf32>
    tpu.vector_store %arg22[%c0_387, %c0_388], %702 {strides = array<i32>} : memref<2x32xf32, #tpu.memory_space<vmem>>, vector<2x32xf32>,
    %705 = arith.index_cast %680 : i32 to index
    %c0_389 = arith.constant 0 : index
    %706 = vector.load %arg20[%705, %c0_389] : memref<16x32xf32, #tpu.memory_space<vmem>>, vector<2x32xf32>
    tpu.vector_store %arg20[%705, %c0_389], %702 {strides = array<i32>} : memref<16x32xf32, #tpu.memory_space<vmem>>, vector<2x32xf32>,
    %c7_i32_390 = arith.constant 7 : i32
    %c2_i32_391 = arith.constant 2 : i32
    %707 = arith.muli %c7_i32_390, %c2_i32_391 : i32
    %708 = tpu.assume_multiple %707, 2 : i32
    %709 = arith.index_cast %708 : i32 to index
    %c0_392 = arith.constant 0 : index
    %710 = vector.load %arg21[%709, %c0_392] : memref<16x128xf32, #tpu.memory_space<vmem>>, vector<2x128xf32>
    %c0_393 = arith.constant 0 : index
    %c0_394 = arith.constant 0 : index
    %711 = vector.load %arg22[%c0_393, %c0_394] : memref<2x32xf32, #tpu.memory_space<vmem>>, vector<2x32xf32>
    %712 = arith.truncf %711 : vector<2x32xf32> to vector<2x32xbf16>
    %cst_395 = arith.constant dense<0.000000e+00> : vector<2x128xf32>
    %713 = tpu.matmul %712, %506, %cst_395 {dimension_numbers = #tpu.dot_dimension_numbers<[1], [0], [0], [1], [0, 0, 1, 1], [], []>} : vector<2x32xbf16>, vector<32x128xbf16>, vector<2x128xf32> -> vector<2x128xf32>
    %714 = arith.addf %710, %713 : vector<2x128xf32>
    %715 = arith.negf %714 : vector<2x128xf32>
    %716 = math.exp %715 : vector<2x128xf32>
    %cst_396 = arith.constant 1.000000e+00 : f32
    %717 = vector.broadcast %cst_396 : f32 to vector<2x128xf32>
    %718 = arith.addf %717, %716 : vector<2x128xf32>
    %719 = arith.divf %717, %718 : vector<2x128xf32>
    %720 = math.tanh %714 : vector<2x128xf32>
    %721 = vector.extract_strided_slice %719 {offsets = [0, 0], sizes = [2, 32], strides = [1, 1]} : vector<2x128xf32> to vector<2x32xf32>
    %722 = vector.extract_strided_slice %719 {offsets = [0, 32], sizes = [2, 32], strides = [1, 1]} : vector<2x128xf32> to vector<2x32xf32>
    %723 = vector.extract_strided_slice %719 {offsets = [0, 96], sizes = [2, 32], strides = [1, 1]} : vector<2x128xf32> to vector<2x32xf32>
    %724 = vector.extract_strided_slice %720 {offsets = [0, 64], sizes = [2, 32], strides = [1, 1]} : vector<2x128xf32> to vector<2x32xf32>
    %c0_397 = arith.constant 0 : index
    %c0_398 = arith.constant 0 : index
    %725 = vector.load %arg23[%c0_397, %c0_398] : memref<2x32xf32, #tpu.memory_space<vmem>>, vector<2x32xf32>
    %726 = arith.mulf %722, %725 : vector<2x32xf32>
    %727 = arith.mulf %721, %724 : vector<2x32xf32>
    %728 = arith.addf %726, %727 : vector<2x32xf32>
    %729 = math.tanh %728 : vector<2x32xf32>
    %730 = arith.mulf %723, %729 : vector<2x32xf32>
    %c0_399 = arith.constant 0 : index
    %c0_400 = arith.constant 0 : index
    %731 = vector.load %arg23[%c0_399, %c0_400] : memref<2x32xf32, #tpu.memory_space<vmem>>, vector<2x32xf32>
    tpu.vector_store %arg23[%c0_399, %c0_400], %728 {strides = array<i32>} : memref<2x32xf32, #tpu.memory_space<vmem>>, vector<2x32xf32>,
    %c0_401 = arith.constant 0 : index
    %c0_402 = arith.constant 0 : index
    %732 = vector.load %arg22[%c0_401, %c0_402] : memref<2x32xf32, #tpu.memory_space<vmem>>, vector<2x32xf32>
    tpu.vector_store %arg22[%c0_401, %c0_402], %730 {strides = array<i32>} : memref<2x32xf32, #tpu.memory_space<vmem>>, vector<2x32xf32>,
    %733 = arith.index_cast %708 : i32 to index
    %c0_403 = arith.constant 0 : index
    %734 = vector.load %arg20[%733, %c0_403] : memref<16x32xf32, #tpu.memory_space<vmem>>, vector<2x32xf32>
    tpu.vector_store %arg20[%733, %c0_403], %730 {strides = array<i32>} : memref<16x32xf32, #tpu.memory_space<vmem>>, vector<2x32xf32>,
    %c8_i32_404 = arith.constant 8 : i32
    %c0_405 = arith.constant 0 : index
    %c0_406 = arith.constant 0 : index
    %735 = vector.load %arg22[%c0_405, %c0_406] : memref<2x32xf32, #tpu.memory_space<vmem>>, vector<2x32xf32>
    %c2_407 = arith.constant 2 : index
    %c0_408 = arith.constant 0 : index
    %c0_409 = arith.constant 0 : index
    %736 = vector.load %arg18[%c2_407, %c0_408, %c0_409] : memref<3x2x32xf32, #tpu.memory_space<vmem>>, vector<1x2x32xf32>
    %737 = vector.shape_cast %736 : vector<1x2x32xf32> to vector<2x32xf32>
    %738 = vector.shape_cast %735 : vector<2x32xf32> to vector<1x2x32xf32>
    tpu.vector_store %arg18[%c2_407, %c0_408, %c0_409], %738 {strides = array<i32>} : memref<3x2x32xf32, #tpu.memory_space<vmem>>, vector<1x2x32xf32>,
    %c0_410 = arith.constant 0 : index
    %c0_411 = arith.constant 0 : index
    %739 = vector.load %arg23[%c0_410, %c0_411] : memref<2x32xf32, #tpu.memory_space<vmem>>, vector<2x32xf32>
    %c2_412 = arith.constant 2 : index
    %c0_413 = arith.constant 0 : index
    %c0_414 = arith.constant 0 : index
    %740 = vector.load %arg19[%c2_412, %c0_413, %c0_414] : memref<3x2x32xf32, #tpu.memory_space<vmem>>, vector<1x2x32xf32>
    %741 = vector.shape_cast %740 : vector<1x2x32xf32> to vector<2x32xf32>
    %742 = vector.shape_cast %739 : vector<2x32xf32> to vector<1x2x32xf32>
    tpu.vector_store %arg19[%c2_412, %c0_413, %c0_414], %742 {strides = array<i32>} : memref<3x2x32xf32, #tpu.memory_space<vmem>>, vector<1x2x32xf32>,
    %c0_415 = arith.constant 0 : index
    %c0_416 = arith.constant 0 : index
    %743 = vector.load %arg20[%c0_415, %c0_416] : memref<16x32xf32, #tpu.memory_space<vmem>>, vector<16x32xf32>
    %c0_417 = arith.constant 0 : index
    %c0_418 = arith.constant 0 : index
    %744 = vector.load %arg0[%c0_417, %c0_418] : memref<16x8xf32, #tpu.memory_space<vmem>>, vector<16x8xf32>
    %745 = arith.truncf %744 : vector<16x8xf32> to vector<16x8xbf16>
    %c0_419 = arith.constant 0 : index
    %c0_420 = arith.constant 0 : index
    %746 = vector.load %arg6[%c0_419, %c0_420] : memref<8x32xbf16, #tpu.memory_space<vmem>>, vector<8x32xbf16>
    %cst_421 = arith.constant dense<0.000000e+00> : vector<16x32xf32>
    %747 = tpu.matmul %745, %746, %cst_421 {dimension_numbers = #tpu.dot_dimension_numbers<[1], [0], [0], [1], [0, 0, 1, 1], [], []>} : vector<16x8xbf16>, vector<8x32xbf16>, vector<16x32xf32> -> vector<16x32xf32>
    %c0_422 = arith.constant 0 : index
    %c0_423 = arith.constant 0 : index
    %748 = vector.load %arg7[%c0_422, %c0_423] : memref<1x32xf32, #tpu.memory_space<vmem>>, vector<1x32xf32>
    %749 = vector.broadcast %748 : vector<1x32xf32> to vector<16x32xf32>
    %750 = arith.addf %747, %749 : vector<16x32xf32>
    %751 = arith.addf %743, %750 : vector<16x32xf32>
    %cst_424 = arith.constant dense<0.000000e+00> : vector<16xf32>
    %752 = vector.multi_reduction <add>, %751, %cst_424 [1] : vector<16x32xf32> to vector<16xf32>
    %753 = vector.shape_cast %752 : vector<16xf32> to vector<16x1xf32>
    %cst_425 = arith.constant 3.200000e+01 : f32
    %754 = vector.broadcast %cst_425 : f32 to vector<16x1xf32>
    %755 = arith.divf %753, %754 : vector<16x1xf32>
    %756 = vector.broadcast %755 : vector<16x1xf32> to vector<16x32xf32>
    %757 = arith.subf %751, %756 : vector<16x32xf32>
    %758 = arith.mulf %757, %757 : vector<16x32xf32>
    %cst_426 = arith.constant dense<0.000000e+00> : vector<16xf32>
    %759 = vector.multi_reduction <add>, %758, %cst_426 [1] : vector<16x32xf32> to vector<16xf32>
    %760 = vector.shape_cast %759 : vector<16xf32> to vector<16x1xf32>
    %cst_427 = arith.constant 3.200000e+01 : f32
    %761 = vector.broadcast %cst_427 : f32 to vector<16x1xf32>
    %762 = arith.divf %760, %761 : vector<16x1xf32>
    %763 = vector.broadcast %755 : vector<16x1xf32> to vector<16x32xf32>
    %764 = arith.subf %751, %763 : vector<16x32xf32>
    %cst_428 = arith.constant 9.99999974E-6 : f32
    %765 = vector.broadcast %cst_428 : f32 to vector<16x1xf32>
    %766 = arith.addf %762, %765 : vector<16x1xf32>
    %767 = math.rsqrt %766 : vector<16x1xf32>
    %768 = vector.broadcast %767 : vector<16x1xf32> to vector<16x32xf32>
    %769 = arith.mulf %764, %768 : vector<16x32xf32>
    %c0_429 = arith.constant 0 : index
    %c0_430 = arith.constant 0 : index
    %770 = vector.load %arg8[%c0_429, %c0_430] : memref<1x32xf32, #tpu.memory_space<vmem>>, vector<1x32xf32>
    %771 = vector.broadcast %770 : vector<1x32xf32> to vector<16x32xf32>
    %772 = arith.mulf %769, %771 : vector<16x32xf32>
    %c0_431 = arith.constant 0 : index
    %c0_432 = arith.constant 0 : index
    %773 = vector.load %arg9[%c0_431, %c0_432] : memref<1x32xf32, #tpu.memory_space<vmem>>, vector<1x32xf32>
    %774 = vector.broadcast %773 : vector<1x32xf32> to vector<16x32xf32>
    %775 = arith.addf %772, %774 : vector<16x32xf32>
    %776 = arith.truncf %775 : vector<16x32xf32> to vector<16x32xbf16>
    %c0_433 = arith.constant 0 : index
    %c0_434 = arith.constant 0 : index
    %777 = vector.load %arg10[%c0_433, %c0_434] : memref<32x32xbf16, #tpu.memory_space<vmem>>, vector<32x32xbf16>
    %cst_435 = arith.constant dense<0.000000e+00> : vector<16x32xf32>
    %778 = tpu.matmul %776, %777, %cst_435 {dimension_numbers = #tpu.dot_dimension_numbers<[1], [0], [0], [1], [0, 0, 1, 1], [], []>} : vector<16x32xbf16>, vector<32x32xbf16>, vector<16x32xf32> -> vector<16x32xf32>
    %c0_436 = arith.constant 0 : index
    %c0_437 = arith.constant 0 : index
    %779 = vector.load %arg11[%c0_436, %c0_437] : memref<1x32xf32, #tpu.memory_space<vmem>>, vector<1x32xf32>
    %780 = vector.broadcast %779 : vector<1x32xf32> to vector<16x32xf32>
    %781 = arith.addf %778, %780 : vector<16x32xf32>
    %cst_438 = arith.constant 0.000000e+00 : f32
    %782 = vector.broadcast %cst_438 : f32 to vector<16x32xf32>
    %783 = arith.maximumf %781, %782 : vector<16x32xf32>
    %c0_439 = arith.constant 0 : index
    %c0_440 = arith.constant 0 : index
    %784 = vector.load %arg13[%c0_439, %c0_440] : memref<32x48xbf16, #tpu.memory_space<vmem>>, vector<32x48xbf16>
    %cst_441 = arith.constant dense<0.000000e+00> : vector<16x48xf32>
    %785 = tpu.matmul %776, %784, %cst_441 {dimension_numbers = #tpu.dot_dimension_numbers<[1], [0], [0], [1], [0, 0, 1, 1], [], []>} : vector<16x32xbf16>, vector<32x48xbf16>, vector<16x48xf32> -> vector<16x48xf32>
    %c0_442 = arith.constant 0 : index
    %c0_443 = arith.constant 0 : index
    %786 = vector.load %arg14[%c0_442, %c0_443] : memref<1x48xf32, #tpu.memory_space<vmem>>, vector<1x48xf32>
    %787 = vector.broadcast %786 : vector<1x48xf32> to vector<16x48xf32>
    %788 = arith.addf %785, %787 : vector<16x48xf32>
    %cst_444 = arith.constant 0.000000e+00 : f32
    %789 = vector.broadcast %cst_444 : f32 to vector<16x48xf32>
    %790 = arith.maximumf %788, %789 : vector<16x48xf32>
    %791 = arith.truncf %783 : vector<16x32xf32> to vector<16x32xbf16>
    %c0_445 = arith.constant 0 : index
    %c0_446 = arith.constant 0 : index
    %792 = vector.load %arg12[%c0_445, %c0_446] : memref<32x9xbf16, #tpu.memory_space<vmem>>, vector<32x9xbf16>
    %cst_447 = arith.constant dense<0.000000e+00> : vector<16x9xf32>
    %793 = tpu.matmul %791, %792, %cst_447 {dimension_numbers = #tpu.dot_dimension_numbers<[1], [0], [0], [1], [0, 0, 1, 1], [], []>} : vector<16x32xbf16>, vector<32x9xbf16>, vector<16x9xf32> -> vector<16x9xf32>
    %794 = arith.truncf %790 : vector<16x48xf32> to vector<16x48xbf16>
    %c0_448 = arith.constant 0 : index
    %c0_449 = arith.constant 0 : index
    %795 = vector.load %arg15[%c0_448, %c0_449] : memref<48x9xbf16, #tpu.memory_space<vmem>>, vector<48x9xbf16>
    %cst_450 = arith.constant dense<0.000000e+00> : vector<16x9xf32>
    %796 = tpu.matmul %794, %795, %cst_450 {dimension_numbers = #tpu.dot_dimension_numbers<[1], [0], [0], [1], [0, 0, 1, 1], [], []>} : vector<16x48xbf16>, vector<48x9xbf16>, vector<16x9xf32> -> vector<16x9xf32>
    %797 = arith.addf %793, %796 : vector<16x9xf32>
    %c0_451 = arith.constant 0 : index
    %c0_452 = arith.constant 0 : index
    %798 = vector.load %arg16[%c0_451, %c0_452] : memref<1x9xf32, #tpu.memory_space<vmem>>, vector<1x9xf32>
    %799 = vector.broadcast %798 : vector<1x9xf32> to vector<16x9xf32>
    %800 = arith.addf %797, %799 : vector<16x9xf32>
    %c0_453 = arith.constant 0 : index
    %c0_454 = arith.constant 0 : index
    %801 = vector.load %arg1[%c0_453, %c0_454] : memref<16x9xf32, #tpu.memory_space<vmem>>, vector<16x9xf32>
    %802 = arith.addf %800, %801 : vector<16x9xf32>
    %c0_455 = arith.constant 0 : index
    %c0_456 = arith.constant 0 : index
    %803 = vector.load %arg17[%c0_455, %c0_456] : memref<16x9xf32, #tpu.memory_space<vmem>>, vector<16x9xf32>
    tpu.vector_store %arg17[%c0_455, %c0_456], %802 {strides = array<i32>} : memref<16x9xf32, #tpu.memory_space<vmem>>, vector<16x9xf32>,
    return
  }
}

</mosaic_0001>

<llo_original>
// kernel: tpu_custom_call.1
$region0: #{tpu_custom_call.1}
  #allocation0 [shape = 'u32[]', space=smem, size = 0x4, offset = 0x4, fixed_abs, tag = 'smem constant byte address 0x4 - core index']
  #allocation1 [shape = 'u32[144,128]{1,0:T(1,128)}', space=vmem, size = 0x12000, scoped, tag = 'internal scratch']
  #allocation2 [shape = 'f32[16,32]{1,0:T(8,128)}', space=vmem, size = 0x2000, scoped, tag = 'scratch operand']
  #allocation3 [shape = 'f32[16,128]{1,0:T(8,128)}', space=vmem, size = 0x2000, scoped, tag = 'scratch operand']
  #allocation4 [shape = 'f32[2,32]{1,0:T(2,128)}', space=vmem, size = 0x400, scoped, tag = 'scratch operand']
  #allocation5 [shape = 'f32[2,32]{1,0:T(2,128)}', space=vmem, size = 0x400, scoped, tag = 'scratch operand']
  %s0 = inlined_call_operand.vmem [shape: f32[16,8], index: 0, kind: input, shape index: {}]
  %s1 = inlined_call_operand.hbm [shape: f32[16,9], index: 1, kind: input, shape index: {}]
  %s2 = inlined_call_operand.hbm [shape: bf16[8,128], index: 2, kind: input, shape index: {}]
  %s3 = inlined_call_operand.vmem [shape: bf16[2,32,128], index: 3, kind: input, shape index: {}]
  %s4 = inlined_call_operand.vmem [shape: bf16[3,32,128], index: 4, kind: input, shape index: {}]
  %s5 = inlined_call_operand.hbm [shape: f32[3,1,128], index: 5, kind: input, shape index: {}]
  %s6 = inlined_call_operand.hbm [shape: bf16[8,32], index: 6, kind: input, shape index: {}]
  %s7 = inlined_call_operand.vmem [shape: f32[1,32], index: 7, kind: input, shape index: {}]
  %s8 = inlined_call_operand.hbm [shape: f32[1,32], index: 8, kind: input, shape index: {}]
  %s9 = inlined_call_operand.hbm [shape: f32[1,32], index: 9, kind: input, shape index: {}]
  %s10 = inlined_call_operand.vmem [shape: bf16[32,32], index: 10, kind: input, shape index: {}]
  %s11 = inlined_call_operand.hbm [shape: f32[1,32], index: 11, kind: input, shape index: {}]
  %s12 = inlined_call_operand.vmem [shape: bf16[32,9], index: 12, kind: input, shape index: {}]
  %s13 = inlined_call_operand.vmem [shape: bf16[32,48], index: 13, kind: input, shape index: {}]
  %s14 = inlined_call_operand.vmem [shape: f32[1,48], index: 14, kind: input, shape index: {}]
  %s15 = inlined_call_operand.vmem [shape: bf16[48,9], index: 15, kind: input, shape index: {}]
  %s16 = inlined_call_operand.vmem [shape: f32[1,9], index: 16, kind: input, shape index: {}]
  %s17 = inlined_call_operand.hbm [shape: f32[16,9], index: 17, kind: output, shape index: {0}]
  %s18 = inlined_call_operand.hbm [shape: f32[3,2,32], index: 18, kind: output, shape index: {1}]
  %s19 = inlined_call_operand.hbm [shape: f32[3,2,32], index: 19, kind: output, shape index: {2}]
  %20 = xla_tuple %s17, %s18, %s19
  %s21 = sld [smem:[#allocation0]]
  $region122: #{tpu_custom_call.1} parent=0
    _
  %s23 = ssub.s32 1, %s21
  %s24 = scalar_select 0, %s23, %s21
  $region1: #{tpu_custom_call.1} parent=0
    #allocation6 [shape = 'u8[8192]{0}', space=vmem, size = 0x2000, scoped, tag = 'input window, operand 1, single buffered']
    #allocation7 [shape = 's32[1]{0}', space=sflag, size = 0x4, scoped, tag = 'scoped memory for tpu_custom_call.1']
    #allocation8 [shape = 's32[1]{0}', space=sflag, size = 0x4, scoped, tag = 'scoped memory for tpu_custom_call.1']
    #allocation9 [shape = 'u8[2048]{0}', space=vmem, size = 0x800, scoped, tag = 'input window, operand 2, single buffered']
    #allocation10 [shape = 's32[1]{0}', space=sflag, size = 0x4, scoped, tag = 'scoped memory for tpu_custom_call.1']
    #allocation11 [shape = 'u8[1536]{0}', space=vmem, size = 0x800, scoped, tag = 'input window, operand 5, single buffered']
    #allocation12 [shape = 'u8[2048]{0}', space=vmem, size = 0x800, scoped, tag = 'input window, operand 6, single buffered']
    #allocation13 [shape = 's32[1]{0}', space=sflag, size = 0x4, scoped, tag = 'scoped memory for tpu_custom_call.1']
    #allocation14 [shape = 'u8[512]{0}', space=vmem, size = 0x400, scoped, tag = 'input window, operand 8, single buffered']
    #allocation15 [shape = 'u8[512]{0}', space=vmem, size = 0x400, scoped, tag = 'input window, operand 9, single buffered']
    #allocation16 [shape = 's32[1]{0}', space=sflag, size = 0x4, scoped, tag = 'scoped memory for tpu_custom_call.1']
    #allocation17 [shape = 'u8[512]{0}', space=vmem, size = 0x400, scoped, tag = 'input window, operand 11, single buffered']
    #allocation18 [shape = 'u8[8192]{0}', space=vmem, size = 0x2000, scoped, tag = 'output window, operand 0, single buffered']
    #allocation19 [shape = 'u8[3072]{0}', space=vmem, size = 0xc00, scoped, tag = 'output window, operand 1, single buffered']
    #allocation20 [shape = 's32[1]{0}', space=sflag, size = 0x4, scoped, tag = 'scoped memory for tpu_custom_call.1']
    #allocation21 [shape = 'u8[3072]{0}', space=vmem, size = 0xc00, scoped, tag = 'output window, operand 2, single buffered']
    %25 = vsyncpa [#allocation7], 0
    %26 = vsyncpa [#allocation10], 0
    %27 = vsyncpa [#allocation13], 0
    %28 = vsyncpa [#allocation16], 0
    %29 = vsyncpa [#allocation8], 0
    %30 = vsyncpa [#allocation20], 0
    // Predicated region
    $region2: #{tpu_custom_call.1} parent=1 // pred_check
      _
    $region3: #{tpu_custom_call.1} parent=1 // pred_check_branch
      %32 = sbr.rel (0) target = $region5
    $region4: #{tpu_custom_call.1} parent=1 // pred_region
      _
    $region5: #{tpu_custom_call.1} parent=1 // pred_fallthru
      _
    // Predicated region
    $region6: #{tpu_custom_call.1} parent=1 // pred_check
      _
    $region7: #{tpu_custom_call.1} parent=1 // pred_check_branch
      %34 = sbr.rel (0) target = $region9
    $region8: #{tpu_custom_call.1} parent=1 // pred_region
      %s36 = ssub.s32 256, 256
      %37 = vsyncadd [#allocation7], %s36
      %s38 = sshll.u32 [#allocation6], 4
      %s39 = int_to_ptr.vmem [resolvable:$true] %s38
      %44 = dma.hbm_to_vmem [thread:$0]  %s1, 256, %s39, [#allocation7], 128, 128, 8
    $region9: #{tpu_custom_call.1} parent=1 // pred_fallthru
      _
    // Predicated region
    $region10: #{tpu_custom_call.1} parent=1 // pred_check
      _
    $region11: #{tpu_custom_call.1} parent=1 // pred_check_branch
      %46 = sbr.rel (0) target = $region13
    $region12: #{tpu_custom_call.1} parent=1 // pred_region
      %s48 = ssub.s32 64, 64
      %49 = vsyncadd [#allocation10], %s48
      %s51 = sshll.u32 [#allocation9], 4
      %s52 = int_to_ptr.vmem [resolvable:$true] %s51
      %54 = dma.hbm_to_vmem [thread:$0]  %s2, 64, %s52, [#allocation10]
    $region13: #{tpu_custom_call.1} parent=1 // pred_fallthru
      _
    // Predicated region
    $region14: #{tpu_custom_call.1} parent=1 // pred_check
      _
    $region15: #{tpu_custom_call.1} parent=1 // pred_check_branch
      %56 = sbr.rel (0) target = $region17
    $region16: #{tpu_custom_call.1} parent=1 // pred_region
      _
    $region17: #{tpu_custom_call.1} parent=1 // pred_fallthru
      _
    // Predicated region
    $region18: #{tpu_custom_call.1} parent=1 // pred_check
      _
    $region19: #{tpu_custom_call.1} parent=1 // pred_check_branch
      %58 = sbr.rel (0) target = $region21
    $region20: #{tpu_custom_call.1} parent=1 // pred_region
      _
    $region21: #{tpu_custom_call.1} parent=1 // pred_fallthru
      _
    // Predicated region
    $region22: #{tpu_custom_call.1} parent=1 // pred_check
      _
    $region23: #{tpu_custom_call.1} parent=1 // pred_check_branch
      %60 = sbr.rel (0) target = $region25
    $region24: #{tpu_custom_call.1} parent=1 // pred_region
      %s62 = ssub.s32 48, 48
      %63 = vsyncadd [#allocation10], %s62
      %s64 = sshll.u32 [#allocation11], 4
      %s65 = int_to_ptr.vmem [resolvable:$true] %s64
      %70 = dma.hbm_to_vmem [thread:$0]  %s5, 48, %s65, [#allocation10], 16, 16, 1
    $region25: #{tpu_custom_call.1} parent=1 // pred_fallthru
      _
    // Predicated region
    $region26: #{tpu_custom_call.1} parent=1 // pred_check
      _
    $region27: #{tpu_custom_call.1} parent=1 // pred_check_branch
      %72 = sbr.rel (0) target = $region29
    $region28: #{tpu_custom_call.1} parent=1 // pred_region
      %s74 = ssub.s32 64, 64
      %75 = vsyncadd [#allocation13], %s74
      %s77 = sshll.u32 [#allocation12], 4
      %s78 = int_to_ptr.vmem [resolvable:$true] %s77
      %80 = dma.hbm_to_vmem [thread:$0]  %s6, 64, %s78, [#allocation13]
    $region29: #{tpu_custom_call.1} parent=1 // pred_fallthru
      _
    // Predicated region
    $region30: #{tpu_custom_call.1} parent=1 // pred_check
      _
    $region31: #{tpu_custom_call.1} parent=1 // pred_check_branch
      %82 = sbr.rel (0) target = $region33
    $region32: #{tpu_custom_call.1} parent=1 // pred_region
      _
    $region33: #{tpu_custom_call.1} parent=1 // pred_fallthru
      _
    // Predicated region
    $region34: #{tpu_custom_call.1} parent=1 // pred_check
      _
    $region35: #{tpu_custom_call.1} parent=1 // pred_check_branch
      %84 = sbr.rel (0) target = $region37
    $region36: #{tpu_custom_call.1} parent=1 // pred_region
      %s86 = ssub.s32 16, 16
      %87 = vsyncadd [#allocation13], %s86
      %s89 = sshll.u32 [#allocation14], 4
      %s90 = int_to_ptr.vmem [resolvable:$true] %s89
      %92 = dma.hbm_to_vmem [thread:$0]  %s8, 16, %s90, [#allocation13]
    $region37: #{tpu_custom_call.1} parent=1 // pred_fallthru
      _
    // Predicated region
    $region38: #{tpu_custom_call.1} parent=1 // pred_check
      _
    $region39: #{tpu_custom_call.1} parent=1 // pred_check_branch
      %94 = sbr.rel (0) target = $region41
    $region40: #{tpu_custom_call.1} parent=1 // pred_region
      %s96 = ssub.s32 16, 16
      %97 = vsyncadd [#allocation16], %s96
      %s99 = sshll.u32 [#allocation15], 4
      %s100 = int_to_ptr.vmem [resolvable:$true] %s99
      %102 = dma.hbm_to_vmem [thread:$0]  %s9, 16, %s100, [#allocation16]
    $region41: #{tpu_custom_call.1} parent=1 // pred_fallthru
      _
    // Predicated region
    $region42: #{tpu_custom_call.1} parent=1 // pred_check
      _
    $region43: #{tpu_custom_call.1} parent=1 // pred_check_branch
      %104 = sbr.rel (0) target = $region45
    $region44: #{tpu_custom_call.1} parent=1 // pred_region
      _
    $region45: #{tpu_custom_call.1} parent=1 // pred_fallthru
      _
    // Predicated region
    $region46: #{tpu_custom_call.1} parent=1 // pred_check
      _
    $region47: #{tpu_custom_call.1} parent=1 // pred_check_branch
      %106 = sbr.rel (0) target = $region49
    $region48: #{tpu_custom_call.1} parent=1 // pred_region
      %s108 = ssub.s32 16, 16
      %109 = vsyncadd [#allocation16], %s108
      %s111 = sshll.u32 [#allocation17], 4
      %s112 = int_to_ptr.vmem [resolvable:$true] %s111
      %114 = dma.hbm_to_vmem [thread:$0]  %s11, 16, %s112, [#allocation16]
    $region49: #{tpu_custom_call.1} parent=1 // pred_fallthru
      _
    // Predicated region
    $region50: #{tpu_custom_call.1} parent=1 // pred_check
      _
    $region51: #{tpu_custom_call.1} parent=1 // pred_check_branch
      %116 = sbr.rel (0) target = $region53
    $region52: #{tpu_custom_call.1} parent=1 // pred_region
      _
    $region53: #{tpu_custom_call.1} parent=1 // pred_fallthru
      _
    // Predicated region
    $region54: #{tpu_custom_call.1} parent=1 // pred_check
      _
    $region55: #{tpu_custom_call.1} parent=1 // pred_check_branch
      %118 = sbr.rel (0) target = $region57
    $region56: #{tpu_custom_call.1} parent=1 // pred_region
      _
    $region57: #{tpu_custom_call.1} parent=1 // pred_fallthru
      _
    // Predicated region
    $region58: #{tpu_custom_call.1} parent=1 // pred_check
      _
    $region59: #{tpu_custom_call.1} parent=1 // pred_check_branch
      %120 = sbr.rel (0) target = $region61
    $region60: #{tpu_custom_call.1} parent=1 // pred_region
      _
    $region61: #{tpu_custom_call.1} parent=1 // pred_fallthru
      _
    // Predicated region
    $region62: #{tpu_custom_call.1} parent=1 // pred_check
      _
    $region63: #{tpu_custom_call.1} parent=1 // pred_check_branch
      %122 = sbr.rel (0) target = $region65
    $region64: #{tpu_custom_call.1} parent=1 // pred_region
      _
    $region65: #{tpu_custom_call.1} parent=1 // pred_fallthru
      _
    // Predicated region
    $region66: #{tpu_custom_call.1} parent=1 // pred_check
      _
    $region67: #{tpu_custom_call.1} parent=1 // pred_check_branch
      %124 = sbr.rel (0) target = $region69
    $region68: #{tpu_custom_call.1} parent=1 // pred_region
      _
    $region69: #{tpu_custom_call.1} parent=1 // pred_fallthru
      _
    // Predicated region
    $region70: #{tpu_custom_call.1} parent=1 // pred_check
      _
    $region71: #{tpu_custom_call.1} parent=1 // pred_check_branch
      %126 = sbr.rel (0) target = $region73
    $region72: #{tpu_custom_call.1} parent=1 // pred_region
      %127 = dma.done [#allocation7], 256
    $region73: #{tpu_custom_call.1} parent=1 // pred_fallthru
      _
    // Predicated region
    $region74: #{tpu_custom_call.1} parent=1 // pred_check
      _
    $region75: #{tpu_custom_call.1} parent=1 // pred_check_branch
      %129 = sbr.rel (0) target = $region77
    $region76: #{tpu_custom_call.1} parent=1 // pred_region
      %130 = dma.done [#allocation10], 64
    $region77: #{tpu_custom_call.1} parent=1 // pred_fallthru
      _
    // Predicated region
    $region78: #{tpu_custom_call.1} parent=1 // pred_check
      _
    $region79: #{tpu_custom_call.1} parent=1 // pred_check_branch
      %132 = sbr.rel (0) target = $region81
    $region80: #{tpu_custom_call.1} parent=1 // pred_region
      %133 = dma.done [#allocation10], 48
    $region81: #{tpu_custom_call.1} parent=1 // pred_fallthru
      _
    // Predicated region
    $region82: #{tpu_custom_call.1} parent=1 // pred_check
      _
    $region83: #{tpu_custom_call.1} parent=1 // pred_check_branch
      %135 = sbr.rel (0) target = $region85
    $region84: #{tpu_custom_call.1} parent=1 // pred_region
      %136 = dma.done [#allocation13], 64
    $region85: #{tpu_custom_call.1} parent=1 // pred_fallthru
      _
    // Predicated region
    $region86: #{tpu_custom_call.1} parent=1 // pred_check
      _
    $region87: #{tpu_custom_call.1} parent=1 // pred_check_branch
      %138 = sbr.rel (0) target = $region89
    $region88: #{tpu_custom_call.1} parent=1 // pred_region
      %139 = dma.done [#allocation13], 16
    $region89: #{tpu_custom_call.1} parent=1 // pred_fallthru
      _
    // Predicated region
    $region90: #{tpu_custom_call.1} parent=1 // pred_check
      _
    $region91: #{tpu_custom_call.1} parent=1 // pred_check_branch
      %141 = sbr.rel (0) target = $region93
    $region92: #{tpu_custom_call.1} parent=1 // pred_region
      %142 = dma.done [#allocation16], 16
    $region93: #{tpu_custom_call.1} parent=1 // pred_fallthru
      _
    // Predicated region
    $region94: #{tpu_custom_call.1} parent=1 // pred_check
      _
    $region95: #{tpu_custom_call.1} parent=1 // pred_check_branch
      %144 = sbr.rel (0) target = $region97
    $region96: #{tpu_custom_call.1} parent=1 // pred_region
      %145 = dma.done [#allocation16], 16
    $region97: #{tpu_custom_call.1} parent=1 // pred_fallthru
      _
    %v147 = vld [vmem:[#allocation9] sm:$0xf]
    %v148 = vld [vmem:[%s0] sm:$0xff]
    %v149 = vld [vmem:[%s0 + $0x8] sm:$0xff]
    %v150 = vpack.c.bf16 %v149, %v148
    %v151 = vld [vmem:[#allocation11] sm:$0x1]
    %v153 = vlaneseq
    %v154 = vshrl.u32 %v153, 7
    %v155 = vsub.s32 0, %v154
    %v156 = vrot.slane %v151, %v155
    %vm158 = vcmask 64512
    %v160 = vsel %vm158, %v150, 0
    %vm162 = vcmask 1043456
    %v164 = vsel %vm162, %v147, 0
    %166 = vmatprep.subr.bf16.mxu0 0
    %167 = vmatpush1.bf16.msra.mxu0 %v164
    %168 = vmatprep.subr.bf16.mxu0 0
    %169 = vmatpush1.bf16.msra.mxu0 0
    %170 = vmatprep.subr.bf16.mxu0 0
    %171 = vmatpush1.bf16.msra.mxu0 0
    %172 = vmatprep.subr.bf16.mxu0 0
    %173 = vmatpush1.bf16.msra.mxu0 0
    %174 = vmatprep.subr.bf16.mxu0 0
    %175 = vmatpush1.bf16.msra.mxu0 0
    %176 = vmatprep.subr.bf16.mxu0 0
    %177 = vmatpush1.bf16.msra.mxu0 0
    %178 = vmatprep.subr.bf16.mxu0 0
    %179 = vmatpush1.bf16.msra.mxu0 0
    %180 = vmatprep.subr.bf16.mxu0 0
    %181 = vmatpush1.bf16.msra.mxu0 0
    %182 = vmatprep.subr.bf16.mxu0 0
    %183 = vmatpush1.bf16.msra.mxu0 0
    %184 = vmatprep.subr.bf16.mxu0 0
    %185 = vmatpush1.bf16.msra.mxu0 0
    %186 = vmatprep.subr.bf16.mxu0 0
    %187 = vmatpush1.bf16.msra.mxu0 0
    %188 = vmatprep.subr.bf16.mxu0 0
    %189 = vmatpush1.bf16.msra.mxu0 0
    %190 = vmatprep.subr.bf16.mxu0 0
    %191 = vmatpush1.bf16.msra.mxu0 0
    %192 = vmatprep.subr.bf16.mxu0 0
    %193 = vmatpush1.bf16.msra.mxu0 0
    %194 = vmatprep.subr.bf16.mxu0 0
    %195 = vmatpush1.bf16.msra.mxu0 0
    %196 = vmatprep.subr.bf16.mxu0 0
    %197 = vmatpush1.bf16.msra.mxu0 0
    %198 = vmatprep.mubr.bf16.mxu0 0
    %199 = vmatmul.mubr.bf16.gmra.mrb[0].mxu0 %v160
    %v200 = vpop.f32.mrb[0].mxu0
    %v201 = vadd.f32 %v156, %v200
    %v202 = vpop.f32.mrb[0].mxu0
    %v203 = vpop.f32.mrb[0].mxu0
    %v204 = vadd.f32 %v156, %v203
    %v205 = vpop.f32.mrb[0].mxu0
    %206 = vdwg.mxu0
    %207 = vst [vmem:[#allocation3] sm:$0xff] %v201
    %208 = vst [vmem:[#allocation3 + $0x8] sm:$0xff] %v204
    %v209 = vld [vmem:[%s4] sm:$0xf]
    %v210 = vld [vmem:[%s4 + $0x4] sm:$0xf]
    %v211 = vld [vmem:[%s4 + $0x8] sm:$0xf]
    %v212 = vld [vmem:[%s4 + $0xc] sm:$0xf]
    %vm213 = vcmask 254976
    %214 = vst.msk [vmem:[#allocation4] sm:$0x3] %vm213, 0.0
    %215 = vst.msk [vmem:[#allocation5] sm:$0x3] %vm213, 0.0
    %v216 = vld [vmem:[#allocation3] sm:$0x3]
    %v217 = vld [vmem:[#allocation4] sm:$0x3]
    %v218 = vpack.c.bf16 %v217, %v217
    %v223 = vunpack.c.l.b16 %v209
    %v224 = vunpack.c.l.b16 %v210
    %v225 = vunpack.c.l.b16 %v211
    %v226 = vunpack.c.l.b16 %v212
    %v227 = vpack.c.b16 %v224, %v223
    %v228 = vpack.c.b16 %v226, %v225
    %vm231 = vcmask 261120
    %v233 = vsel %vm231, %v218, 0
    %235 = vmatprep.subr.bf16.mxu0 0
    %236 = vmatpush1.bf16.msra.mxu0 %v227
    %237 = vmatprep.subr.bf16.mxu0 0
    %238 = vmatpush1.bf16.msra.mxu0 %v228
    %239 = vmatprep.subr.bf16.mxu0 0
    %240 = vmatpush1.bf16.msra.mxu0 0
    %241 = vmatprep.subr.bf16.mxu0 0
    %242 = vmatpush1.bf16.msra.mxu0 0
    %243 = vmatprep.subr.bf16.mxu0 0
    %244 = vmatpush1.bf16.msra.mxu0 0
    %245 = vmatprep.subr.bf16.mxu0 0
    %246 = vmatpush1.bf16.msra.mxu0 0
    %247 = vmatprep.subr.bf16.mxu0 0
    %248 = vmatpush1.bf16.msra.mxu0 0
    %249 = vmatprep.subr.bf16.mxu0 0
    %250 = vmatpush1.bf16.msra.mxu0 0
    %251 = vmatprep.subr.bf16.mxu0 0
    %252 = vmatpush1.bf16.msra.mxu0 0
    %253 = vmatprep.subr.bf16.mxu0 0
    %254 = vmatpush1.bf16.msra.mxu0 0
    %255 = vmatprep.subr.bf16.mxu0 0
    %256 = vmatpush1.bf16.msra.mxu0 0
    %257 = vmatprep.subr.bf16.mxu0 0
    %258 = vmatpush1.bf16.msra.mxu0 0
    %259 = vmatprep.subr.bf16.mxu0 0
    %260 = vmatpush1.bf16.msra.mxu0 0
    %261 = vmatprep.subr.bf16.mxu0 0
    %262 = vmatpush1.bf16.msra.mxu0 0
    %263 = vmatprep.subr.bf16.mxu0 0
    %264 = vmatpush1.bf16.msra.mxu0 0
    %265 = vmatprep.subr.bf16.mxu0 0
    %266 = vmatpush1.bf16.msra.mxu0 0
    %267 = vmatprep.mubr.bf16.mxu0 0
    %268 = vmatmul.mubr.bf16.gmra.mrb[0].mxu0 %v233
    %v269 = vpop.f32.mrb[0].mxu0
    %v270 = vadd.f32 0.0, %v269
    %v271 = vpop.f32.mrb[0].mxu0
    %v272 = vpop.f32.mrb[0].mxu0
    %v273 = vpop.f32.mrb[0].mxu0
    %274 = vdwg.mxu0
    %v275 = vadd.f32 %v216, %v270
    %v276 = vxor.u32 %v275, 2147483648
    %v277 = vmul.f32 %v276, 1.442695
    %v278 = vpow.pop %v277
    %v279 = vadd.f32 %v278, 1.0
    %v280 = vrcp.pop %v279
    %v281 = vmul.f32 1.0, %v280
    %v282 = vtanh.pop %v275
    %v283 = vld [vmem:[#allocation5] sm:$0x3]
    %285 = vrot.lane.b32.xlu0 %v283, 32
    %v286 = vpop.permute.xlu0 %285
    %v288 = vmul.f32 %v281, %v286
    %290 = vrot.lane.b32.xlu0 %v282, 64
    %v291 = vpop.permute.xlu0 %290
    %v293 = vmul.f32 %v281, %v291
    %295 = vrot.lane.b32.xlu0 %v293, 32
    %v296 = vpop.permute.xlu0 %295
    %v298 = vadd.f32 %v288, %v296
    %v299 = vtanh.pop %v298
    %301 = vrot.lane.b32.xlu0 %v299, 64
    %v302 = vpop.permute.xlu0 %301
    %v304 = vmul.f32 %v281, %v302
    %306 = vrot.lane.b32.xlu0 %v298, 96
    %v307 = vpop.permute.xlu0 %306
    %309 = vst.msk [vmem:[#allocation5] sm:$0x3] %vm213, %v307
    %311 = vrot.lane.b32.xlu0 %v304, 32
    %v312 = vpop.permute.xlu0 %311
    %314 = vst.msk [vmem:[#allocation4] sm:$0x3] %vm213, %v312
    %315 = vst.msk [vmem:[#allocation2] sm:$0x3] %vm213, %v312
    %s316 = scalar_lea.vmem [#allocation3], 2
    %v317 = vld [vmem:[%s316] sm:$0x3]
    %v318 = vld [vmem:[#allocation4] sm:$0x3]
    %v319 = vpack.c.bf16 %v318, %v318
    %v321 = vsel %vm231, %v319, 0
    %323 = vmatprep.subr.bf16.mxu0 0
    %324 = vmatpush1.bf16.msra.mxu0 %v227
    %325 = vmatprep.subr.bf16.mxu0 0
    %326 = vmatpush1.bf16.msra.mxu0 %v228
    %327 = vmatprep.subr.bf16.mxu0 0
    %328 = vmatpush1.bf16.msra.mxu0 0
    %329 = vmatprep.subr.bf16.mxu0 0
    %330 = vmatpush1.bf16.msra.mxu0 0
    %331 = vmatprep.subr.bf16.mxu0 0
    %332 = vmatpush1.bf16.msra.mxu0 0
    %333 = vmatprep.subr.bf16.mxu0 0
    %334 = vmatpush1.bf16.msra.mxu0 0
    %335 = vmatprep.subr.bf16.mxu0 0
    %336 = vmatpush1.bf16.msra.mxu0 0
    %337 = vmatprep.subr.bf16.mxu0 0
    %338 = vmatpush1.bf16.msra.mxu0 0
    %339 = vmatprep.subr.bf16.mxu0 0
    %340 = vmatpush1.bf16.msra.mxu0 0
    %341 = vmatprep.subr.bf16.mxu0 0
    %342 = vmatpush1.bf16.msra.mxu0 0
    %343 = vmatprep.subr.bf16.mxu0 0
    %344 = vmatpush1.bf16.msra.mxu0 0
    %345 = vmatprep.subr.bf16.mxu0 0
    %346 = vmatpush1.bf16.msra.mxu0 0
    %347 = vmatprep.subr.bf16.mxu0 0
    %348 = vmatpush1.bf16.msra.mxu0 0
    %349 = vmatprep.subr.bf16.mxu0 0
    %350 = vmatpush1.bf16.msra.mxu0 0
    %351 = vmatprep.subr.bf16.mxu0 0
    %352 = vmatpush1.bf16.msra.mxu0 0
    %353 = vmatprep.subr.bf16.mxu0 0
    %354 = vmatpush1.bf16.msra.mxu0 0
    %355 = vmatprep.mubr.bf16.mxu0 0
    %356 = vmatmul.mubr.bf16.gmra.mrb[0].mxu0 %v321
    %v357 = vpop.f32.mrb[0].mxu0
    %v358 = vadd.f32 0.0, %v357
    %v359 = vpop.f32.mrb[0].mxu0
    %v360 = vpop.f32.mrb[0].mxu0
    %v361 = vpop.f32.mrb[0].mxu0
    %362 = vdwg.mxu0
    %v363 = vadd.f32 %v317, %v358
    %v364 = vxor.u32 %v363, 2147483648
    %v365 = vmul.f32 %v364, 1.442695
    %v366 = vpow.pop %v365
    %v367 = vadd.f32 %v366, 1.0
    %v368 = vrcp.pop %v367
    %v369 = vmul.f32 1.0, %v368
    %v370 = vtanh.pop %v363
    %v371 = vld [vmem:[#allocation5] sm:$0x3]
    %373 = vrot.lane.b32.xlu0 %v371, 32
    %v374 = vpop.permute.xlu0 %373
    %v376 = vmul.f32 %v369, %v374
    %378 = vrot.lane.b32.xlu0 %v370, 64
    %v379 = vpop.permute.xlu0 %378
    %v381 = vmul.f32 %v369, %v379
    %383 = vrot.lane.b32.xlu0 %v381, 32
    %v384 = vpop.permute.xlu0 %383
    %v386 = vadd.f32 %v376, %v384
    %v387 = vtanh.pop %v386
    %389 = vrot.lane.b32.xlu0 %v387, 64
    %v390 = vpop.permute.xlu0 %389
    %v392 = vmul.f32 %v369, %v390
    %394 = vrot.lane.b32.xlu0 %v386, 96
    %v395 = vpop.permute.xlu0 %394
    %397 = vst.msk [vmem:[#allocation5] sm:$0x3] %vm213, %v395
    %399 = vrot.lane.b32.xlu0 %v392, 32
    %v400 = vpop.permute.xlu0 %399
    %402 = vst.msk [vmem:[#allocation4] sm:$0x3] %vm213, %v400
    %s403 = scalar_lea.vmem [#allocation2], 2
    %404 = vst.msk [vmem:[%s403] sm:$0x3] %vm213, %v400
    %s405 = scalar_lea.vmem [#allocation3], 4
    %v406 = vld [vmem:[%s405] sm:$0x3]
    %v407 = vld [vmem:[#allocation4] sm:$0x3]
    %v408 = vpack.c.bf16 %v407, %v407
    %v410 = vsel %vm231, %v408, 0
    %412 = vmatprep.subr.bf16.mxu0 0
    %413 = vmatpush1.bf16.msra.mxu0 %v227
    %414 = vmatprep.subr.bf16.mxu0 0
    %415 = vmatpush1.bf16.msra.mxu0 %v228
    %416 = vmatprep.subr.bf16.mxu0 0
    %417 = vmatpush1.bf16.msra.mxu0 0
    %418 = vmatprep.subr.bf16.mxu0 0
    %419 = vmatpush1.bf16.msra.mxu0 0
    %420 = vmatprep.subr.bf16.mxu0 0
    %421 = vmatpush1.bf16.msra.mxu0 0
    %422 = vmatprep.subr.bf16.mxu0 0
    %423 = vmatpush1.bf16.msra.mxu0 0
    %424 = vmatprep.subr.bf16.mxu0 0
    %425 = vmatpush1.bf16.msra.mxu0 0
    %426 = vmatprep.subr.bf16.mxu0 0
    %427 = vmatpush1.bf16.msra.mxu0 0
    %428 = vmatprep.subr.bf16.mxu0 0
    %429 = vmatpush1.bf16.msra.mxu0 0
    %430 = vmatprep.subr.bf16.mxu0 0
    %431 = vmatpush1.bf16.msra.mxu0 0
    %432 = vmatprep.subr.bf16.mxu0 0
    %433 = vmatpush1.bf16.msra.mxu0 0
    %434 = vmatprep.subr.bf16.mxu0 0
    %435 = vmatpush1.bf16.msra.mxu0 0
    %436 = vmatprep.subr.bf16.mxu0 0
    %437 = vmatpush1.bf16.msra.mxu0 0
    %438 = vmatprep.subr.bf16.mxu0 0
    %439 = vmatpush1.bf16.msra.mxu0 0
    %440 = vmatprep.subr.bf16.mxu0 0
    %441 = vmatpush1.bf16.msra.mxu0 0
    %442 = vmatprep.subr.bf16.mxu0 0
    %443 = vmatpush1.bf16.msra.mxu0 0
    %444 = vmatprep.mubr.bf16.mxu0 0
    %445 = vmatmul.mubr.bf16.gmra.mrb[0].mxu0 %v410
    %v446 = vpop.f32.mrb[0].mxu0
    %v447 = vadd.f32 0.0, %v446
    %v448 = vpop.f32.mrb[0].mxu0
    %v449 = vpop.f32.mrb[0].mxu0
    %v450 = vpop.f32.mrb[0].mxu0
    %451 = vdwg.mxu0
    %v452 = vadd.f32 %v406, %v447
    %v453 = vxor.u32 %v452, 2147483648
    %v454 = vmul.f32 %v453, 1.442695
    %v455 = vpow.pop %v454
    %v456 = vadd.f32 %v455, 1.0
    %v457 = vrcp.pop %v456
    %v458 = vmul.f32 1.0, %v457
    %v459 = vtanh.pop %v452
    %v460 = vld [vmem:[#allocation5] sm:$0x3]
    %462 = vrot.lane.b32.xlu0 %v460, 32
    %v463 = vpop.permute.xlu0 %462
    %v465 = vmul.f32 %v458, %v463
    %467 = vrot.lane.b32.xlu0 %v459, 64
    %v468 = vpop.permute.xlu0 %467
    %v470 = vmul.f32 %v458, %v468
    %472 = vrot.lane.b32.xlu0 %v470, 32
    %v473 = vpop.permute.xlu0 %472
    %v475 = vadd.f32 %v465, %v473
    %v476 = vtanh.pop %v475
    %478 = vrot.lane.b32.xlu0 %v476, 64
    %v479 = vpop.permute.xlu0 %478
    %v481 = vmul.f32 %v458, %v479
    %483 = vrot.lane.b32.xlu0 %v475, 96
    %v484 = vpop.permute.xlu0 %483
    %486 = vst.msk [vmem:[#allocation5] sm:$0x3] %vm213, %v484
    %488 = vrot.lane.b32.xlu0 %v481, 32
    %v489 = vpop.permute.xlu0 %488
    %491 = vst.msk [vmem:[#allocation4] sm:$0x3] %vm213, %v489
    %s492 = scalar_lea.vmem [#allocation2], 4
    %493 = vst.msk [vmem:[%s492] sm:$0x3] %vm213, %v489
    %s494 = scalar_lea.vmem [#allocation3], 6
    %v495 = vld [vmem:[%s494] sm:$0x3]
    %v496 = vld [vmem:[#allocation4] sm:$0x3]
    %v497 = vpack.c.bf16 %v496, %v496
    %v499 = vsel %vm231, %v497, 0
    %501 = vmatprep.subr.bf16.mxu0 0
    %502 = vmatpush1.bf16.msra.mxu0 %v227
    %503 = vmatprep.subr.bf16.mxu0 0
    %504 = vmatpush1.bf16.msra.mxu0 %v228
    %505 = vmatprep.subr.bf16.mxu0 0
    %506 = vmatpush1.bf16.msra.mxu0 0
    %507 = vmatprep.subr.bf16.mxu0 0
    %508 = vmatpush1.bf16.msra.mxu0 0
    %509 = vmatprep.subr.bf16.mxu0 0
    %510 = vmatpush1.bf16.msra.mxu0 0
    %511 = vmatprep.subr.bf16.mxu0 0
    %512 = vmatpush1.bf16.msra.mxu0 0
    %513 = vmatprep.subr.bf16.mxu0 0
    %514 = vmatpush1.bf16.msra.mxu0 0
    %515 = vmatprep.subr.bf16.mxu0 0
    %516 = vmatpush1.bf16.msra.mxu0 0
    %517 = vmatprep.subr.bf16.mxu0 0
    %518 = vmatpush1.bf16.msra.mxu0 0
    %519 = vmatprep.subr.bf16.mxu0 0
    %520 = vmatpush1.bf16.msra.mxu0 0
    %521 = vmatprep.subr.bf16.mxu0 0
    %522 = vmatpush1.bf16.msra.mxu0 0
    %523 = vmatprep.subr.bf16.mxu0 0
    %524 = vmatpush1.bf16.msra.mxu0 0
    %525 = vmatprep.subr.bf16.mxu0 0
    %526 = vmatpush1.bf16.msra.mxu0 0
    %527 = vmatprep.subr.bf16.mxu0 0
    %528 = vmatpush1.bf16.msra.mxu0 0
    %529 = vmatprep.subr.bf16.mxu0 0
    %530 = vmatpush1.bf16.msra.mxu0 0
    %531 = vmatprep.subr.bf16.mxu0 0
    %532 = vmatpush1.bf16.msra.mxu0 0
    %533 = vmatprep.mubr.bf16.mxu0 0
    %534 = vmatmul.mubr.bf16.gmra.mrb[0].mxu0 %v499
    %v535 = vpop.f32.mrb[0].mxu0
    %v536 = vadd.f32 0.0, %v535
    %v537 = vpop.f32.mrb[0].mxu0
    %v538 = vpop.f32.mrb[0].mxu0
    %v539 = vpop.f32.mrb[0].mxu0
    %540 = vdwg.mxu0
    %v541 = vadd.f32 %v495, %v536
    %v542 = vxor.u32 %v541, 2147483648
    %v543 = vmul.f32 %v542, 1.442695
    %v544 = vpow.pop %v543
    %v545 = vadd.f32 %v544, 1.0
    %v546 = vrcp.pop %v545
    %v547 = vmul.f32 1.0, %v546
    %v548 = vtanh.pop %v541
    %v549 = vld [vmem:[#allocation5] sm:$0x3]
    %551 = vrot.lane.b32.xlu0 %v549, 32
    %v552 = vpop.permute.xlu0 %551
    %v554 = vmul.f32 %v547, %v552
    %556 = vrot.lane.b32.xlu0 %v548, 64
    %v557 = vpop.permute.xlu0 %556
    %v559 = vmul.f32 %v547, %v557
    %561 = vrot.lane.b32.xlu0 %v559, 32
    %v562 = vpop.permute.xlu0 %561
    %v564 = vadd.f32 %v554, %v562
    %v565 = vtanh.pop %v564
    %567 = vrot.lane.b32.xlu0 %v565, 64
    %v568 = vpop.permute.xlu0 %567
    %v570 = vmul.f32 %v547, %v568
    %572 = vrot.lane.b32.xlu0 %v564, 96
    %v573 = vpop.permute.xlu0 %572
    %575 = vst.msk [vmem:[#allocation5] sm:$0x3] %vm213, %v573
    %577 = vrot.lane.b32.xlu0 %v570, 32
    %v578 = vpop.permute.xlu0 %577
    %580 = vst.msk [vmem:[#allocation4] sm:$0x3] %vm213, %v578
    %s581 = scalar_lea.vmem [#allocation2], 6
    %582 = vst.msk [vmem:[%s581] sm:$0x3] %vm213, %v578
    %s583 = scalar_lea.vmem [#allocation3], 8
    %v584 = vld [vmem:[%s583] sm:$0x3]
    %v585 = vld [vmem:[#allocation4] sm:$0x3]
    %v586 = vpack.c.bf16 %v585, %v585
    %v588 = vsel %vm231, %v586, 0
    %590 = vmatprep.subr.bf16.mxu0 0
    %591 = vmatpush1.bf16.msra.mxu0 %v227
    %592 = vmatprep.subr.bf16.mxu0 0
    %593 = vmatpush1.bf16.msra.mxu0 %v228
    %594 = vmatprep.subr.bf16.mxu0 0
    %595 = vmatpush1.bf16.msra.mxu0 0
    %596 = vmatprep.subr.bf16.mxu0 0
    %597 = vmatpush1.bf16.msra.mxu0 0
    %598 = vmatprep.subr.bf16.mxu0 0
    %599 = vmatpush1.bf16.msra.mxu0 0
    %600 = vmatprep.subr.bf16.mxu0 0
    %601 = vmatpush1.bf16.msra.mxu0 0
    %602 = vmatprep.subr.bf16.mxu0 0
    %603 = vmatpush1.bf16.msra.mxu0 0
    %604 = vmatprep.subr.bf16.mxu0 0
    %605 = vmatpush1.bf16.msra.mxu0 0
    %606 = vmatprep.subr.bf16.mxu0 0
    %607 = vmatpush1.bf16.msra.mxu0 0
    %608 = vmatprep.subr.bf16.mxu0 0
    %609 = vmatpush1.bf16.msra.mxu0 0
    %610 = vmatprep.subr.bf16.mxu0 0
    %611 = vmatpush1.bf16.msra.mxu0 0
    %612 = vmatprep.subr.bf16.mxu0 0
    %613 = vmatpush1.bf16.msra.mxu0 0
    %614 = vmatprep.subr.bf16.mxu0 0
    %615 = vmatpush1.bf16.msra.mxu0 0
    %616 = vmatprep.subr.bf16.mxu0 0
    %617 = vmatpush1.bf16.msra.mxu0 0
    %618 = vmatprep.subr.bf16.mxu0 0
    %619 = vmatpush1.bf16.msra.mxu0 0
    %620 = vmatprep.subr.bf16.mxu0 0
    %621 = vmatpush1.bf16.msra.mxu0 0
    %622 = vmatprep.mubr.bf16.mxu0 0
    %623 = vmatmul.mubr.bf16.gmra.mrb[0].mxu0 %v588
    %v624 = vpop.f32.mrb[0].mxu0
    %v625 = vadd.f32 0.0, %v624
    %v626 = vpop.f32.mrb[0].mxu0
    %v627 = vpop.f32.mrb[0].mxu0
    %v628 = vpop.f32.mrb[0].mxu0
    %629 = vdwg.mxu0
    %v630 = vadd.f32 %v584, %v625
    %v631 = vxor.u32 %v630, 2147483648
    %v632 = vmul.f32 %v631, 1.442695
    %v633 = vpow.pop %v632
    %v634 = vadd.f32 %v633, 1.0
    %v635 = vrcp.pop %v634
    %v636 = vmul.f32 1.0, %v635
    %v637 = vtanh.pop %v630
    %v638 = vld [vmem:[#allocation5] sm:$0x3]
    %640 = vrot.lane.b32.xlu0 %v638, 32
    %v641 = vpop.permute.xlu0 %640
    %v643 = vmul.f32 %v636, %v641
    %645 = vrot.lane.b32.xlu0 %v637, 64
    %v646 = vpop.permute.xlu0 %645
    %v648 = vmul.f32 %v636, %v646
    %650 = vrot.lane.b32.xlu0 %v648, 32
    %v651 = vpop.permute.xlu0 %650
    %v653 = vadd.f32 %v643, %v651
    %v654 = vtanh.pop %v653
    %656 = vrot.lane.b32.xlu0 %v654, 64
    %v657 = vpop.permute.xlu0 %656
    %v659 = vmul.f32 %v636, %v657
    %661 = vrot.lane.b32.xlu0 %v653, 96
    %v662 = vpop.permute.xlu0 %661
    %664 = vst.msk [vmem:[#allocation5] sm:$0x3] %vm213, %v662
    %666 = vrot.lane.b32.xlu0 %v659, 32
    %v667 = vpop.permute.xlu0 %666
    %669 = vst.msk [vmem:[#allocation4] sm:$0x3] %vm213, %v667
    %s670 = scalar_lea.vmem [#allocation2], 8
    %671 = vst.msk [vmem:[%s670] sm:$0x3] %vm213, %v667
    %s672 = scalar_lea.vmem [#allocation3], 10
    %v673 = vld [vmem:[%s672] sm:$0x3]
    %v674 = vld [vmem:[#allocation4] sm:$0x3]
    %v675 = vpack.c.bf16 %v674, %v674
    %v677 = vsel %vm231, %v675, 0
    %679 = vmatprep.subr.bf16.mxu0 0
    %680 = vmatpush1.bf16.msra.mxu0 %v227
    %681 = vmatprep.subr.bf16.mxu0 0
    %682 = vmatpush1.bf16.msra.mxu0 %v228
    %683 = vmatprep.subr.bf16.mxu0 0
    %684 = vmatpush1.bf16.msra.mxu0 0
    %685 = vmatprep.subr.bf16.mxu0 0
    %686 = vmatpush1.bf16.msra.mxu0 0
    %687 = vmatprep.subr.bf16.mxu0 0
    %688 = vmatpush1.bf16.msra.mxu0 0
    %689 = vmatprep.subr.bf16.mxu0 0
    %690 = vmatpush1.bf16.msra.mxu0 0
    %691 = vmatprep.subr.bf16.mxu0 0
    %692 = vmatpush1.bf16.msra.mxu0 0
    %693 = vmatprep.subr.bf16.mxu0 0
    %694 = vmatpush1.bf16.msra.mxu0 0
    %695 = vmatprep.subr.bf16.mxu0 0
    %696 = vmatpush1.bf16.msra.mxu0 0
    %697 = vmatprep.subr.bf16.mxu0 0
    %698 = vmatpush1.bf16.msra.mxu0 0
    %699 = vmatprep.subr.bf16.mxu0 0
    %700 = vmatpush1.bf16.msra.mxu0 0
    %701 = vmatprep.subr.bf16.mxu0 0
    %702 = vmatpush1.bf16.msra.mxu0 0
    %703 = vmatprep.subr.bf16.mxu0 0
    %704 = vmatpush1.bf16.msra.mxu0 0
    %705 = vmatprep.subr.bf16.mxu0 0
    %706 = vmatpush1.bf16.msra.mxu0 0
    %707 = vmatprep.subr.bf16.mxu0 0
    %708 = vmatpush1.bf16.msra.mxu0 0
    %709 = vmatprep.subr.bf16.mxu0 0
    %710 = vmatpush1.bf16.msra.mxu0 0
    %711 = vmatprep.mubr.bf16.mxu0 0
    %712 = vmatmul.mubr.bf16.gmra.mrb[0].mxu0 %v677
    %v713 = vpop.f32.mrb[0].mxu0
    %v714 = vadd.f32 0.0, %v713
    %v715 = vpop.f32.mrb[0].mxu0
    %v716 = vpop.f32.mrb[0].mxu0
    %v717 = vpop.f32.mrb[0].mxu0
    %718 = vdwg.mxu0
    %v719 = vadd.f32 %v673, %v714
    %v720 = vxor.u32 %v719, 2147483648
    %v721 = vmul.f32 %v720, 1.442695
    %v722 = vpow.pop %v721
    %v723 = vadd.f32 %v722, 1.0
    %v724 = vrcp.pop %v723
    %v725 = vmul.f32 1.0, %v724
    %v726 = vtanh.pop %v719
    %v727 = vld [vmem:[#allocation5] sm:$0x3]
    %729 = vrot.lane.b32.xlu0 %v727, 32
    %v730 = vpop.permute.xlu0 %729
    %v732 = vmul.f32 %v725, %v730
    %734 = vrot.lane.b32.xlu0 %v726, 64
    %v735 = vpop.permute.xlu0 %734
    %v737 = vmul.f32 %v725, %v735
    %739 = vrot.lane.b32.xlu0 %v737, 32
    %v740 = vpop.permute.xlu0 %739
    %v742 = vadd.f32 %v732, %v740
    %v743 = vtanh.pop %v742
    %745 = vrot.lane.b32.xlu0 %v743, 64
    %v746 = vpop.permute.xlu0 %745
    %v748 = vmul.f32 %v725, %v746
    %750 = vrot.lane.b32.xlu0 %v742, 96
    %v751 = vpop.permute.xlu0 %750
    %753 = vst.msk [vmem:[#allocation5] sm:$0x3] %vm213, %v751
    %755 = vrot.lane.b32.xlu0 %v748, 32
    %v756 = vpop.permute.xlu0 %755
    %758 = vst.msk [vmem:[#allocation4] sm:$0x3] %vm213, %v756
    %s759 = scalar_lea.vmem [#allocation2], 10
    %760 = vst.msk [vmem:[%s759] sm:$0x3] %vm213, %v756
    %s761 = scalar_lea.vmem [#allocation3], 12
    %v762 = vld [vmem:[%s761] sm:$0x3]
    %v763 = vld [vmem:[#allocation4] sm:$0x3]
    %v764 = vpack.c.bf16 %v763, %v763
    %v766 = vsel %vm231, %v764, 0
    %768 = vmatprep.subr.bf16.mxu0 0
    %769 = vmatpush1.bf16.msra.mxu0 %v227
    %770 = vmatprep.subr.bf16.mxu0 0
    %771 = vmatpush1.bf16.msra.mxu0 %v228
    %772 = vmatprep.subr.bf16.mxu0 0
    %773 = vmatpush1.bf16.msra.mxu0 0
    %774 = vmatprep.subr.bf16.mxu0 0
    %775 = vmatpush1.bf16.msra.mxu0 0
    %776 = vmatprep.subr.bf16.mxu0 0
    %777 = vmatpush1.bf16.msra.mxu0 0
    %778 = vmatprep.subr.bf16.mxu0 0
    %779 = vmatpush1.bf16.msra.mxu0 0
    %780 = vmatprep.subr.bf16.mxu0 0
    %781 = vmatpush1.bf16.msra.mxu0 0
    %782 = vmatprep.subr.bf16.mxu0 0
    %783 = vmatpush1.bf16.msra.mxu0 0
    %784 = vmatprep.subr.bf16.mxu0 0
    %785 = vmatpush1.bf16.msra.mxu0 0
    %786 = vmatprep.subr.bf16.mxu0 0
    %787 = vmatpush1.bf16.msra.mxu0 0
    %788 = vmatprep.subr.bf16.mxu0 0
    %789 = vmatpush1.bf16.msra.mxu0 0
    %790 = vmatprep.subr.bf16.mxu0 0
    %791 = vmatpush1.bf16.msra.mxu0 0
    %792 = vmatprep.subr.bf16.mxu0 0
    %793 = vmatpush1.bf16.msra.mxu0 0
    %794 = vmatprep.subr.bf16.mxu0 0
    %795 = vmatpush1.bf16.msra.mxu0 0
    %796 = vmatprep.subr.bf16.mxu0 0
    %797 = vmatpush1.bf16.msra.mxu0 0
    %798 = vmatprep.subr.bf16.mxu0 0
    %799 = vmatpush1.bf16.msra.mxu0 0
    %800 = vmatprep.mubr.bf16.mxu0 0
    %801 = vmatmul.mubr.bf16.gmra.mrb[0].mxu0 %v766
    %v802 = vpop.f32.mrb[0].mxu0
    %v803 = vadd.f32 0.0, %v802
    %v804 = vpop.f32.mrb[0].mxu0
    %v805 = vpop.f32.mrb[0].mxu0
    %v806 = vpop.f32.mrb[0].mxu0
    %807 = vdwg.mxu0
    %v808 = vadd.f32 %v762, %v803
    %v809 = vxor.u32 %v808, 2147483648
    %v810 = vmul.f32 %v809, 1.442695
    %v811 = vpow.pop %v810
    %v812 = vadd.f32 %v811, 1.0
    %v813 = vrcp.pop %v812
    %v814 = vmul.f32 1.0, %v813
    %v815 = vtanh.pop %v808
    %v816 = vld [vmem:[#allocation5] sm:$0x3]
    %818 = vrot.lane.b32.xlu0 %v816, 32
    %v819 = vpop.permute.xlu0 %818
    %v821 = vmul.f32 %v814, %v819
    %823 = vrot.lane.b32.xlu0 %v815, 64
    %v824 = vpop.permute.xlu0 %823
    %v826 = vmul.f32 %v814, %v824
    %828 = vrot.lane.b32.xlu0 %v826, 32
    %v829 = vpop.permute.xlu0 %828
    %v831 = vadd.f32 %v821, %v829
    %v832 = vtanh.pop %v831
    %834 = vrot.lane.b32.xlu0 %v832, 64
    %v835 = vpop.permute.xlu0 %834
    %v837 = vmul.f32 %v814, %v835
    %839 = vrot.lane.b32.xlu0 %v831, 96
    %v840 = vpop.permute.xlu0 %839
    %842 = vst.msk [vmem:[#allocation5] sm:$0x3] %vm213, %v840
    %844 = vrot.lane.b32.xlu0 %v837, 32
    %v845 = vpop.permute.xlu0 %844
    %847 = vst.msk [vmem:[#allocation4] sm:$0x3] %vm213, %v845
    %s848 = scalar_lea.vmem [#allocation2], 12
    %849 = vst.msk [vmem:[%s848] sm:$0x3] %vm213, %v845
    %s850 = scalar_lea.vmem [#allocation3], 14
    %v851 = vld [vmem:[%s850] sm:$0x3]
    %v852 = vld [vmem:[#allocation4] sm:$0x3]
    %v853 = vpack.c.bf16 %v852, %v852
    %v855 = vsel %vm231, %v853, 0
    %857 = vmatprep.subr.bf16.mxu0 0
    %858 = vmatpush1.bf16.msra.mxu0 %v227
    %859 = vmatprep.subr.bf16.mxu0 0
    %860 = vmatpush1.bf16.msra.mxu0 %v228
    %861 = vmatprep.subr.bf16.mxu0 0
    %862 = vmatpush1.bf16.msra.mxu0 0
    %863 = vmatprep.subr.bf16.mxu0 0
    %864 = vmatpush1.bf16.msra.mxu0 0
    %865 = vmatprep.subr.bf16.mxu0 0
    %866 = vmatpush1.bf16.msra.mxu0 0
    %867 = vmatprep.subr.bf16.mxu0 0
    %868 = vmatpush1.bf16.msra.mxu0 0
    %869 = vmatprep.subr.bf16.mxu0 0
    %870 = vmatpush1.bf16.msra.mxu0 0
    %871 = vmatprep.subr.bf16.mxu0 0
    %872 = vmatpush1.bf16.msra.mxu0 0
    %873 = vmatprep.subr.bf16.mxu0 0
    %874 = vmatpush1.bf16.msra.mxu0 0
    %875 = vmatprep.subr.bf16.mxu0 0
    %876 = vmatpush1.bf16.msra.mxu0 0
    %877 = vmatprep.subr.bf16.mxu0 0
    %878 = vmatpush1.bf16.msra.mxu0 0
    %879 = vmatprep.subr.bf16.mxu0 0
    %880 = vmatpush1.bf16.msra.mxu0 0
    %881 = vmatprep.subr.bf16.mxu0 0
    %882 = vmatpush1.bf16.msra.mxu0 0
    %883 = vmatprep.subr.bf16.mxu0 0
    %884 = vmatpush1.bf16.msra.mxu0 0
    %885 = vmatprep.subr.bf16.mxu0 0
    %886 = vmatpush1.bf16.msra.mxu0 0
    %887 = vmatprep.subr.bf16.mxu0 0
    %888 = vmatpush1.bf16.msra.mxu0 0
    %889 = vmatprep.mubr.bf16.mxu0 0
    %890 = vmatmul.mubr.bf16.gmra.mrb[0].mxu0 %v855
    %v891 = vpop.f32.mrb[0].mxu0
    %v892 = vadd.f32 0.0, %v891
    %v893 = vpop.f32.mrb[0].mxu0
    %v894 = vpop.f32.mrb[0].mxu0
    %v895 = vpop.f32.mrb[0].mxu0
    %896 = vdwg.mxu0
    %v897 = vadd.f32 %v851, %v892
    %v898 = vxor.u32 %v897, 2147483648
    %v899 = vmul.f32 %v898, 1.442695
    %v900 = vpow.pop %v899
    %v901 = vadd.f32 %v900, 1.0
    %v902 = vrcp.pop %v901
    %v903 = vmul.f32 1.0, %v902
    %v904 = vtanh.pop %v897
    %v905 = vld [vmem:[#allocation5] sm:$0x3]
    %907 = vrot.lane.b32.xlu0 %v905, 32
    %v908 = vpop.permute.xlu0 %907
    %v910 = vmul.f32 %v903, %v908
    %912 = vrot.lane.b32.xlu0 %v904, 64
    %v913 = vpop.permute.xlu0 %912
    %v915 = vmul.f32 %v903, %v913
    %917 = vrot.lane.b32.xlu0 %v915, 32
    %v918 = vpop.permute.xlu0 %917
    %v920 = vadd.f32 %v910, %v918
    %v921 = vtanh.pop %v920
    %923 = vrot.lane.b32.xlu0 %v921, 64
    %v924 = vpop.permute.xlu0 %923
    %v926 = vmul.f32 %v903, %v924
    %928 = vrot.lane.b32.xlu0 %v920, 96
    %v929 = vpop.permute.xlu0 %928
    %931 = vst.msk [vmem:[#allocation5] sm:$0x3] %vm213, %v929
    %933 = vrot.lane.b32.xlu0 %v926, 32
    %v934 = vpop.permute.xlu0 %933
    %936 = vst.msk [vmem:[#allocation4] sm:$0x3] %vm213, %v934
    %s937 = scalar_lea.vmem [#allocation2], 14
    %938 = vst.msk [vmem:[%s937] sm:$0x3] %vm213, %v934
    %v939 = vld [vmem:[#allocation4] sm:$0x3]
    %940 = vst.msk [vmem:[#allocation19] sm:$0x3] %vm213, %v939
    %v941 = vld [vmem:[#allocation5] sm:$0x3]
    %942 = vst.msk [vmem:[#allocation21] sm:$0x3] %vm213, %v941
    %v943 = vld [vmem:[%s3] sm:$0xf]
    %v944 = vld [vmem:[%s3 + $0x4] sm:$0xf]
    %v945 = vld [vmem:[%s3 + $0x8] sm:$0xf]
    %v946 = vld [vmem:[%s3 + $0xc] sm:$0xf]
    %v947 = vld [vmem:[#allocation2] sm:$0xff]
    %v948 = vld [vmem:[#allocation2 + $0x8] sm:$0xff]
    %v949 = vpack.c.bf16 %v948, %v947
    %s950 = scalar_lea.vmem [#allocation11], 1
    %v951 = vld [vmem:[%s950] sm:$0x1]
    %v953 = vlaneseq
    %v954 = vshrl.u32 %v953, 7
    %v955 = vsub.s32 0, %v954
    %v956 = vrot.slane %v951, %v955
    %v962 = vunpack.c.l.b16 %v943
    %v963 = vunpack.c.l.b16 %v944
    %v964 = vunpack.c.l.b16 %v945
    %v965 = vunpack.c.l.b16 %v946
    %v966 = vpack.c.b16 %v963, %v962
    %v967 = vpack.c.b16 %v965, %v964
    %v971 = vsel %vm231, %v949, 0
    %973 = vmatprep.subr.bf16.mxu0 0
    %974 = vmatpush1.bf16.msra.mxu0 %v966
    %975 = vmatprep.subr.bf16.mxu0 0
    %976 = vmatpush1.bf16.msra.mxu0 %v967
    %977 = vmatprep.subr.bf16.mxu0 0
    %978 = vmatpush1.bf16.msra.mxu0 0
    %979 = vmatprep.subr.bf16.mxu0 0
    %980 = vmatpush1.bf16.msra.mxu0 0
    %981 = vmatprep.subr.bf16.mxu0 0
    %982 = vmatpush1.bf16.msra.mxu0 0
    %983 = vmatprep.subr.bf16.mxu0 0
    %984 = vmatpush1.bf16.msra.mxu0 0
    %985 = vmatprep.subr.bf16.mxu0 0
    %986 = vmatpush1.bf16.msra.mxu0 0
    %987 = vmatprep.subr.bf16.mxu0 0
    %988 = vmatpush1.bf16.msra.mxu0 0
    %989 = vmatprep.subr.bf16.mxu0 0
    %990 = vmatpush1.bf16.msra.mxu0 0
    %991 = vmatprep.subr.bf16.mxu0 0
    %992 = vmatpush1.bf16.msra.mxu0 0
    %993 = vmatprep.subr.bf16.mxu0 0
    %994 = vmatpush1.bf16.msra.mxu0 0
    %995 = vmatprep.subr.bf16.mxu0 0
    %996 = vmatpush1.bf16.msra.mxu0 0
    %997 = vmatprep.subr.bf16.mxu0 0
    %998 = vmatpush1.bf16.msra.mxu0 0
    %999 = vmatprep.subr.bf16.mxu0 0
    %1000 = vmatpush1.bf16.msra.mxu0 0
    %1001 = vmatprep.subr.bf16.mxu0 0
    %1002 = vmatpush1.bf16.msra.mxu0 0
    %1003 = vmatprep.subr.bf16.mxu0 0
    %1004 = vmatpush1.bf16.msra.mxu0 0
    %1005 = vmatprep.mubr.bf16.mxu0 0
    %1006 = vmatmul.mubr.bf16.gmra.mrb[0].mxu0 %v971
    %v1007 = vpop.f32.mrb[0].mxu0
    %v1008 = vadd.f32 %v956, %v1007
    %v1009 = vpop.f32.mrb[0].mxu0
    %v1010 = vpop.f32.mrb[0].mxu0
    %v1011 = vadd.f32 %v956, %v1010
    %v1012 = vpop.f32.mrb[0].mxu0
    %1013 = vdwg.mxu0
    %1014 = vst [vmem:[#allocation3] sm:$0xff] %v1008
    %1015 = vst [vmem:[#allocation3 + $0x8] sm:$0xff] %v1011
    %s1016 = scalar_lea.vmem %s4, 16
    %v1017 = vld [vmem:[%s1016] sm:$0xf]
    %v1018 = vld [vmem:[%s1016 + $0x4] sm:$0xf]
    %v1019 = vld [vmem:[%s1016 + $0x8] sm:$0xf]
    %v1020 = vld [vmem:[%s1016 + $0xc] sm:$0xf]
    %1021 = vst.msk [vmem:[#allocation4] sm:$0x3] %vm213, 0.0
    %1022 = vst.msk [vmem:[#allocation5] sm:$0x3] %vm213, 0.0
    %v1023 = vld [vmem:[#allocation3] sm:$0x3]
    %v1024 = vld [vmem:[#allocation4] sm:$0x3]
    %v1025 = vpack.c.bf16 %v1024, %v1024
    %v1030 = vunpack.c.l.b16 %v1017
    %v1031 = vunpack.c.l.b16 %v1018
    %v1032 = vunpack.c.l.b16 %v1019
    %v1033 = vunpack.c.l.b16 %v1020
    %v1034 = vpack.c.b16 %v1031, %v1030
    %v1035 = vpack.c.b16 %v1033, %v1032
    %v1039 = vsel %vm231, %v1025, 0
    %1041 = vmatprep.subr.bf16.mxu0 0
    %1042 = vmatpush1.bf16.msra.mxu0 %v1034
    %1043 = vmatprep.subr.bf16.mxu0 0
    %1044 = vmatpush1.bf16.msra.mxu0 %v1035
    %1045 = vmatprep.subr.bf16.mxu0 0
    %1046 = vmatpush1.bf16.msra.mxu0 0
    %1047 = vmatprep.subr.bf16.mxu0 0
    %1048 = vmatpush1.bf16.msra.mxu0 0
    %1049 = vmatprep.subr.bf16.mxu0 0
    %1050 = vmatpush1.bf16.msra.mxu0 0
    %1051 = vmatprep.subr.bf16.mxu0 0
    %1052 = vmatpush1.bf16.msra.mxu0 0
    %1053 = vmatprep.subr.bf16.mxu0 0
    %1054 = vmatpush1.bf16.msra.mxu0 0
    %1055 = vmatprep.subr.bf16.mxu0 0
    %1056 = vmatpush1.bf16.msra.mxu0 0
    %1057 = vmatprep.subr.bf16.mxu0 0
    %1058 = vmatpush1.bf16.msra.mxu0 0
    %1059 = vmatprep.subr.bf16.mxu0 0
    %1060 = vmatpush1.bf16.msra.mxu0 0
    %1061 = vmatprep.subr.bf16.mxu0 0
    %1062 = vmatpush1.bf16.msra.mxu0 0
    %1063 = vmatprep.subr.bf16.mxu0 0
    %1064 = vmatpush1.bf16.msra.mxu0 0
    %1065 = vmatprep.subr.bf16.mxu0 0
    %1066 = vmatpush1.bf16.msra.mxu0 0
    %1067 = vmatprep.subr.bf16.mxu0 0
    %1068 = vmatpush1.bf16.msra.mxu0 0
    %1069 = vmatprep.subr.bf16.mxu0 0
    %1070 = vmatpush1.bf16.msra.mxu0 0
    %1071 = vmatprep.subr.bf16.mxu0 0
    %1072 = vmatpush1.bf16.msra.mxu0 0
    %1073 = vmatprep.mubr.bf16.mxu0 0
    %1074 = vmatmul.mubr.bf16.gmra.mrb[0].mxu0 %v1039
    %v1075 = vpop.f32.mrb[0].mxu0
    %v1076 = vadd.f32 0.0, %v1075
    %v1077 = vpop.f32.mrb[0].mxu0
    %v1078 = vpop.f32.mrb[0].mxu0
    %v1079 = vpop.f32.mrb[0].mxu0
    %1080 = vdwg.mxu0
    %v1081 = vadd.f32 %v1023, %v1076
    %v1082 = vxor.u32 %v1081, 2147483648
    %v1083 = vmul.f32 %v1082, 1.442695
    %v1084 = vpow.pop %v1083
    %v1085 = vadd.f32 %v1084, 1.0
    %v1086 = vrcp.pop %v1085
    %v1087 = vmul.f32 1.0, %v1086
    %v1088 = vtanh.pop %v1081
    %v1089 = vld [vmem:[#allocation5] sm:$0x3]
    %1091 = vrot.lane.b32.xlu0 %v1089, 32
    %v1092 = vpop.permute.xlu0 %1091
    %v1094 = vmul.f32 %v1087, %v1092
    %1096 = vrot.lane.b32.xlu0 %v1088, 64
    %v1097 = vpop.permute.xlu0 %1096
    %v1099 = vmul.f32 %v1087, %v1097
    %1101 = vrot.lane.b32.xlu0 %v1099, 32
    %v1102 = vpop.permute.xlu0 %1101
    %v1104 = vadd.f32 %v1094, %v1102
    %v1105 = vtanh.pop %v1104
    %1107 = vrot.lane.b32.xlu0 %v1105, 64
    %v1108 = vpop.permute.xlu0 %1107
    %v1110 = vmul.f32 %v1087, %v1108
    %1112 = vrot.lane.b32.xlu0 %v1104, 96
    %v1113 = vpop.permute.xlu0 %1112
    %1115 = vst.msk [vmem:[#allocation5] sm:$0x3] %vm213, %v1113
    %1117 = vrot.lane.b32.xlu0 %v1110, 32
    %v1118 = vpop.permute.xlu0 %1117
    %1120 = vst.msk [vmem:[#allocation4] sm:$0x3] %vm213, %v1118
    %1121 = vst.msk [vmem:[#allocation2] sm:$0x3] %vm213, %v1118
    %v1122 = vld [vmem:[%s316] sm:$0x3]
    %v1123 = vld [vmem:[#allocation4] sm:$0x3]
    %v1124 = vpack.c.bf16 %v1123, %v1123
    %v1126 = vsel %vm231, %v1124, 0
    %1128 = vmatprep.subr.bf16.mxu0 0
    %1129 = vmatpush1.bf16.msra.mxu0 %v1034
    %1130 = vmatprep.subr.bf16.mxu0 0
    %1131 = vmatpush1.bf16.msra.mxu0 %v1035
    %1132 = vmatprep.subr.bf16.mxu0 0
    %1133 = vmatpush1.bf16.msra.mxu0 0
    %1134 = vmatprep.subr.bf16.mxu0 0
    %1135 = vmatpush1.bf16.msra.mxu0 0
    %1136 = vmatprep.subr.bf16.mxu0 0
    %1137 = vmatpush1.bf16.msra.mxu0 0
    %1138 = vmatprep.subr.bf16.mxu0 0
    %1139 = vmatpush1.bf16.msra.mxu0 0
    %1140 = vmatprep.subr.bf16.mxu0 0
    %1141 = vmatpush1.bf16.msra.mxu0 0
    %1142 = vmatprep.subr.bf16.mxu0 0
    %1143 = vmatpush1.bf16.msra.mxu0 0
    %1144 = vmatprep.subr.bf16.mxu0 0
    %1145 = vmatpush1.bf16.msra.mxu0 0
    %1146 = vmatprep.subr.bf16.mxu0 0
    %1147 = vmatpush1.bf16.msra.mxu0 0
    %1148 = vmatprep.subr.bf16.mxu0 0
    %1149 = vmatpush1.bf16.msra.mxu0 0
    %1150 = vmatprep.subr.bf16.mxu0 0
    %1151 = vmatpush1.bf16.msra.mxu0 0
    %1152 = vmatprep.subr.bf16.mxu0 0
    %1153 = vmatpush1.bf16.msra.mxu0 0
    %1154 = vmatprep.subr.bf16.mxu0 0
    %1155 = vmatpush1.bf16.msra.mxu0 0
    %1156 = vmatprep.subr.bf16.mxu0 0
    %1157 = vmatpush1.bf16.msra.mxu0 0
    %1158 = vmatprep.subr.bf16.mxu0 0
    %1159 = vmatpush1.bf16.msra.mxu0 0
    %1160 = vmatprep.mubr.bf16.mxu0 0
    %1161 = vmatmul.mubr.bf16.gmra.mrb[0].mxu0 %v1126
    %v1162 = vpop.f32.mrb[0].mxu0
    %v1163 = vadd.f32 0.0, %v1162
    %v1164 = vpop.f32.mrb[0].mxu0
    %v1165 = vpop.f32.mrb[0].mxu0
    %v1166 = vpop.f32.mrb[0].mxu0
    %1167 = vdwg.mxu0
    %v1168 = vadd.f32 %v1122, %v1163
    %v1169 = vxor.u32 %v1168, 2147483648
    %v1170 = vmul.f32 %v1169, 1.442695
    %v1171 = vpow.pop %v1170
    %v1172 = vadd.f32 %v1171, 1.0
    %v1173 = vrcp.pop %v1172
    %v1174 = vmul.f32 1.0, %v1173
    %v1175 = vtanh.pop %v1168
    %v1176 = vld [vmem:[#allocation5] sm:$0x3]
    %1178 = vrot.lane.b32.xlu0 %v1176, 32
    %v1179 = vpop.permute.xlu0 %1178
    %v1181 = vmul.f32 %v1174, %v1179
    %1183 = vrot.lane.b32.xlu0 %v1175, 64
    %v1184 = vpop.permute.xlu0 %1183
    %v1186 = vmul.f32 %v1174, %v1184
    %1188 = vrot.lane.b32.xlu0 %v1186, 32
    %v1189 = vpop.permute.xlu0 %1188
    %v1191 = vadd.f32 %v1181, %v1189
    %v1192 = vtanh.pop %v1191
    %1194 = vrot.lane.b32.xlu0 %v1192, 64
    %v1195 = vpop.permute.xlu0 %1194
    %v1197 = vmul.f32 %v1174, %v1195
    %1199 = vrot.lane.b32.xlu0 %v1191, 96
    %v1200 = vpop.permute.xlu0 %1199
    %1202 = vst.msk [vmem:[#allocation5] sm:$0x3] %vm213, %v1200
    %1204 = vrot.lane.b32.xlu0 %v1197, 32
    %v1205 = vpop.permute.xlu0 %1204
    %1207 = vst.msk [vmem:[#allocation4] sm:$0x3] %vm213, %v1205
    %1208 = vst.msk [vmem:[%s403] sm:$0x3] %vm213, %v1205
    %v1209 = vld [vmem:[%s405] sm:$0x3]
    %v1210 = vld [vmem:[#allocation4] sm:$0x3]
    %v1211 = vpack.c.bf16 %v1210, %v1210
    %v1213 = vsel %vm231, %v1211, 0
    %1215 = vmatprep.subr.bf16.mxu0 0
    %1216 = vmatpush1.bf16.msra.mxu0 %v1034
    %1217 = vmatprep.subr.bf16.mxu0 0
    %1218 = vmatpush1.bf16.msra.mxu0 %v1035
    %1219 = vmatprep.subr.bf16.mxu0 0
    %1220 = vmatpush1.bf16.msra.mxu0 0
    %1221 = vmatprep.subr.bf16.mxu0 0
    %1222 = vmatpush1.bf16.msra.mxu0 0
    %1223 = vmatprep.subr.bf16.mxu0 0
    %1224 = vmatpush1.bf16.msra.mxu0 0
    %1225 = vmatprep.subr.bf16.mxu0 0
    %1226 = vmatpush1.bf16.msra.mxu0 0
    %1227 = vmatprep.subr.bf16.mxu0 0
    %1228 = vmatpush1.bf16.msra.mxu0 0
    %1229 = vmatprep.subr.bf16.mxu0 0
    %1230 = vmatpush1.bf16.msra.mxu0 0
    %1231 = vmatprep.subr.bf16.mxu0 0
    %1232 = vmatpush1.bf16.msra.mxu0 0
    %1233 = vmatprep.subr.bf16.mxu0 0
    %1234 = vmatpush1.bf16.msra.mxu0 0
    %1235 = vmatprep.subr.bf16.mxu0 0
    %1236 = vmatpush1.bf16.msra.mxu0 0
    %1237 = vmatprep.subr.bf16.mxu0 0
    %1238 = vmatpush1.bf16.msra.mxu0 0
    %1239 = vmatprep.subr.bf16.mxu0 0
    %1240 = vmatpush1.bf16.msra.mxu0 0
    %1241 = vmatprep.subr.bf16.mxu0 0
    %1242 = vmatpush1.bf16.msra.mxu0 0
    %1243 = vmatprep.subr.bf16.mxu0 0
    %1244 = vmatpush1.bf16.msra.mxu0 0
    %1245 = vmatprep.subr.bf16.mxu0 0
    %1246 = vmatpush1.bf16.msra.mxu0 0
    %1247 = vmatprep.mubr.bf16.mxu0 0
    %1248 = vmatmul.mubr.bf16.gmra.mrb[0].mxu0 %v1213
    %v1249 = vpop.f32.mrb[0].mxu0
    %v1250 = vadd.f32 0.0, %v1249
    %v1251 = vpop.f32.mrb[0].mxu0
    %v1252 = vpop.f32.mrb[0].mxu0
    %v1253 = vpop.f32.mrb[0].mxu0
    %1254 = vdwg.mxu0
    %v1255 = vadd.f32 %v1209, %v1250
    %v1256 = vxor.u32 %v1255, 2147483648
    %v1257 = vmul.f32 %v1256, 1.442695
    %v1258 = vpow.pop %v1257
    %v1259 = vadd.f32 %v1258, 1.0
    %v1260 = vrcp.pop %v1259
    %v1261 = vmul.f32 1.0, %v1260
    %v1262 = vtanh.pop %v1255
    %v1263 = vld [vmem:[#allocation5] sm:$0x3]
    %1265 = vrot.lane.b32.xlu0 %v1263, 32
    %v1266 = vpop.permute.xlu0 %1265
    %v1268 = vmul.f32 %v1261, %v1266
    %1270 = vrot.lane.b32.xlu0 %v1262, 64
    %v1271 = vpop.permute.xlu0 %1270
    %v1273 = vmul.f32 %v1261, %v1271
    %1275 = vrot.lane.b32.xlu0 %v1273, 32
    %v1276 = vpop.permute.xlu0 %1275
    %v1278 = vadd.f32 %v1268, %v1276
    %v1279 = vtanh.pop %v1278
    %1281 = vrot.lane.b32.xlu0 %v1279, 64
    %v1282 = vpop.permute.xlu0 %1281
    %v1284 = vmul.f32 %v1261, %v1282
    %1286 = vrot.lane.b32.xlu0 %v1278, 96
    %v1287 = vpop.permute.xlu0 %1286
    %1289 = vst.msk [vmem:[#allocation5] sm:$0x3] %vm213, %v1287
    %1291 = vrot.lane.b32.xlu0 %v1284, 32
    %v1292 = vpop.permute.xlu0 %1291
    %1294 = vst.msk [vmem:[#allocation4] sm:$0x3] %vm213, %v1292
    %1295 = vst.msk [vmem:[%s492] sm:$0x3] %vm213, %v1292
    %v1296 = vld [vmem:[%s494] sm:$0x3]
    %v1297 = vld [vmem:[#allocation4] sm:$0x3]
    %v1298 = vpack.c.bf16 %v1297, %v1297
    %v1300 = vsel %vm231, %v1298, 0
    %1302 = vmatprep.subr.bf16.mxu0 0
    %1303 = vmatpush1.bf16.msra.mxu0 %v1034
    %1304 = vmatprep.subr.bf16.mxu0 0
    %1305 = vmatpush1.bf16.msra.mxu0 %v1035
    %1306 = vmatprep.subr.bf16.mxu0 0
    %1307 = vmatpush1.bf16.msra.mxu0 0
    %1308 = vmatprep.subr.bf16.mxu0 0
    %1309 = vmatpush1.bf16.msra.mxu0 0
    %1310 = vmatprep.subr.bf16.mxu0 0
    %1311 = vmatpush1.bf16.msra.mxu0 0
    %1312 = vmatprep.subr.bf16.mxu0 0
    %1313 = vmatpush1.bf16.msra.mxu0 0
    %1314 = vmatprep.subr.bf16.mxu0 0
    %1315 = vmatpush1.bf16.msra.mxu0 0
    %1316 = vmatprep.subr.bf16.mxu0 0
    %1317 = vmatpush1.bf16.msra.mxu0 0
    %1318 = vmatprep.subr.bf16.mxu0 0
    %1319 = vmatpush1.bf16.msra.mxu0 0
    %1320 = vmatprep.subr.bf16.mxu0 0
    %1321 = vmatpush1.bf16.msra.mxu0 0
    %1322 = vmatprep.subr.bf16.mxu0 0
    %1323 = vmatpush1.bf16.msra.mxu0 0
    %1324 = vmatprep.subr.bf16.mxu0 0
    %1325 = vmatpush1.bf16.msra.mxu0 0
    %1326 = vmatprep.subr.bf16.mxu0 0
    %1327 = vmatpush1.bf16.msra.mxu0 0
    %1328 = vmatprep.subr.bf16.mxu0 0
    %1329 = vmatpush1.bf16.msra.mxu0 0
    %1330 = vmatprep.subr.bf16.mxu0 0
    %1331 = vmatpush1.bf16.msra.mxu0 0
    %1332 = vmatprep.subr.bf16.mxu0 0
    %1333 = vmatpush1.bf16.msra.mxu0 0
    %1334 = vmatprep.mubr.bf16.mxu0 0
    %1335 = vmatmul.mubr.bf16.gmra.mrb[0].mxu0 %v1300
    %v1336 = vpop.f32.mrb[0].mxu0
    %v1337 = vadd.f32 0.0, %v1336
    %v1338 = vpop.f32.mrb[0].mxu0
    %v1339 = vpop.f32.mrb[0].mxu0
    %v1340 = vpop.f32.mrb[0].mxu0
    %1341 = vdwg.mxu0
    %v1342 = vadd.f32 %v1296, %v1337
    %v1343 = vxor.u32 %v1342, 2147483648
    %v1344 = vmul.f32 %v1343, 1.442695
    %v1345 = vpow.pop %v1344
    %v1346 = vadd.f32 %v1345, 1.0
    %v1347 = vrcp.pop %v1346
    %v1348 = vmul.f32 1.0, %v1347
    %v1349 = vtanh.pop %v1342
    %v1350 = vld [vmem:[#allocation5] sm:$0x3]
    %1352 = vrot.lane.b32.xlu0 %v1350, 32
    %v1353 = vpop.permute.xlu0 %1352
    %v1355 = vmul.f32 %v1348, %v1353
    %1357 = vrot.lane.b32.xlu0 %v1349, 64
    %v1358 = vpop.permute.xlu0 %1357
    %v1360 = vmul.f32 %v1348, %v1358
    %1362 = vrot.lane.b32.xlu0 %v1360, 32
    %v1363 = vpop.permute.xlu0 %1362
    %v1365 = vadd.f32 %v1355, %v1363
    %v1366 = vtanh.pop %v1365
    %1368 = vrot.lane.b32.xlu0 %v1366, 64
    %v1369 = vpop.permute.xlu0 %1368
    %v1371 = vmul.f32 %v1348, %v1369
    %1373 = vrot.lane.b32.xlu0 %v1365, 96
    %v1374 = vpop.permute.xlu0 %1373
    %1376 = vst.msk [vmem:[#allocation5] sm:$0x3] %vm213, %v1374
    %1378 = vrot.lane.b32.xlu0 %v1371, 32
    %v1379 = vpop.permute.xlu0 %1378
    %1381 = vst.msk [vmem:[#allocation4] sm:$0x3] %vm213, %v1379
    %1382 = vst.msk [vmem:[%s581] sm:$0x3] %vm213, %v1379
    %v1383 = vld [vmem:[%s583] sm:$0x3]
    %v1384 = vld [vmem:[#allocation4] sm:$0x3]
    %v1385 = vpack.c.bf16 %v1384, %v1384
    %v1387 = vsel %vm231, %v1385, 0
    %1389 = vmatprep.subr.bf16.mxu0 0
    %1390 = vmatpush1.bf16.msra.mxu0 %v1034
    %1391 = vmatprep.subr.bf16.mxu0 0
    %1392 = vmatpush1.bf16.msra.mxu0 %v1035
    %1393 = vmatprep.subr.bf16.mxu0 0
    %1394 = vmatpush1.bf16.msra.mxu0 0
    %1395 = vmatprep.subr.bf16.mxu0 0
    %1396 = vmatpush1.bf16.msra.mxu0 0
    %1397 = vmatprep.subr.bf16.mxu0 0
    %1398 = vmatpush1.bf16.msra.mxu0 0
    %1399 = vmatprep.subr.bf16.mxu0 0
    %1400 = vmatpush1.bf16.msra.mxu0 0
    %1401 = vmatprep.subr.bf16.mxu0 0
    %1402 = vmatpush1.bf16.msra.mxu0 0
    %1403 = vmatprep.subr.bf16.mxu0 0
    %1404 = vmatpush1.bf16.msra.mxu0 0
    %1405 = vmatprep.subr.bf16.mxu0 0
    %1406 = vmatpush1.bf16.msra.mxu0 0
    %1407 = vmatprep.subr.bf16.mxu0 0
    %1408 = vmatpush1.bf16.msra.mxu0 0
    %1409 = vmatprep.subr.bf16.mxu0 0
    %1410 = vmatpush1.bf16.msra.mxu0 0
    %1411 = vmatprep.subr.bf16.mxu0 0
    %1412 = vmatpush1.bf16.msra.mxu0 0
    %1413 = vmatprep.subr.bf16.mxu0 0
    %1414 = vmatpush1.bf16.msra.mxu0 0
    %1415 = vmatprep.subr.bf16.mxu0 0
    %1416 = vmatpush1.bf16.msra.mxu0 0
    %1417 = vmatprep.subr.bf16.mxu0 0
    %1418 = vmatpush1.bf16.msra.mxu0 0
    %1419 = vmatprep.subr.bf16.mxu0 0
    %1420 = vmatpush1.bf16.msra.mxu0 0
    %1421 = vmatprep.mubr.bf16.mxu0 0
    %1422 = vmatmul.mubr.bf16.gmra.mrb[0].mxu0 %v1387
    %v1423 = vpop.f32.mrb[0].mxu0
    %v1424 = vadd.f32 0.0, %v1423
    %v1425 = vpop.f32.mrb[0].mxu0
    %v1426 = vpop.f32.mrb[0].mxu0
    %v1427 = vpop.f32.mrb[0].mxu0
    %1428 = vdwg.mxu0
    %v1429 = vadd.f32 %v1383, %v1424
    %v1430 = vxor.u32 %v1429, 2147483648
    %v1431 = vmul.f32 %v1430, 1.442695
    %v1432 = vpow.pop %v1431
    %v1433 = vadd.f32 %v1432, 1.0
    %v1434 = vrcp.pop %v1433
    %v1435 = vmul.f32 1.0, %v1434
    %v1436 = vtanh.pop %v1429
    %v1437 = vld [vmem:[#allocation5] sm:$0x3]
    %1439 = vrot.lane.b32.xlu0 %v1437, 32
    %v1440 = vpop.permute.xlu0 %1439
    %v1442 = vmul.f32 %v1435, %v1440
    %1444 = vrot.lane.b32.xlu0 %v1436, 64
    %v1445 = vpop.permute.xlu0 %1444
    %v1447 = vmul.f32 %v1435, %v1445
    %1449 = vrot.lane.b32.xlu0 %v1447, 32
    %v1450 = vpop.permute.xlu0 %1449
    %v1452 = vadd.f32 %v1442, %v1450
    %v1453 = vtanh.pop %v1452
    %1455 = vrot.lane.b32.xlu0 %v1453, 64
    %v1456 = vpop.permute.xlu0 %1455
    %v1458 = vmul.f32 %v1435, %v1456
    %1460 = vrot.lane.b32.xlu0 %v1452, 96
    %v1461 = vpop.permute.xlu0 %1460
    %1463 = vst.msk [vmem:[#allocation5] sm:$0x3] %vm213, %v1461
    %1465 = vrot.lane.b32.xlu0 %v1458, 32
    %v1466 = vpop.permute.xlu0 %1465
    %1468 = vst.msk [vmem:[#allocation4] sm:$0x3] %vm213, %v1466
    %1469 = vst.msk [vmem:[%s670] sm:$0x3] %vm213, %v1466
    %v1470 = vld [vmem:[%s672] sm:$0x3]
    %v1471 = vld [vmem:[#allocation4] sm:$0x3]
    %v1472 = vpack.c.bf16 %v1471, %v1471
    %v1474 = vsel %vm231, %v1472, 0
    %1476 = vmatprep.subr.bf16.mxu0 0
    %1477 = vmatpush1.bf16.msra.mxu0 %v1034
    %1478 = vmatprep.subr.bf16.mxu0 0
    %1479 = vmatpush1.bf16.msra.mxu0 %v1035
    %1480 = vmatprep.subr.bf16.mxu0 0
    %1481 = vmatpush1.bf16.msra.mxu0 0
    %1482 = vmatprep.subr.bf16.mxu0 0
    %1483 = vmatpush1.bf16.msra.mxu0 0
    %1484 = vmatprep.subr.bf16.mxu0 0
    %1485 = vmatpush1.bf16.msra.mxu0 0
    %1486 = vmatprep.subr.bf16.mxu0 0
    %1487 = vmatpush1.bf16.msra.mxu0 0
    %1488 = vmatprep.subr.bf16.mxu0 0
    %1489 = vmatpush1.bf16.msra.mxu0 0
    %1490 = vmatprep.subr.bf16.mxu0 0
    %1491 = vmatpush1.bf16.msra.mxu0 0
    %1492 = vmatprep.subr.bf16.mxu0 0
    %1493 = vmatpush1.bf16.msra.mxu0 0
    %1494 = vmatprep.subr.bf16.mxu0 0
    %1495 = vmatpush1.bf16.msra.mxu0 0
    %1496 = vmatprep.subr.bf16.mxu0 0
    %1497 = vmatpush1.bf16.msra.mxu0 0
    %1498 = vmatprep.subr.bf16.mxu0 0
    %1499 = vmatpush1.bf16.msra.mxu0 0
    %1500 = vmatprep.subr.bf16.mxu0 0
    %1501 = vmatpush1.bf16.msra.mxu0 0
    %1502 = vmatprep.subr.bf16.mxu0 0
    %1503 = vmatpush1.bf16.msra.mxu0 0
    %1504 = vmatprep.subr.bf16.mxu0 0
    %1505 = vmatpush1.bf16.msra.mxu0 0
    %1506 = vmatprep.subr.bf16.mxu0 0
    %1507 = vmatpush1.bf16.msra.mxu0 0
    %1508 = vmatprep.mubr.bf16.mxu0 0
    %1509 = vmatmul.mubr.bf16.gmra.mrb[0].mxu0 %v1474
    %v1510 = vpop.f32.mrb[0].mxu0
    %v1511 = vadd.f32 0.0, %v1510
    %v1512 = vpop.f32.mrb[0].mxu0
    %v1513 = vpop.f32.mrb[0].mxu0
    %v1514 = vpop.f32.mrb[0].mxu0
    %1515 = vdwg.mxu0
    %v1516 = vadd.f32 %v1470, %v1511
    %v1517 = vxor.u32 %v1516, 2147483648
    %v1518 = vmul.f32 %v1517, 1.442695
    %v1519 = vpow.pop %v1518
    %v1520 = vadd.f32 %v1519, 1.0
    %v1521 = vrcp.pop %v1520
    %v1522 = vmul.f32 1.0, %v1521
    %v1523 = vtanh.pop %v1516
    %v1524 = vld [vmem:[#allocation5] sm:$0x3]
    %1526 = vrot.lane.b32.xlu0 %v1524, 32
    %v1527 = vpop.permute.xlu0 %1526
    %v1529 = vmul.f32 %v1522, %v1527
    %1531 = vrot.lane.b32.xlu0 %v1523, 64
    %v1532 = vpop.permute.xlu0 %1531
    %v1534 = vmul.f32 %v1522, %v1532
    %1536 = vrot.lane.b32.xlu0 %v1534, 32
    %v1537 = vpop.permute.xlu0 %1536
    %v1539 = vadd.f32 %v1529, %v1537
    %v1540 = vtanh.pop %v1539
    %1542 = vrot.lane.b32.xlu0 %v1540, 64
    %v1543 = vpop.permute.xlu0 %1542
    %v1545 = vmul.f32 %v1522, %v1543
    %1547 = vrot.lane.b32.xlu0 %v1539, 96
    %v1548 = vpop.permute.xlu0 %1547
    %1550 = vst.msk [vmem:[#allocation5] sm:$0x3] %vm213, %v1548
    %1552 = vrot.lane.b32.xlu0 %v1545, 32
    %v1553 = vpop.permute.xlu0 %1552
    %1555 = vst.msk [vmem:[#allocation4] sm:$0x3] %vm213, %v1553
    %1556 = vst.msk [vmem:[%s759] sm:$0x3] %vm213, %v1553
    %v1557 = vld [vmem:[%s761] sm:$0x3]
    %v1558 = vld [vmem:[#allocation4] sm:$0x3]
    %v1559 = vpack.c.bf16 %v1558, %v1558
    %v1561 = vsel %vm231, %v1559, 0
    %1563 = vmatprep.subr.bf16.mxu0 0
    %1564 = vmatpush1.bf16.msra.mxu0 %v1034
    %1565 = vmatprep.subr.bf16.mxu0 0
    %1566 = vmatpush1.bf16.msra.mxu0 %v1035
    %1567 = vmatprep.subr.bf16.mxu0 0
    %1568 = vmatpush1.bf16.msra.mxu0 0
    %1569 = vmatprep.subr.bf16.mxu0 0
    %1570 = vmatpush1.bf16.msra.mxu0 0
    %1571 = vmatprep.subr.bf16.mxu0 0
    %1572 = vmatpush1.bf16.msra.mxu0 0
    %1573 = vmatprep.subr.bf16.mxu0 0
    %1574 = vmatpush1.bf16.msra.mxu0 0
    %1575 = vmatprep.subr.bf16.mxu0 0
    %1576 = vmatpush1.bf16.msra.mxu0 0
    %1577 = vmatprep.subr.bf16.mxu0 0
    %1578 = vmatpush1.bf16.msra.mxu0 0
    %1579 = vmatprep.subr.bf16.mxu0 0
    %1580 = vmatpush1.bf16.msra.mxu0 0
    %1581 = vmatprep.subr.bf16.mxu0 0
    %1582 = vmatpush1.bf16.msra.mxu0 0
    %1583 = vmatprep.subr.bf16.mxu0 0
    %1584 = vmatpush1.bf16.msra.mxu0 0
    %1585 = vmatprep.subr.bf16.mxu0 0
    %1586 = vmatpush1.bf16.msra.mxu0 0
    %1587 = vmatprep.subr.bf16.mxu0 0
    %1588 = vmatpush1.bf16.msra.mxu0 0
    %1589 = vmatprep.subr.bf16.mxu0 0
    %1590 = vmatpush1.bf16.msra.mxu0 0
    %1591 = vmatprep.subr.bf16.mxu0 0
    %1592 = vmatpush1.bf16.msra.mxu0 0
    %1593 = vmatprep.subr.bf16.mxu0 0
    %1594 = vmatpush1.bf16.msra.mxu0 0
    %1595 = vmatprep.mubr.bf16.mxu0 0
    %1596 = vmatmul.mubr.bf16.gmra.mrb[0].mxu0 %v1561
    %v1597 = vpop.f32.mrb[0].mxu0
    %v1598 = vadd.f32 0.0, %v1597
    %v1599 = vpop.f32.mrb[0].mxu0
    %v1600 = vpop.f32.mrb[0].mxu0
    %v1601 = vpop.f32.mrb[0].mxu0
    %1602 = vdwg.mxu0
    %v1603 = vadd.f32 %v1557, %v1598
    %v1604 = vxor.u32 %v1603, 2147483648
    %v1605 = vmul.f32 %v1604, 1.442695
    %v1606 = vpow.pop %v1605
    %v1607 = vadd.f32 %v1606, 1.0
    %v1608 = vrcp.pop %v1607
    %v1609 = vmul.f32 1.0, %v1608
    %v1610 = vtanh.pop %v1603
    %v1611 = vld [vmem:[#allocation5] sm:$0x3]
    %1613 = vrot.lane.b32.xlu0 %v1611, 32
    %v1614 = vpop.permute.xlu0 %1613
    %v1616 = vmul.f32 %v1609, %v1614
    %1618 = vrot.lane.b32.xlu0 %v1610, 64
    %v1619 = vpop.permute.xlu0 %1618
    %v1621 = vmul.f32 %v1609, %v1619
    %1623 = vrot.lane.b32.xlu0 %v1621, 32
    %v1624 = vpop.permute.xlu0 %1623
    %v1626 = vadd.f32 %v1616, %v1624
    %v1627 = vtanh.pop %v1626
    %1629 = vrot.lane.b32.xlu0 %v1627, 64
    %v1630 = vpop.permute.xlu0 %1629
    %v1632 = vmul.f32 %v1609, %v1630
    %1634 = vrot.lane.b32.xlu0 %v1626, 96
    %v1635 = vpop.permute.xlu0 %1634
    %1637 = vst.msk [vmem:[#allocation5] sm:$0x3] %vm213, %v1635
    %1639 = vrot.lane.b32.xlu0 %v1632, 32
    %v1640 = vpop.permute.xlu0 %1639
    %1642 = vst.msk [vmem:[#allocation4] sm:$0x3] %vm213, %v1640
    %1643 = vst.msk [vmem:[%s848] sm:$0x3] %vm213, %v1640
    %v1644 = vld [vmem:[%s850] sm:$0x3]
    %v1645 = vld [vmem:[#allocation4] sm:$0x3]
    %v1646 = vpack.c.bf16 %v1645, %v1645
    %v1648 = vsel %vm231, %v1646, 0
    %1650 = vmatprep.subr.bf16.mxu0 0
    %1651 = vmatpush1.bf16.msra.mxu0 %v1034
    %1652 = vmatprep.subr.bf16.mxu0 0
    %1653 = vmatpush1.bf16.msra.mxu0 %v1035
    %1654 = vmatprep.subr.bf16.mxu0 0
    %1655 = vmatpush1.bf16.msra.mxu0 0
    %1656 = vmatprep.subr.bf16.mxu0 0
    %1657 = vmatpush1.bf16.msra.mxu0 0
    %1658 = vmatprep.subr.bf16.mxu0 0
    %1659 = vmatpush1.bf16.msra.mxu0 0
    %1660 = vmatprep.subr.bf16.mxu0 0
    %1661 = vmatpush1.bf16.msra.mxu0 0
    %1662 = vmatprep.subr.bf16.mxu0 0
    %1663 = vmatpush1.bf16.msra.mxu0 0
    %1664 = vmatprep.subr.bf16.mxu0 0
    %1665 = vmatpush1.bf16.msra.mxu0 0
    %1666 = vmatprep.subr.bf16.mxu0 0
    %1667 = vmatpush1.bf16.msra.mxu0 0
    %1668 = vmatprep.subr.bf16.mxu0 0
    %1669 = vmatpush1.bf16.msra.mxu0 0
    %1670 = vmatprep.subr.bf16.mxu0 0
    %1671 = vmatpush1.bf16.msra.mxu0 0
    %1672 = vmatprep.subr.bf16.mxu0 0
    %1673 = vmatpush1.bf16.msra.mxu0 0
    %1674 = vmatprep.subr.bf16.mxu0 0
    %1675 = vmatpush1.bf16.msra.mxu0 0
    %1676 = vmatprep.subr.bf16.mxu0 0
    %1677 = vmatpush1.bf16.msra.mxu0 0
    %1678 = vmatprep.subr.bf16.mxu0 0
    %1679 = vmatpush1.bf16.msra.mxu0 0
    %1680 = vmatprep.subr.bf16.mxu0 0
    %1681 = vmatpush1.bf16.msra.mxu0 0
    %1682 = vmatprep.mubr.bf16.mxu0 0
    %1683 = vmatmul.mubr.bf16.gmra.mrb[0].mxu0 %v1648
    %v1684 = vpop.f32.mrb[0].mxu0
    %v1685 = vadd.f32 0.0, %v1684
    %v1686 = vpop.f32.mrb[0].mxu0
    %v1687 = vpop.f32.mrb[0].mxu0
    %v1688 = vpop.f32.mrb[0].mxu0
    %1689 = vdwg.mxu0
    %v1690 = vadd.f32 %v1644, %v1685
    %v1691 = vxor.u32 %v1690, 2147483648
    %v1692 = vmul.f32 %v1691, 1.442695
    %v1693 = vpow.pop %v1692
    %v1694 = vadd.f32 %v1693, 1.0
    %v1695 = vrcp.pop %v1694
    %v1696 = vmul.f32 1.0, %v1695
    %v1697 = vtanh.pop %v1690
    %v1698 = vld [vmem:[#allocation5] sm:$0x3]
    %1700 = vrot.lane.b32.xlu0 %v1698, 32
    %v1701 = vpop.permute.xlu0 %1700
    %v1703 = vmul.f32 %v1696, %v1701
    %1705 = vrot.lane.b32.xlu0 %v1697, 64
    %v1706 = vpop.permute.xlu0 %1705
    %v1708 = vmul.f32 %v1696, %v1706
    %1710 = vrot.lane.b32.xlu0 %v1708, 32
    %v1711 = vpop.permute.xlu0 %1710
    %v1713 = vadd.f32 %v1703, %v1711
    %v1714 = vtanh.pop %v1713
    %1716 = vrot.lane.b32.xlu0 %v1714, 64
    %v1717 = vpop.permute.xlu0 %1716
    %v1719 = vmul.f32 %v1696, %v1717
    %1721 = vrot.lane.b32.xlu0 %v1713, 96
    %v1722 = vpop.permute.xlu0 %1721
    %1724 = vst.msk [vmem:[#allocation5] sm:$0x3] %vm213, %v1722
    %1726 = vrot.lane.b32.xlu0 %v1719, 32
    %v1727 = vpop.permute.xlu0 %1726
    %1729 = vst.msk [vmem:[#allocation4] sm:$0x3] %vm213, %v1727
    %1730 = vst.msk [vmem:[%s937] sm:$0x3] %vm213, %v1727
    %v1731 = vld [vmem:[#allocation4] sm:$0x3]
    %s1732 = scalar_lea.vmem [#allocation19], 2
    %1733 = vst.msk [vmem:[%s1732] sm:$0x3] %vm213, %v1731
    %v1734 = vld [vmem:[#allocation5] sm:$0x3]
    %s1735 = scalar_lea.vmem [#allocation21], 2
    %1736 = vst.msk [vmem:[%s1735] sm:$0x3] %vm213, %v1734
    %s1737 = scalar_lea.vmem %s3, 16
    %v1738 = vld [vmem:[%s1737] sm:$0xf]
    %v1739 = vld [vmem:[%s1737 + $0x4] sm:$0xf]
    %v1740 = vld [vmem:[%s1737 + $0x8] sm:$0xf]
    %v1741 = vld [vmem:[%s1737 + $0xc] sm:$0xf]
    %v1742 = vld [vmem:[#allocation2] sm:$0xff]
    %v1743 = vld [vmem:[#allocation2 + $0x8] sm:$0xff]
    %v1744 = vpack.c.bf16 %v1743, %v1742
    %s1745 = scalar_lea.vmem [#allocation11], 2
    %v1746 = vld [vmem:[%s1745] sm:$0x1]
    %v1748 = vlaneseq
    %v1749 = vshrl.u32 %v1748, 7
    %v1750 = vsub.s32 0, %v1749
    %v1751 = vrot.slane %v1746, %v1750
    %v1757 = vunpack.c.l.b16 %v1738
    %v1758 = vunpack.c.l.b16 %v1739
    %v1759 = vunpack.c.l.b16 %v1740
    %v1760 = vunpack.c.l.b16 %v1741
    %v1761 = vpack.c.b16 %v1758, %v1757
    %v1762 = vpack.c.b16 %v1760, %v1759
    %v1766 = vsel %vm231, %v1744, 0
    %1768 = vmatprep.subr.bf16.mxu0 0
    %1769 = vmatpush1.bf16.msra.mxu0 %v1761
    %1770 = vmatprep.subr.bf16.mxu0 0
    %1771 = vmatpush1.bf16.msra.mxu0 %v1762
    %1772 = vmatprep.subr.bf16.mxu0 0
    %1773 = vmatpush1.bf16.msra.mxu0 0
    %1774 = vmatprep.subr.bf16.mxu0 0
    %1775 = vmatpush1.bf16.msra.mxu0 0
    %1776 = vmatprep.subr.bf16.mxu0 0
    %1777 = vmatpush1.bf16.msra.mxu0 0
    %1778 = vmatprep.subr.bf16.mxu0 0
    %1779 = vmatpush1.bf16.msra.mxu0 0
    %1780 = vmatprep.subr.bf16.mxu0 0
    %1781 = vmatpush1.bf16.msra.mxu0 0
    %1782 = vmatprep.subr.bf16.mxu0 0
    %1783 = vmatpush1.bf16.msra.mxu0 0
    %1784 = vmatprep.subr.bf16.mxu0 0
    %1785 = vmatpush1.bf16.msra.mxu0 0
    %1786 = vmatprep.subr.bf16.mxu0 0
    %1787 = vmatpush1.bf16.msra.mxu0 0
    %1788 = vmatprep.subr.bf16.mxu0 0
    %1789 = vmatpush1.bf16.msra.mxu0 0
    %1790 = vmatprep.subr.bf16.mxu0 0
    %1791 = vmatpush1.bf16.msra.mxu0 0
    %1792 = vmatprep.subr.bf16.mxu0 0
    %1793 = vmatpush1.bf16.msra.mxu0 0
    %1794 = vmatprep.subr.bf16.mxu0 0
    %1795 = vmatpush1.bf16.msra.mxu0 0
    %1796 = vmatprep.subr.bf16.mxu0 0
    %1797 = vmatpush1.bf16.msra.mxu0 0
    %1798 = vmatprep.subr.bf16.mxu0 0
    %1799 = vmatpush1.bf16.msra.mxu0 0
    %1800 = vmatprep.mubr.bf16.mxu0 0
    %1801 = vmatmul.mubr.bf16.gmra.mrb[0].mxu0 %v1766
    %v1802 = vpop.f32.mrb[0].mxu0
    %v1803 = vadd.f32 %v1751, %v1802
    %v1804 = vpop.f32.mrb[0].mxu0
    %v1805 = vpop.f32.mrb[0].mxu0
    %v1806 = vadd.f32 %v1751, %v1805
    %v1807 = vpop.f32.mrb[0].mxu0
    %1808 = vdwg.mxu0
    %1809 = vst [vmem:[#allocation3] sm:$0xff] %v1803
    %1810 = vst [vmem:[#allocation3 + $0x8] sm:$0xff] %v1806
    %s1811 = scalar_lea.vmem %s4, 32
    %v1812 = vld [vmem:[%s1811] sm:$0xf]
    %v1813 = vld [vmem:[%s1811 + $0x4] sm:$0xf]
    %v1814 = vld [vmem:[%s1811 + $0x8] sm:$0xf]
    %v1815 = vld [vmem:[%s1811 + $0xc] sm:$0xf]
    %1816 = vst.msk [vmem:[#allocation4] sm:$0x3] %vm213, 0.0
    %1817 = vst.msk [vmem:[#allocation5] sm:$0x3] %vm213, 0.0
    %v1818 = vld [vmem:[#allocation3] sm:$0x3]
    %v1819 = vld [vmem:[#allocation4] sm:$0x3]
    %v1820 = vpack.c.bf16 %v1819, %v1819
    %v1825 = vunpack.c.l.b16 %v1812
    %v1826 = vunpack.c.l.b16 %v1813
    %v1827 = vunpack.c.l.b16 %v1814
    %v1828 = vunpack.c.l.b16 %v1815
    %v1829 = vpack.c.b16 %v1826, %v1825
    %v1830 = vpack.c.b16 %v1828, %v1827
    %v1834 = vsel %vm231, %v1820, 0
    %1836 = vmatprep.subr.bf16.mxu0 0
    %1837 = vmatpush1.bf16.msra.mxu0 %v1829
    %1838 = vmatprep.subr.bf16.mxu0 0
    %1839 = vmatpush1.bf16.msra.mxu0 %v1830
    %1840 = vmatprep.subr.bf16.mxu0 0
    %1841 = vmatpush1.bf16.msra.mxu0 0
    %1842 = vmatprep.subr.bf16.mxu0 0
    %1843 = vmatpush1.bf16.msra.mxu0 0
    %1844 = vmatprep.subr.bf16.mxu0 0
    %1845 = vmatpush1.bf16.msra.mxu0 0
    %1846 = vmatprep.subr.bf16.mxu0 0
    %1847 = vmatpush1.bf16.msra.mxu0 0
    %1848 = vmatprep.subr.bf16.mxu0 0
    %1849 = vmatpush1.bf16.msra.mxu0 0
    %1850 = vmatprep.subr.bf16.mxu0 0
    %1851 = vmatpush1.bf16.msra.mxu0 0
    %1852 = vmatprep.subr.bf16.mxu0 0
    %1853 = vmatpush1.bf16.msra.mxu0 0
    %1854 = vmatprep.subr.bf16.mxu0 0
    %1855 = vmatpush1.bf16.msra.mxu0 0
    %1856 = vmatprep.subr.bf16.mxu0 0
    %1857 = vmatpush1.bf16.msra.mxu0 0
    %1858 = vmatprep.subr.bf16.mxu0 0
    %1859 = vmatpush1.bf16.msra.mxu0 0
    %1860 = vmatprep.subr.bf16.mxu0 0
    %1861 = vmatpush1.bf16.msra.mxu0 0
    %1862 = vmatprep.subr.bf16.mxu0 0
    %1863 = vmatpush1.bf16.msra.mxu0 0
    %1864 = vmatprep.subr.bf16.mxu0 0
    %1865 = vmatpush1.bf16.msra.mxu0 0
    %1866 = vmatprep.subr.bf16.mxu0 0
    %1867 = vmatpush1.bf16.msra.mxu0 0
    %1868 = vmatprep.mubr.bf16.mxu0 0
    %1869 = vmatmul.mubr.bf16.gmra.mrb[0].mxu0 %v1834
    %v1870 = vpop.f32.mrb[0].mxu0
    %v1871 = vadd.f32 0.0, %v1870
    %v1872 = vpop.f32.mrb[0].mxu0
    %v1873 = vpop.f32.mrb[0].mxu0
    %v1874 = vpop.f32.mrb[0].mxu0
    %1875 = vdwg.mxu0
    %v1876 = vadd.f32 %v1818, %v1871
    %v1877 = vxor.u32 %v1876, 2147483648
    %v1878 = vmul.f32 %v1877, 1.442695
    %v1879 = vpow.pop %v1878
    %v1880 = vadd.f32 %v1879, 1.0
    %v1881 = vrcp.pop %v1880
    %v1882 = vmul.f32 1.0, %v1881
    %v1883 = vtanh.pop %v1876
    %v1884 = vld [vmem:[#allocation5] sm:$0x3]
    %1886 = vrot.lane.b32.xlu0 %v1884, 32
    %v1887 = vpop.permute.xlu0 %1886
    %v1889 = vmul.f32 %v1882, %v1887
    %1891 = vrot.lane.b32.xlu0 %v1883, 64
    %v1892 = vpop.permute.xlu0 %1891
    %v1894 = vmul.f32 %v1882, %v1892
    %1896 = vrot.lane.b32.xlu0 %v1894, 32
    %v1897 = vpop.permute.xlu0 %1896
    %v1899 = vadd.f32 %v1889, %v1897
    %v1900 = vtanh.pop %v1899
    %1902 = vrot.lane.b32.xlu0 %v1900, 64
    %v1903 = vpop.permute.xlu0 %1902
    %v1905 = vmul.f32 %v1882, %v1903
    %1907 = vrot.lane.b32.xlu0 %v1899, 96
    %v1908 = vpop.permute.xlu0 %1907
    %1910 = vst.msk [vmem:[#allocation5] sm:$0x3] %vm213, %v1908
    %1912 = vrot.lane.b32.xlu0 %v1905, 32
    %v1913 = vpop.permute.xlu0 %1912
    %1915 = vst.msk [vmem:[#allocation4] sm:$0x3] %vm213, %v1913
    %1916 = vst.msk [vmem:[#allocation2] sm:$0x3] %vm213, %v1913
    %v1917 = vld [vmem:[%s316] sm:$0x3]
    %v1918 = vld [vmem:[#allocation4] sm:$0x3]
    %v1919 = vpack.c.bf16 %v1918, %v1918
    %v1921 = vsel %vm231, %v1919, 0
    %1923 = vmatprep.subr.bf16.mxu0 0
    %1924 = vmatpush1.bf16.msra.mxu0 %v1829
    %1925 = vmatprep.subr.bf16.mxu0 0
    %1926 = vmatpush1.bf16.msra.mxu0 %v1830
    %1927 = vmatprep.subr.bf16.mxu0 0
    %1928 = vmatpush1.bf16.msra.mxu0 0
    %1929 = vmatprep.subr.bf16.mxu0 0
    %1930 = vmatpush1.bf16.msra.mxu0 0
    %1931 = vmatprep.subr.bf16.mxu0 0
    %1932 = vmatpush1.bf16.msra.mxu0 0
    %1933 = vmatprep.subr.bf16.mxu0 0
    %1934 = vmatpush1.bf16.msra.mxu0 0
    %1935 = vmatprep.subr.bf16.mxu0 0
    %1936 = vmatpush1.bf16.msra.mxu0 0
    %1937 = vmatprep.subr.bf16.mxu0 0
    %1938 = vmatpush1.bf16.msra.mxu0 0
    %1939 = vmatprep.subr.bf16.mxu0 0
    %1940 = vmatpush1.bf16.msra.mxu0 0
    %1941 = vmatprep.subr.bf16.mxu0 0
    %1942 = vmatpush1.bf16.msra.mxu0 0
    %1943 = vmatprep.subr.bf16.mxu0 0
    %1944 = vmatpush1.bf16.msra.mxu0 0
    %1945 = vmatprep.subr.bf16.mxu0 0
    %1946 = vmatpush1.bf16.msra.mxu0 0
    %1947 = vmatprep.subr.bf16.mxu0 0
    %1948 = vmatpush1.bf16.msra.mxu0 0
    %1949 = vmatprep.subr.bf16.mxu0 0
    %1950 = vmatpush1.bf16.msra.mxu0 0
    %1951 = vmatprep.subr.bf16.mxu0 0
    %1952 = vmatpush1.bf16.msra.mxu0 0
    %1953 = vmatprep.subr.bf16.mxu0 0
    %1954 = vmatpush1.bf16.msra.mxu0 0
    %1955 = vmatprep.mubr.bf16.mxu0 0
    %1956 = vmatmul.mubr.bf16.gmra.mrb[0].mxu0 %v1921
    %v1957 = vpop.f32.mrb[0].mxu0
    %v1958 = vadd.f32 0.0, %v1957
    %v1959 = vpop.f32.mrb[0].mxu0
    %v1960 = vpop.f32.mrb[0].mxu0
    %v1961 = vpop.f32.mrb[0].mxu0
    %1962 = vdwg.mxu0
    %v1963 = vadd.f32 %v1917, %v1958
    %v1964 = vxor.u32 %v1963, 2147483648
    %v1965 = vmul.f32 %v1964, 1.442695
    %v1966 = vpow.pop %v1965
    %v1967 = vadd.f32 %v1966, 1.0
    %v1968 = vrcp.pop %v1967
    %v1969 = vmul.f32 1.0, %v1968
    %v1970 = vtanh.pop %v1963
    %v1971 = vld [vmem:[#allocation5] sm:$0x3]
    %1973 = vrot.lane.b32.xlu0 %v1971, 32
    %v1974 = vpop.permute.xlu0 %1973
    %v1976 = vmul.f32 %v1969, %v1974
    %1978 = vrot.lane.b32.xlu0 %v1970, 64
    %v1979 = vpop.permute.xlu0 %1978
    %v1981 = vmul.f32 %v1969, %v1979
    %1983 = vrot.lane.b32.xlu0 %v1981, 32
    %v1984 = vpop.permute.xlu0 %1983
    %v1986 = vadd.f32 %v1976, %v1984
    %v1987 = vtanh.pop %v1986
    %1989 = vrot.lane.b32.xlu0 %v1987, 64
    %v1990 = vpop.permute.xlu0 %1989
    %v1992 = vmul.f32 %v1969, %v1990
    %1994 = vrot.lane.b32.xlu0 %v1986, 96
    %v1995 = vpop.permute.xlu0 %1994
    %1997 = vst.msk [vmem:[#allocation5] sm:$0x3] %vm213, %v1995
    %1999 = vrot.lane.b32.xlu0 %v1992, 32
    %v2000 = vpop.permute.xlu0 %1999
    %2002 = vst.msk [vmem:[#allocation4] sm:$0x3] %vm213, %v2000
    %2003 = vst.msk [vmem:[%s403] sm:$0x3] %vm213, %v2000
    %v2004 = vld [vmem:[%s405] sm:$0x3]
    %v2005 = vld [vmem:[#allocation4] sm:$0x3]
    %v2006 = vpack.c.bf16 %v2005, %v2005
    %v2008 = vsel %vm231, %v2006, 0
    %2010 = vmatprep.subr.bf16.mxu0 0
    %2011 = vmatpush1.bf16.msra.mxu0 %v1829
    %2012 = vmatprep.subr.bf16.mxu0 0
    %2013 = vmatpush1.bf16.msra.mxu0 %v1830
    %2014 = vmatprep.subr.bf16.mxu0 0
    %2015 = vmatpush1.bf16.msra.mxu0 0
    %2016 = vmatprep.subr.bf16.mxu0 0
    %2017 = vmatpush1.bf16.msra.mxu0 0
    %2018 = vmatprep.subr.bf16.mxu0 0
    %2019 = vmatpush1.bf16.msra.mxu0 0
    %2020 = vmatprep.subr.bf16.mxu0 0
    %2021 = vmatpush1.bf16.msra.mxu0 0
    %2022 = vmatprep.subr.bf16.mxu0 0
    %2023 = vmatpush1.bf16.msra.mxu0 0
    %2024 = vmatprep.subr.bf16.mxu0 0
    %2025 = vmatpush1.bf16.msra.mxu0 0
    %2026 = vmatprep.subr.bf16.mxu0 0
    %2027 = vmatpush1.bf16.msra.mxu0 0
    %2028 = vmatprep.subr.bf16.mxu0 0
    %2029 = vmatpush1.bf16.msra.mxu0 0
    %2030 = vmatprep.subr.bf16.mxu0 0
    %2031 = vmatpush1.bf16.msra.mxu0 0
    %2032 = vmatprep.subr.bf16.mxu0 0
    %2033 = vmatpush1.bf16.msra.mxu0 0
    %2034 = vmatprep.subr.bf16.mxu0 0
    %2035 = vmatpush1.bf16.msra.mxu0 0
    %2036 = vmatprep.subr.bf16.mxu0 0
    %2037 = vmatpush1.bf16.msra.mxu0 0
    %2038 = vmatprep.subr.bf16.mxu0 0
    %2039 = vmatpush1.bf16.msra.mxu0 0
    %2040 = vmatprep.subr.bf16.mxu0 0
    %2041 = vmatpush1.bf16.msra.mxu0 0
    %2042 = vmatprep.mubr.bf16.mxu0 0
    %2043 = vmatmul.mubr.bf16.gmra.mrb[0].mxu0 %v2008
    %v2044 = vpop.f32.mrb[0].mxu0
    %v2045 = vadd.f32 0.0, %v2044
    %v2046 = vpop.f32.mrb[0].mxu0
    %v2047 = vpop.f32.mrb[0].mxu0
    %v2048 = vpop.f32.mrb[0].mxu0
    %2049 = vdwg.mxu0
    %v2050 = vadd.f32 %v2004, %v2045
    %v2051 = vxor.u32 %v2050, 2147483648
    %v2052 = vmul.f32 %v2051, 1.442695
    %v2053 = vpow.pop %v2052
    %v2054 = vadd.f32 %v2053, 1.0
    %v2055 = vrcp.pop %v2054
    %v2056 = vmul.f32 1.0, %v2055
    %v2057 = vtanh.pop %v2050
    %v2058 = vld [vmem:[#allocation5] sm:$0x3]
    %2060 = vrot.lane.b32.xlu0 %v2058, 32
    %v2061 = vpop.permute.xlu0 %2060
    %v2063 = vmul.f32 %v2056, %v2061
    %2065 = vrot.lane.b32.xlu0 %v2057, 64
    %v2066 = vpop.permute.xlu0 %2065
    %v2068 = vmul.f32 %v2056, %v2066
    %2070 = vrot.lane.b32.xlu0 %v2068, 32
    %v2071 = vpop.permute.xlu0 %2070
    %v2073 = vadd.f32 %v2063, %v2071
    %v2074 = vtanh.pop %v2073
    %2076 = vrot.lane.b32.xlu0 %v2074, 64
    %v2077 = vpop.permute.xlu0 %2076
    %v2079 = vmul.f32 %v2056, %v2077
    %2081 = vrot.lane.b32.xlu0 %v2073, 96
    %v2082 = vpop.permute.xlu0 %2081
    %2084 = vst.msk [vmem:[#allocation5] sm:$0x3] %vm213, %v2082
    %2086 = vrot.lane.b32.xlu0 %v2079, 32
    %v2087 = vpop.permute.xlu0 %2086
    %2089 = vst.msk [vmem:[#allocation4] sm:$0x3] %vm213, %v2087
    %2090 = vst.msk [vmem:[%s492] sm:$0x3] %vm213, %v2087
    %v2091 = vld [vmem:[%s494] sm:$0x3]
    %v2092 = vld [vmem:[#allocation4] sm:$0x3]
    %v2093 = vpack.c.bf16 %v2092, %v2092
    %v2095 = vsel %vm231, %v2093, 0
    %2097 = vmatprep.subr.bf16.mxu0 0
    %2098 = vmatpush1.bf16.msra.mxu0 %v1829
    %2099 = vmatprep.subr.bf16.mxu0 0
    %2100 = vmatpush1.bf16.msra.mxu0 %v1830
    %2101 = vmatprep.subr.bf16.mxu0 0
    %2102 = vmatpush1.bf16.msra.mxu0 0
    %2103 = vmatprep.subr.bf16.mxu0 0
    %2104 = vmatpush1.bf16.msra.mxu0 0
    %2105 = vmatprep.subr.bf16.mxu0 0
    %2106 = vmatpush1.bf16.msra.mxu0 0
    %2107 = vmatprep.subr.bf16.mxu0 0
    %2108 = vmatpush1.bf16.msra.mxu0 0
    %2109 = vmatprep.subr.bf16.mxu0 0
    %2110 = vmatpush1.bf16.msra.mxu0 0
    %2111 = vmatprep.subr.bf16.mxu0 0
    %2112 = vmatpush1.bf16.msra.mxu0 0
    %2113 = vmatprep.subr.bf16.mxu0 0
    %2114 = vmatpush1.bf16.msra.mxu0 0
    %2115 = vmatprep.subr.bf16.mxu0 0
    %2116 = vmatpush1.bf16.msra.mxu0 0
    %2117 = vmatprep.subr.bf16.mxu0 0
    %2118 = vmatpush1.bf16.msra.mxu0 0
    %2119 = vmatprep.subr.bf16.mxu0 0
    %2120 = vmatpush1.bf16.msra.mxu0 0
    %2121 = vmatprep.subr.bf16.mxu0 0
    %2122 = vmatpush1.bf16.msra.mxu0 0
    %2123 = vmatprep.subr.bf16.mxu0 0
    %2124 = vmatpush1.bf16.msra.mxu0 0
    %2125 = vmatprep.subr.bf16.mxu0 0
    %2126 = vmatpush1.bf16.msra.mxu0 0
    %2127 = vmatprep.subr.bf16.mxu0 0
    %2128 = vmatpush1.bf16.msra.mxu0 0
    %2129 = vmatprep.mubr.bf16.mxu0 0
    %2130 = vmatmul.mubr.bf16.gmra.mrb[0].mxu0 %v2095
    %v2131 = vpop.f32.mrb[0].mxu0
    %v2132 = vadd.f32 0.0, %v2131
    %v2133 = vpop.f32.mrb[0].mxu0
    %v2134 = vpop.f32.mrb[0].mxu0
    %v2135 = vpop.f32.mrb[0].mxu0
    %2136 = vdwg.mxu0
    %v2137 = vadd.f32 %v2091, %v2132
    %v2138 = vxor.u32 %v2137, 2147483648
    %v2139 = vmul.f32 %v2138, 1.442695
    %v2140 = vpow.pop %v2139
    %v2141 = vadd.f32 %v2140, 1.0
    %v2142 = vrcp.pop %v2141
    %v2143 = vmul.f32 1.0, %v2142
    %v2144 = vtanh.pop %v2137
    %v2145 = vld [vmem:[#allocation5] sm:$0x3]
    %2147 = vrot.lane.b32.xlu0 %v2145, 32
    %v2148 = vpop.permute.xlu0 %2147
    %v2150 = vmul.f32 %v2143, %v2148
    %2152 = vrot.lane.b32.xlu0 %v2144, 64
    %v2153 = vpop.permute.xlu0 %2152
    %v2155 = vmul.f32 %v2143, %v2153
    %2157 = vrot.lane.b32.xlu0 %v2155, 32
    %v2158 = vpop.permute.xlu0 %2157
    %v2160 = vadd.f32 %v2150, %v2158
    %v2161 = vtanh.pop %v2160
    %2163 = vrot.lane.b32.xlu0 %v2161, 64
    %v2164 = vpop.permute.xlu0 %2163
    %v2166 = vmul.f32 %v2143, %v2164
    %2168 = vrot.lane.b32.xlu0 %v2160, 96
    %v2169 = vpop.permute.xlu0 %2168
    %2171 = vst.msk [vmem:[#allocation5] sm:$0x3] %vm213, %v2169
    %2173 = vrot.lane.b32.xlu0 %v2166, 32
    %v2174 = vpop.permute.xlu0 %2173
    %2176 = vst.msk [vmem:[#allocation4] sm:$0x3] %vm213, %v2174
    %2177 = vst.msk [vmem:[%s581] sm:$0x3] %vm213, %v2174
    %v2178 = vld [vmem:[%s583] sm:$0x3]
    %v2179 = vld [vmem:[#allocation4] sm:$0x3]
    %v2180 = vpack.c.bf16 %v2179, %v2179
    %v2182 = vsel %vm231, %v2180, 0
    %2184 = vmatprep.subr.bf16.mxu0 0
    %2185 = vmatpush1.bf16.msra.mxu0 %v1829
    %2186 = vmatprep.subr.bf16.mxu0 0
    %2187 = vmatpush1.bf16.msra.mxu0 %v1830
    %2188 = vmatprep.subr.bf16.mxu0 0
    %2189 = vmatpush1.bf16.msra.mxu0 0
    %2190 = vmatprep.subr.bf16.mxu0 0
    %2191 = vmatpush1.bf16.msra.mxu0 0
    %2192 = vmatprep.subr.bf16.mxu0 0
    %2193 = vmatpush1.bf16.msra.mxu0 0
    %2194 = vmatprep.subr.bf16.mxu0 0
    %2195 = vmatpush1.bf16.msra.mxu0 0
    %2196 = vmatprep.subr.bf16.mxu0 0
    %2197 = vmatpush1.bf16.msra.mxu0 0
    %2198 = vmatprep.subr.bf16.mxu0 0
    %2199 = vmatpush1.bf16.msra.mxu0 0
    %2200 = vmatprep.subr.bf16.mxu0 0
    %2201 = vmatpush1.bf16.msra.mxu0 0
    %2202 = vmatprep.subr.bf16.mxu0 0
    %2203 = vmatpush1.bf16.msra.mxu0 0
    %2204 = vmatprep.subr.bf16.mxu0 0
    %2205 = vmatpush1.bf16.msra.mxu0 0
    %2206 = vmatprep.subr.bf16.mxu0 0
    %2207 = vmatpush1.bf16.msra.mxu0 0
    %2208 = vmatprep.subr.bf16.mxu0 0
    %2209 = vmatpush1.bf16.msra.mxu0 0
    %2210 = vmatprep.subr.bf16.mxu0 0
    %2211 = vmatpush1.bf16.msra.mxu0 0
    %2212 = vmatprep.subr.bf16.mxu0 0
    %2213 = vmatpush1.bf16.msra.mxu0 0
    %2214 = vmatprep.subr.bf16.mxu0 0
    %2215 = vmatpush1.bf16.msra.mxu0 0
    %2216 = vmatprep.mubr.bf16.mxu0 0
    %2217 = vmatmul.mubr.bf16.gmra.mrb[0].mxu0 %v2182
    %v2218 = vpop.f32.mrb[0].mxu0
    %v2219 = vadd.f32 0.0, %v2218
    %v2220 = vpop.f32.mrb[0].mxu0
    %v2221 = vpop.f32.mrb[0].mxu0
    %v2222 = vpop.f32.mrb[0].mxu0
    %2223 = vdwg.mxu0
    %v2224 = vadd.f32 %v2178, %v2219
    %v2225 = vxor.u32 %v2224, 2147483648
    %v2226 = vmul.f32 %v2225, 1.442695
    %v2227 = vpow.pop %v2226
    %v2228 = vadd.f32 %v2227, 1.0
    %v2229 = vrcp.pop %v2228
    %v2230 = vmul.f32 1.0, %v2229
    %v2231 = vtanh.pop %v2224
    %v2232 = vld [vmem:[#allocation5] sm:$0x3]
    %2234 = vrot.lane.b32.xlu0 %v2232, 32
    %v2235 = vpop.permute.xlu0 %2234
    %v2237 = vmul.f32 %v2230, %v2235
    %2239 = vrot.lane.b32.xlu0 %v2231, 64
    %v2240 = vpop.permute.xlu0 %2239
    %v2242 = vmul.f32 %v2230, %v2240
    %2244 = vrot.lane.b32.xlu0 %v2242, 32
    %v2245 = vpop.permute.xlu0 %2244
    %v2247 = vadd.f32 %v2237, %v2245
    %v2248 = vtanh.pop %v2247
    %2250 = vrot.lane.b32.xlu0 %v2248, 64
    %v2251 = vpop.permute.xlu0 %2250
    %v2253 = vmul.f32 %v2230, %v2251
    %2255 = vrot.lane.b32.xlu0 %v2247, 96
    %v2256 = vpop.permute.xlu0 %2255
    %2258 = vst.msk [vmem:[#allocation5] sm:$0x3] %vm213, %v2256
    %2260 = vrot.lane.b32.xlu0 %v2253, 32
    %v2261 = vpop.permute.xlu0 %2260
    %2263 = vst.msk [vmem:[#allocation4] sm:$0x3] %vm213, %v2261
    %2264 = vst.msk [vmem:[%s670] sm:$0x3] %vm213, %v2261
    %v2265 = vld [vmem:[%s672] sm:$0x3]
    %v2266 = vld [vmem:[#allocation4] sm:$0x3]
    %v2267 = vpack.c.bf16 %v2266, %v2266
    %v2269 = vsel %vm231, %v2267, 0
    %2271 = vmatprep.subr.bf16.mxu0 0
    %2272 = vmatpush1.bf16.msra.mxu0 %v1829
    %2273 = vmatprep.subr.bf16.mxu0 0
    %2274 = vmatpush1.bf16.msra.mxu0 %v1830
    %2275 = vmatprep.subr.bf16.mxu0 0
    %2276 = vmatpush1.bf16.msra.mxu0 0
    %2277 = vmatprep.subr.bf16.mxu0 0
    %2278 = vmatpush1.bf16.msra.mxu0 0
    %2279 = vmatprep.subr.bf16.mxu0 0
    %2280 = vmatpush1.bf16.msra.mxu0 0
    %2281 = vmatprep.subr.bf16.mxu0 0
    %2282 = vmatpush1.bf16.msra.mxu0 0
    %2283 = vmatprep.subr.bf16.mxu0 0
    %2284 = vmatpush1.bf16.msra.mxu0 0
    %2285 = vmatprep.subr.bf16.mxu0 0
    %2286 = vmatpush1.bf16.msra.mxu0 0
    %2287 = vmatprep.subr.bf16.mxu0 0
    %2288 = vmatpush1.bf16.msra.mxu0 0
    %2289 = vmatprep.subr.bf16.mxu0 0
    %2290 = vmatpush1.bf16.msra.mxu0 0
    %2291 = vmatprep.subr.bf16.mxu0 0
    %2292 = vmatpush1.bf16.msra.mxu0 0
    %2293 = vmatprep.subr.bf16.mxu0 0
    %2294 = vmatpush1.bf16.msra.mxu0 0
    %2295 = vmatprep.subr.bf16.mxu0 0
    %2296 = vmatpush1.bf16.msra.mxu0 0
    %2297 = vmatprep.subr.bf16.mxu0 0
    %2298 = vmatpush1.bf16.msra.mxu0 0
    %2299 = vmatprep.subr.bf16.mxu0 0
    %2300 = vmatpush1.bf16.msra.mxu0 0
    %2301 = vmatprep.subr.bf16.mxu0 0
    %2302 = vmatpush1.bf16.msra.mxu0 0
    %2303 = vmatprep.mubr.bf16.mxu0 0
    %2304 = vmatmul.mubr.bf16.gmra.mrb[0].mxu0 %v2269
    %v2305 = vpop.f32.mrb[0].mxu0
    %v2306 = vadd.f32 0.0, %v2305
    %v2307 = vpop.f32.mrb[0].mxu0
    %v2308 = vpop.f32.mrb[0].mxu0
    %v2309 = vpop.f32.mrb[0].mxu0
    %2310 = vdwg.mxu0
    %v2311 = vadd.f32 %v2265, %v2306
    %v2312 = vxor.u32 %v2311, 2147483648
    %v2313 = vmul.f32 %v2312, 1.442695
    %v2314 = vpow.pop %v2313
    %v2315 = vadd.f32 %v2314, 1.0
    %v2316 = vrcp.pop %v2315
    %v2317 = vmul.f32 1.0, %v2316
    %v2318 = vtanh.pop %v2311
    %v2319 = vld [vmem:[#allocation5] sm:$0x3]
    %2321 = vrot.lane.b32.xlu0 %v2319, 32
    %v2322 = vpop.permute.xlu0 %2321
    %v2324 = vmul.f32 %v2317, %v2322
    %2326 = vrot.lane.b32.xlu0 %v2318, 64
    %v2327 = vpop.permute.xlu0 %2326
    %v2329 = vmul.f32 %v2317, %v2327
    %2331 = vrot.lane.b32.xlu0 %v2329, 32
    %v2332 = vpop.permute.xlu0 %2331
    %v2334 = vadd.f32 %v2324, %v2332
    %v2335 = vtanh.pop %v2334
    %2337 = vrot.lane.b32.xlu0 %v2335, 64
    %v2338 = vpop.permute.xlu0 %2337
    %v2340 = vmul.f32 %v2317, %v2338
    %2342 = vrot.lane.b32.xlu0 %v2334, 96
    %v2343 = vpop.permute.xlu0 %2342
    %2345 = vst.msk [vmem:[#allocation5] sm:$0x3] %vm213, %v2343
    %2347 = vrot.lane.b32.xlu0 %v2340, 32
    %v2348 = vpop.permute.xlu0 %2347
    %2350 = vst.msk [vmem:[#allocation4] sm:$0x3] %vm213, %v2348
    %2351 = vst.msk [vmem:[%s759] sm:$0x3] %vm213, %v2348
    %v2352 = vld [vmem:[%s761] sm:$0x3]
    %v2353 = vld [vmem:[#allocation4] sm:$0x3]
    %v2354 = vpack.c.bf16 %v2353, %v2353
    %v2356 = vsel %vm231, %v2354, 0
    %2358 = vmatprep.subr.bf16.mxu0 0
    %2359 = vmatpush1.bf16.msra.mxu0 %v1829
    %2360 = vmatprep.subr.bf16.mxu0 0
    %2361 = vmatpush1.bf16.msra.mxu0 %v1830
    %2362 = vmatprep.subr.bf16.mxu0 0
    %2363 = vmatpush1.bf16.msra.mxu0 0
    %2364 = vmatprep.subr.bf16.mxu0 0
    %2365 = vmatpush1.bf16.msra.mxu0 0
    %2366 = vmatprep.subr.bf16.mxu0 0
    %2367 = vmatpush1.bf16.msra.mxu0 0
    %2368 = vmatprep.subr.bf16.mxu0 0
    %2369 = vmatpush1.bf16.msra.mxu0 0
    %2370 = vmatprep.subr.bf16.mxu0 0
    %2371 = vmatpush1.bf16.msra.mxu0 0
    %2372 = vmatprep.subr.bf16.mxu0 0
    %2373 = vmatpush1.bf16.msra.mxu0 0
    %2374 = vmatprep.subr.bf16.mxu0 0
    %2375 = vmatpush1.bf16.msra.mxu0 0
    %2376 = vmatprep.subr.bf16.mxu0 0
    %2377 = vmatpush1.bf16.msra.mxu0 0
    %2378 = vmatprep.subr.bf16.mxu0 0
    %2379 = vmatpush1.bf16.msra.mxu0 0
    %2380 = vmatprep.subr.bf16.mxu0 0
    %2381 = vmatpush1.bf16.msra.mxu0 0
    %2382 = vmatprep.subr.bf16.mxu0 0
    %2383 = vmatpush1.bf16.msra.mxu0 0
    %2384 = vmatprep.subr.bf16.mxu0 0
    %2385 = vmatpush1.bf16.msra.mxu0 0
    %2386 = vmatprep.subr.bf16.mxu0 0
    %2387 = vmatpush1.bf16.msra.mxu0 0
    %2388 = vmatprep.subr.bf16.mxu0 0
    %2389 = vmatpush1.bf16.msra.mxu0 0
    %2390 = vmatprep.mubr.bf16.mxu0 0
    %2391 = vmatmul.mubr.bf16.gmra.mrb[0].mxu0 %v2356
    %v2392 = vpop.f32.mrb[0].mxu0
    %v2393 = vadd.f32 0.0, %v2392
    %v2394 = vpop.f32.mrb[0].mxu0
    %v2395 = vpop.f32.mrb[0].mxu0
    %v2396 = vpop.f32.mrb[0].mxu0
    %2397 = vdwg.mxu0
    %v2398 = vadd.f32 %v2352, %v2393
    %v2399 = vxor.u32 %v2398, 2147483648
    %v2400 = vmul.f32 %v2399, 1.442695
    %v2401 = vpow.pop %v2400
    %v2402 = vadd.f32 %v2401, 1.0
    %v2403 = vrcp.pop %v2402
    %v2404 = vmul.f32 1.0, %v2403
    %v2405 = vtanh.pop %v2398
    %v2406 = vld [vmem:[#allocation5] sm:$0x3]
    %2408 = vrot.lane.b32.xlu0 %v2406, 32
    %v2409 = vpop.permute.xlu0 %2408
    %v2411 = vmul.f32 %v2404, %v2409
    %2413 = vrot.lane.b32.xlu0 %v2405, 64
    %v2414 = vpop.permute.xlu0 %2413
    %v2416 = vmul.f32 %v2404, %v2414
    %2418 = vrot.lane.b32.xlu0 %v2416, 32
    %v2419 = vpop.permute.xlu0 %2418
    %v2421 = vadd.f32 %v2411, %v2419
    %v2422 = vtanh.pop %v2421
    %2424 = vrot.lane.b32.xlu0 %v2422, 64
    %v2425 = vpop.permute.xlu0 %2424
    %v2427 = vmul.f32 %v2404, %v2425
    %2429 = vrot.lane.b32.xlu0 %v2421, 96
    %v2430 = vpop.permute.xlu0 %2429
    %2432 = vst.msk [vmem:[#allocation5] sm:$0x3] %vm213, %v2430
    %2434 = vrot.lane.b32.xlu0 %v2427, 32
    %v2435 = vpop.permute.xlu0 %2434
    %2437 = vst.msk [vmem:[#allocation4] sm:$0x3] %vm213, %v2435
    %2438 = vst.msk [vmem:[%s848] sm:$0x3] %vm213, %v2435
    %v2439 = vld [vmem:[%s850] sm:$0x3]
    %v2440 = vld [vmem:[#allocation4] sm:$0x3]
    %v2441 = vpack.c.bf16 %v2440, %v2440
    %v2443 = vsel %vm231, %v2441, 0
    %2445 = vmatprep.subr.bf16.mxu0 0
    %2446 = vmatpush1.bf16.msra.mxu0 %v1829
    %2447 = vmatprep.subr.bf16.mxu0 0
    %2448 = vmatpush1.bf16.msra.mxu0 %v1830
    %2449 = vmatprep.subr.bf16.mxu0 0
    %2450 = vmatpush1.bf16.msra.mxu0 0
    %2451 = vmatprep.subr.bf16.mxu0 0
    %2452 = vmatpush1.bf16.msra.mxu0 0
    %2453 = vmatprep.subr.bf16.mxu0 0
    %2454 = vmatpush1.bf16.msra.mxu0 0
    %2455 = vmatprep.subr.bf16.mxu0 0
    %2456 = vmatpush1.bf16.msra.mxu0 0
    %2457 = vmatprep.subr.bf16.mxu0 0
    %2458 = vmatpush1.bf16.msra.mxu0 0
    %2459 = vmatprep.subr.bf16.mxu0 0
    %2460 = vmatpush1.bf16.msra.mxu0 0
    %2461 = vmatprep.subr.bf16.mxu0 0
    %2462 = vmatpush1.bf16.msra.mxu0 0
    %2463 = vmatprep.subr.bf16.mxu0 0
    %2464 = vmatpush1.bf16.msra.mxu0 0
    %2465 = vmatprep.subr.bf16.mxu0 0
    %2466 = vmatpush1.bf16.msra.mxu0 0
    %2467 = vmatprep.subr.bf16.mxu0 0
    %2468 = vmatpush1.bf16.msra.mxu0 0
    %2469 = vmatprep.subr.bf16.mxu0 0
    %2470 = vmatpush1.bf16.msra.mxu0 0
    %2471 = vmatprep.subr.bf16.mxu0 0
    %2472 = vmatpush1.bf16.msra.mxu0 0
    %2473 = vmatprep.subr.bf16.mxu0 0
    %2474 = vmatpush1.bf16.msra.mxu0 0
    %2475 = vmatprep.subr.bf16.mxu0 0
    %2476 = vmatpush1.bf16.msra.mxu0 0
    %2477 = vmatprep.mubr.bf16.mxu0 0
    %2478 = vmatmul.mubr.bf16.gmra.mrb[0].mxu0 %v2443
    %v2479 = vpop.f32.mrb[0].mxu0
    %v2480 = vadd.f32 0.0, %v2479
    %v2481 = vpop.f32.mrb[0].mxu0
    %v2482 = vpop.f32.mrb[0].mxu0
    %v2483 = vpop.f32.mrb[0].mxu0
    %2484 = vdwg.mxu0
    %v2485 = vadd.f32 %v2439, %v2480
    %v2486 = vxor.u32 %v2485, 2147483648
    %v2487 = vmul.f32 %v2486, 1.442695
    %v2488 = vpow.pop %v2487
    %v2489 = vadd.f32 %v2488, 1.0
    %v2490 = vrcp.pop %v2489
    %v2491 = vmul.f32 1.0, %v2490
    %v2492 = vtanh.pop %v2485
    %v2493 = vld [vmem:[#allocation5] sm:$0x3]
    %2495 = vrot.lane.b32.xlu0 %v2493, 32
    %v2496 = vpop.permute.xlu0 %2495
    %v2498 = vmul.f32 %v2491, %v2496
    %2500 = vrot.lane.b32.xlu0 %v2492, 64
    %v2501 = vpop.permute.xlu0 %2500
    %v2503 = vmul.f32 %v2491, %v2501
    %2505 = vrot.lane.b32.xlu0 %v2503, 32
    %v2506 = vpop.permute.xlu0 %2505
    %v2508 = vadd.f32 %v2498, %v2506
    %v2509 = vtanh.pop %v2508
    %2511 = vrot.lane.b32.xlu0 %v2509, 64
    %v2512 = vpop.permute.xlu0 %2511
    %v2514 = vmul.f32 %v2491, %v2512
    %2516 = vrot.lane.b32.xlu0 %v2508, 96
    %v2517 = vpop.permute.xlu0 %2516
    %2519 = vst.msk [vmem:[#allocation5] sm:$0x3] %vm213, %v2517
    %2521 = vrot.lane.b32.xlu0 %v2514, 32
    %v2522 = vpop.permute.xlu0 %2521
    %2524 = vst.msk [vmem:[#allocation4] sm:$0x3] %vm213, %v2522
    %2525 = vst.msk [vmem:[%s937] sm:$0x3] %vm213, %v2522
    %v2526 = vld [vmem:[#allocation4] sm:$0x3]
    %s2527 = scalar_lea.vmem [#allocation19], 4
    %2528 = vst.msk [vmem:[%s2527] sm:$0x3] %vm213, %v2526
    %v2529 = vld [vmem:[#allocation5] sm:$0x3]
    %s2530 = scalar_lea.vmem [#allocation21], 4
    %2531 = vst.msk [vmem:[%s2530] sm:$0x3] %vm213, %v2529
    %v2532 = vld [vmem:[#allocation2] sm:$0xff]
    %v2533 = vld [vmem:[#allocation2 + $0x8] sm:$0xff]
    %v2534 = vld [vmem:[%s0] sm:$0xff]
    %v2535 = vld [vmem:[%s0 + $0x8] sm:$0xff]
    %v2536 = vpack.c.bf16 %v2535, %v2534
    %v2537 = vld [vmem:[#allocation12] sm:$0xf]
    %v2538 = vld [vmem:[%s7] sm:$0x1]
    %v2540 = vlaneseq
    %v2541 = vshrl.u32 %v2540, 7
    %v2542 = vsub.s32 0, %v2541
    %v2543 = vrot.slane %v2538, %v2542
    %v2546 = vsel %vm158, %v2536, 0
    %v2549 = vsel %vm162, %v2537, 0
    %2551 = vmatprep.subr.bf16.mxu0 0
    %2552 = vmatpush1.bf16.msra.mxu0 %v2549
    %2553 = vmatprep.subr.bf16.mxu0 0
    %2554 = vmatpush1.bf16.msra.mxu0 0
    %2555 = vmatprep.subr.bf16.mxu0 0
    %2556 = vmatpush1.bf16.msra.mxu0 0
    %2557 = vmatprep.subr.bf16.mxu0 0
    %2558 = vmatpush1.bf16.msra.mxu0 0
    %2559 = vmatprep.subr.bf16.mxu0 0
    %2560 = vmatpush1.bf16.msra.mxu0 0
    %2561 = vmatprep.subr.bf16.mxu0 0
    %2562 = vmatpush1.bf16.msra.mxu0 0
    %2563 = vmatprep.subr.bf16.mxu0 0
    %2564 = vmatpush1.bf16.msra.mxu0 0
    %2565 = vmatprep.subr.bf16.mxu0 0
    %2566 = vmatpush1.bf16.msra.mxu0 0
    %2567 = vmatprep.subr.bf16.mxu0 0
    %2568 = vmatpush1.bf16.msra.mxu0 0
    %2569 = vmatprep.subr.bf16.mxu0 0
    %2570 = vmatpush1.bf16.msra.mxu0 0
    %2571 = vmatprep.subr.bf16.mxu0 0
    %2572 = vmatpush1.bf16.msra.mxu0 0
    %2573 = vmatprep.subr.bf16.mxu0 0
    %2574 = vmatpush1.bf16.msra.mxu0 0
    %2575 = vmatprep.subr.bf16.mxu0 0
    %2576 = vmatpush1.bf16.msra.mxu0 0
    %2577 = vmatprep.subr.bf16.mxu0 0
    %2578 = vmatpush1.bf16.msra.mxu0 0
    %2579 = vmatprep.subr.bf16.mxu0 0
    %2580 = vmatpush1.bf16.msra.mxu0 0
    %2581 = vmatprep.subr.bf16.mxu0 0
    %2582 = vmatpush1.bf16.msra.mxu0 0
    %2583 = vmatprep.mubr.bf16.mxu0 0
    %2584 = vmatmul.mubr.bf16.gmra.mrb[0].mxu0 %v2546
    %v2585 = vpop.f32.mrb[0].mxu0
    %v2586 = vadd.f32 %v2543, %v2585
    %v2587 = vpop.f32.mrb[0].mxu0
    %v2588 = vpop.f32.mrb[0].mxu0
    %v2589 = vadd.f32 %v2543, %v2588
    %v2590 = vpop.f32.mrb[0].mxu0
    %2591 = vdwg.mxu0
    %v2592 = vadd.f32 %v2532, %v2586
    %v2593 = vadd.f32 %v2533, %v2589
    %v2594 = vsel %vm231, %v2592, 0.0
    %2595 = vadd.xlane.f32.xlu0 %v2594
    %v2596 = vpop.xlane.xlu0 %2595
    %v2597 = vsel %vm231, %v2593, 0.0
    %2598 = vadd.xlane.f32.xlu0 %v2597
    %v2599 = vpop.xlane.xlu0 %2598
    %v2600 = vrcp.pop 32.0
    %v2601 = vmul.f32 %v2596, %v2600
    %v2602 = vmul.f32 %v2599, %v2600
    %v2603 = vsub.f32 %v2592, %v2601
    %v2604 = vsub.f32 %v2593, %v2602
    %v2605 = vmul.f32 %v2603, %v2603
    %v2606 = vmul.f32 %v2604, %v2604
    %v2607 = vsel %vm231, %v2605, 0.0
    %2608 = vadd.xlane.f32.xlu0 %v2607
    %v2609 = vpop.xlane.xlu0 %2608
    %v2610 = vsel %vm231, %v2606, 0.0
    %2611 = vadd.xlane.f32.xlu0 %v2610
    %v2612 = vpop.xlane.xlu0 %2611
    %v2613 = vmul.f32 %v2609, %v2600
    %v2614 = vmul.f32 %v2612, %v2600
    %v2615 = vadd.f32 %v2613, 1e-05
    %v2616 = vadd.f32 %v2614, 1e-05
    %v2617 = vrsqrt.pop %v2615
    %v2618 = vrsqrt.pop %v2616
    %v2619 = vmul.f32 %v2603, %v2617
    %v2620 = vmul.f32 %v2604, %v2618
    %v2621 = vld [vmem:[#allocation14] sm:$0x1]
    %v2623 = vlaneseq
    %v2624 = vshrl.u32 %v2623, 7
    %v2625 = vsub.s32 0, %v2624
    %v2626 = vrot.slane %v2621, %v2625
    %v2628 = vmul.f32 %v2619, %v2626
    %v2629 = vmul.f32 %v2620, %v2626
    %v2630 = vld [vmem:[#allocation15] sm:$0x1]
    %v2632 = vlaneseq
    %v2633 = vshrl.u32 %v2632, 7
    %v2634 = vsub.s32 0, %v2633
    %v2635 = vrot.slane %v2630, %v2634
    %v2637 = vadd.f32 %v2628, %v2635
    %v2638 = vadd.f32 %v2629, %v2635
    %v2639 = vpack.c.bf16 %v2638, %v2637
    %v2640 = vld [vmem:[%s10] sm:$0xf]
    %v2641 = vld [vmem:[%s10 + $0x4] sm:$0xf]
    %v2642 = vld [vmem:[%s10 + $0x8] sm:$0xf]
    %v2643 = vld [vmem:[%s10 + $0xc] sm:$0xf]
    %v2644 = vld [vmem:[#allocation17] sm:$0x1]
    %v2646 = vlaneseq
    %v2647 = vshrl.u32 %v2646, 7
    %v2648 = vsub.s32 0, %v2647
    %v2649 = vrot.slane %v2644, %v2648
    %v2655 = vunpack.c.l.b16 %v2640
    %v2656 = vunpack.c.l.b16 %v2641
    %v2657 = vunpack.c.l.b16 %v2642
    %v2658 = vunpack.c.l.b16 %v2643
    %v2659 = vpack.c.b16 %v2656, %v2655
    %v2660 = vpack.c.b16 %v2658, %v2657
    %v2664 = vsel %vm231, %v2639, 0
    %2666 = vmatprep.subr.bf16.mxu0 0
    %2667 = vmatpush1.bf16.msra.mxu0 %v2659
    %2668 = vmatprep.subr.bf16.mxu0 0
    %2669 = vmatpush1.bf16.msra.mxu0 %v2660
    %2670 = vmatprep.subr.bf16.mxu0 0
    %2671 = vmatpush1.bf16.msra.mxu0 0
    %2672 = vmatprep.subr.bf16.mxu0 0
    %2673 = vmatpush1.bf16.msra.mxu0 0
    %2674 = vmatprep.subr.bf16.mxu0 0
    %2675 = vmatpush1.bf16.msra.mxu0 0
    %2676 = vmatprep.subr.bf16.mxu0 0
    %2677 = vmatpush1.bf16.msra.mxu0 0
    %2678 = vmatprep.subr.bf16.mxu0 0
    %2679 = vmatpush1.bf16.msra.mxu0 0
    %2680 = vmatprep.subr.bf16.mxu0 0
    %2681 = vmatpush1.bf16.msra.mxu0 0
    %2682 = vmatprep.subr.bf16.mxu0 0
    %2683 = vmatpush1.bf16.msra.mxu0 0
    %2684 = vmatprep.subr.bf16.mxu0 0
    %2685 = vmatpush1.bf16.msra.mxu0 0
    %2686 = vmatprep.subr.bf16.mxu0 0
    %2687 = vmatpush1.bf16.msra.mxu0 0
    %2688 = vmatprep.subr.bf16.mxu0 0
    %2689 = vmatpush1.bf16.msra.mxu0 0
    %2690 = vmatprep.subr.bf16.mxu0 0
    %2691 = vmatpush1.bf16.msra.mxu0 0
    %2692 = vmatprep.subr.bf16.mxu0 0
    %2693 = vmatpush1.bf16.msra.mxu0 0
    %2694 = vmatprep.subr.bf16.mxu0 0
    %2695 = vmatpush1.bf16.msra.mxu0 0
    %2696 = vmatprep.subr.bf16.mxu0 0
    %2697 = vmatpush1.bf16.msra.mxu0 0
    %2698 = vmatprep.mubr.bf16.mxu0 0
    %2699 = vmatmul.mubr.bf16.gmra.mrb[0].mxu0 %v2664
    %v2700 = vpop.f32.mrb[0].mxu0
    %v2701 = vadd.f32 %v2649, %v2700
    %v2702 = vpop.f32.mrb[0].mxu0
    %v2703 = vpop.f32.mrb[0].mxu0
    %v2704 = vadd.f32 %v2649, %v2703
    %v2705 = vpop.f32.mrb[0].mxu0
    %2706 = vdwg.mxu0
    %v2707 = vmax.f32 %v2701, 0.0
    %v2708 = vmax.f32 %v2704, 0.0
    %v2709 = vld [vmem:[%s13] sm:$0xf]
    %v2710 = vld [vmem:[%s13 + $0x4] sm:$0xf]
    %v2711 = vld [vmem:[%s13 + $0x8] sm:$0xf]
    %v2712 = vld [vmem:[%s13 + $0xc] sm:$0xf]
    %v2713 = vld [vmem:[%s14] sm:$0x1]
    %v2715 = vlaneseq
    %v2716 = vshrl.u32 %v2715, 7
    %v2717 = vsub.s32 0, %v2716
    %v2718 = vrot.slane %v2713, %v2717
    %v2724 = vunpack.c.l.b16 %v2709
    %v2725 = vunpack.c.l.b16 %v2710
    %v2726 = vunpack.c.l.b16 %v2711
    %v2727 = vunpack.c.l.b16 %v2712
    %v2728 = vpack.c.b16 %v2725, %v2724
    %v2729 = vpack.c.b16 %v2727, %v2726
    %2732 = vmatprep.subr.bf16.mxu0 0
    %2733 = vmatpush1.bf16.msra.mxu0 %v2728
    %2734 = vmatprep.subr.bf16.mxu0 0
    %2735 = vmatpush1.bf16.msra.mxu0 %v2729
    %2736 = vmatprep.subr.bf16.mxu0 0
    %2737 = vmatpush1.bf16.msra.mxu0 0
    %2738 = vmatprep.subr.bf16.mxu0 0
    %2739 = vmatpush1.bf16.msra.mxu0 0
    %2740 = vmatprep.subr.bf16.mxu0 0
    %2741 = vmatpush1.bf16.msra.mxu0 0
    %2742 = vmatprep.subr.bf16.mxu0 0
    %2743 = vmatpush1.bf16.msra.mxu0 0
    %2744 = vmatprep.subr.bf16.mxu0 0
    %2745 = vmatpush1.bf16.msra.mxu0 0
    %2746 = vmatprep.subr.bf16.mxu0 0
    %2747 = vmatpush1.bf16.msra.mxu0 0
    %2748 = vmatprep.subr.bf16.mxu0 0
    %2749 = vmatpush1.bf16.msra.mxu0 0
    %2750 = vmatprep.subr.bf16.mxu0 0
    %2751 = vmatpush1.bf16.msra.mxu0 0
    %2752 = vmatprep.subr.bf16.mxu0 0
    %2753 = vmatpush1.bf16.msra.mxu0 0
    %2754 = vmatprep.subr.bf16.mxu0 0
    %2755 = vmatpush1.bf16.msra.mxu0 0
    %2756 = vmatprep.subr.bf16.mxu0 0
    %2757 = vmatpush1.bf16.msra.mxu0 0
    %2758 = vmatprep.subr.bf16.mxu0 0
    %2759 = vmatpush1.bf16.msra.mxu0 0
    %2760 = vmatprep.subr.bf16.mxu0 0
    %2761 = vmatpush1.bf16.msra.mxu0 0
    %2762 = vmatprep.subr.bf16.mxu0 0
    %2763 = vmatpush1.bf16.msra.mxu0 0
    %2764 = vmatprep.mubr.bf16.mxu0 0
    %2765 = vmatmul.mubr.bf16.gmra.mrb[0].mxu0 %v2664
    %v2766 = vpop.f32.mrb[0].mxu0
    %v2767 = vadd.f32 %v2718, %v2766
    %v2768 = vpop.f32.mrb[0].mxu0
    %v2769 = vpop.f32.mrb[0].mxu0
    %v2770 = vadd.f32 %v2718, %v2769
    %v2771 = vpop.f32.mrb[0].mxu0
    %2772 = vdwg.mxu0
    %v2773 = vmax.f32 %v2767, 0.0
    %v2774 = vmax.f32 %v2770, 0.0
    %v2775 = vpack.c.bf16 %v2708, %v2707
    %v2776 = vld [vmem:[%s12] sm:$0xf]
    %v2777 = vld [vmem:[%s12 + $0x4] sm:$0xf]
    %v2778 = vld [vmem:[%s12 + $0x8] sm:$0xf]
    %v2779 = vld [vmem:[%s12 + $0xc] sm:$0xf]
    %v2780 = vpack.c.bf16 %v2774, %v2773
    %v2781 = vld [vmem:[%s15] sm:$0xf]
    %v2782 = vld [vmem:[%s15 + $0x4] sm:$0xf]
    %v2783 = vld [vmem:[%s15 + $0x8] sm:$0xf]
    %v2784 = vld [vmem:[%s15 + $0xc] sm:$0xf]
    %v2785 = vld [vmem:[%s15 + $0x10] sm:$0xf]
    %v2786 = vld [vmem:[%s15 + $0x14] sm:$0xf]
    %v2793 = vunpack.c.l.b16 %v2781
    %v2794 = vunpack.c.l.b16 %v2782
    %v2795 = vunpack.c.l.b16 %v2783
    %v2796 = vunpack.c.l.b16 %v2784
    %v2797 = vunpack.c.l.b16 %v2785
    %v2798 = vunpack.c.l.b16 %v2786
    %v2799 = vpack.c.b16 %v2794, %v2793
    %v2800 = vpack.c.b16 %v2796, %v2795
    %v2801 = vpack.c.b16 %v2798, %v2797
    %vm2805 = vcmask 392192
    %v2807 = vsel %vm2805, %v2780, 0
    %2809 = vmatprep.subr.bf16.mxu0 0
    %2810 = vmatpush1.bf16.msra.mxu0 %v2799
    %2811 = vmatprep.subr.bf16.mxu0 0
    %2812 = vmatpush1.bf16.msra.mxu0 %v2800
    %2813 = vmatprep.subr.bf16.mxu0 0
    %2814 = vmatpush1.bf16.msra.mxu0 %v2801
    %2815 = vmatprep.subr.bf16.mxu0 0
    %2816 = vmatpush1.bf16.msra.mxu0 0
    %2817 = vmatprep.subr.bf16.mxu0 0
    %2818 = vmatpush1.bf16.msra.mxu0 0
    %2819 = vmatprep.subr.bf16.mxu0 0
    %2820 = vmatpush1.bf16.msra.mxu0 0
    %2821 = vmatprep.subr.bf16.mxu0 0
    %2822 = vmatpush1.bf16.msra.mxu0 0
    %2823 = vmatprep.subr.bf16.mxu0 0
    %2824 = vmatpush1.bf16.msra.mxu0 0
    %2825 = vmatprep.subr.bf16.mxu0 0
    %2826 = vmatpush1.bf16.msra.mxu0 0
    %2827 = vmatprep.subr.bf16.mxu0 0
    %2828 = vmatpush1.bf16.msra.mxu0 0
    %2829 = vmatprep.subr.bf16.mxu0 0
    %2830 = vmatpush1.bf16.msra.mxu0 0
    %2831 = vmatprep.subr.bf16.mxu0 0
    %2832 = vmatpush1.bf16.msra.mxu0 0
    %2833 = vmatprep.subr.bf16.mxu0 0
    %2834 = vmatpush1.bf16.msra.mxu0 0
    %2835 = vmatprep.subr.bf16.mxu0 0
    %2836 = vmatpush1.bf16.msra.mxu0 0
    %2837 = vmatprep.subr.bf16.mxu0 0
    %2838 = vmatpush1.bf16.msra.mxu0 0
    %2839 = vmatprep.subr.bf16.mxu0 0
    %2840 = vmatpush1.bf16.msra.mxu0 0
    %2841 = vmatprep.mubr.bf16.mxu0 0
    %2842 = vmatmul.mubr.bf16.gmra.mrb[0].mxu0 %v2807
    %v2843 = vpop.f32.mrb[0].mxu0
    %v2844 = vadd.f32 0.0, %v2843
    %v2845 = vpop.f32.mrb[0].mxu0
    %v2846 = vpop.f32.mrb[0].mxu0
    %v2847 = vadd.f32 0.0, %v2846
    %v2848 = vpop.f32.mrb[0].mxu0
    %2849 = vdwg.mxu0
    %v2854 = vunpack.c.l.b16 %v2776
    %v2855 = vunpack.c.l.b16 %v2777
    %v2856 = vunpack.c.l.b16 %v2778
    %v2857 = vunpack.c.l.b16 %v2779
    %v2858 = vpack.c.b16 %v2855, %v2854
    %v2859 = vpack.c.b16 %v2857, %v2856
    %v2863 = vsel %vm231, %v2775, 0
    %2865 = vmatprep.subr.bf16.mxu0 0
    %2866 = vmatpush1.bf16.msra.mxu0 %v2858
    %2867 = vmatprep.subr.bf16.mxu0 0
    %2868 = vmatpush1.bf16.msra.mxu0 %v2859
    %2869 = vmatprep.subr.bf16.mxu0 0
    %2870 = vmatpush1.bf16.msra.mxu0 0
    %2871 = vmatprep.subr.bf16.mxu0 0
    %2872 = vmatpush1.bf16.msra.mxu0 0
    %2873 = vmatprep.subr.bf16.mxu0 0
    %2874 = vmatpush1.bf16.msra.mxu0 0
    %2875 = vmatprep.subr.bf16.mxu0 0
    %2876 = vmatpush1.bf16.msra.mxu0 0
    %2877 = vmatprep.subr.bf16.mxu0 0
    %2878 = vmatpush1.bf16.msra.mxu0 0
    %2879 = vmatprep.subr.bf16.mxu0 0
    %2880 = vmatpush1.bf16.msra.mxu0 0
    %2881 = vmatprep.subr.bf16.mxu0 0
    %2882 = vmatpush1.bf16.msra.mxu0 0
    %2883 = vmatprep.subr.bf16.mxu0 0
    %2884 = vmatpush1.bf16.msra.mxu0 0
    %2885 = vmatprep.subr.bf16.mxu0 0
    %2886 = vmatpush1.bf16.msra.mxu0 0
    %2887 = vmatprep.subr.bf16.mxu0 0
    %2888 = vmatpush1.bf16.msra.mxu0 0
    %2889 = vmatprep.subr.bf16.mxu0 0
    %2890 = vmatpush1.bf16.msra.mxu0 0
    %2891 = vmatprep.subr.bf16.mxu0 0
    %2892 = vmatpush1.bf16.msra.mxu0 0
    %2893 = vmatprep.subr.bf16.mxu0 0
    %2894 = vmatpush1.bf16.msra.mxu0 0
    %2895 = vmatprep.subr.bf16.mxu0 0
    %2896 = vmatpush1.bf16.msra.mxu0 0
    %2897 = vmatprep.mubr.bf16.mxu0 0
    %2898 = vmatmul.mubr.bf16.gmra.mrb[0].mxu0 %v2863
    %v2899 = vpop.f32.mrb[0].mxu0
    %v2900 = vadd.f32 %v2844, %v2899
    %v2901 = vpop.f32.mrb[0].mxu0
    %v2902 = vpop.f32.mrb[0].mxu0
    %v2903 = vadd.f32 %v2847, %v2902
    %v2904 = vpop.f32.mrb[0].mxu0
    %2905 = vdwg.mxu0
    %v2906 = vld [vmem:[%s16] sm:$0x1]
    %v2908 = vlaneseq
    %v2909 = vshrl.u32 %v2908, 7
    %v2910 = vsub.s32 0, %v2909
    %v2911 = vrot.slane %v2906, %v2910
    %v2913 = vadd.f32 %v2900, %v2911
    %v2914 = vadd.f32 %v2903, %v2911
    %v2915 = vld [vmem:[#allocation6] sm:$0xff]
    %v2916 = vld [vmem:[#allocation6 + $0x8] sm:$0xff]
    %v2917 = vadd.f32 %v2913, %v2915
    %v2918 = vadd.f32 %v2914, %v2916
    %vm2919 = vcmask 72704
    %2920 = vst.msk [vmem:[#allocation18] sm:$0xff] %vm2919, %v2917
    %2921 = vst.msk [vmem:[#allocation18 + $0x8] sm:$0xff] %vm2919, %v2918
    // Predicated region
    $region98: #{tpu_custom_call.1} parent=1 // pred_check
      _
    $region99: #{tpu_custom_call.1} parent=1 // pred_check_branch
      %2923 = sbr.rel (0) target = $region101
    $region100: #{tpu_custom_call.1} parent=1 // pred_region
      %s2925 = ssub.s32 256, 256
      %2926 = vsyncadd [#allocation8], %s2925
      %s2927 = sshll.u32 [#allocation18], 4
      %s2928 = int_to_ptr.vmem [resolvable:$true] %s2927
      %2933 = dma.vmem_to_hbm [thread:$0]  %s2928, 256, %s17, [#allocation8], 128, 128, 8
    $region101: #{tpu_custom_call.1} parent=1 // pred_fallthru
      _
    // Predicated region
    $region102: #{tpu_custom_call.1} parent=1 // pred_check
      _
    $region103: #{tpu_custom_call.1} parent=1 // pred_check_branch
      %2935 = sbr.rel (0) target = $region105
    $region104: #{tpu_custom_call.1} parent=1 // pred_region
      %s2937 = ssub.s32 96, 96
      %2938 = vsyncadd [#allocation20], %s2937
      %s2939 = sshll.u32 [#allocation19], 4
      %s2940 = int_to_ptr.vmem [resolvable:$true] %s2939
      %2945 = dma.vmem_to_hbm [thread:$0]  %s2940, 96, %s18, [#allocation20], 32, 32, 2
    $region105: #{tpu_custom_call.1} parent=1 // pred_fallthru
      _
    // Predicated region
    $region106: #{tpu_custom_call.1} parent=1 // pred_check
      _
    $region107: #{tpu_custom_call.1} parent=1 // pred_check_branch
      %2947 = sbr.rel (0) target = $region109
    $region108: #{tpu_custom_call.1} parent=1 // pred_region
      %s2949 = ssub.s32 96, 96
      %2950 = vsyncadd [#allocation20], %s2949
      %s2951 = sshll.u32 [#allocation21], 4
      %s2952 = int_to_ptr.vmem [resolvable:$true] %s2951
      %2957 = dma.vmem_to_hbm [thread:$0]  %s2952, 96, %s19, [#allocation20], 32, 32, 2
    $region109: #{tpu_custom_call.1} parent=1 // pred_fallthru
      _
    // Predicated region
    $region110: #{tpu_custom_call.1} parent=1 // pred_check
      _
    $region111: #{tpu_custom_call.1} parent=1 // pred_check_branch
      %2959 = sbr.rel (0) target = $region113
    $region112: #{tpu_custom_call.1} parent=1 // pred_region
      %2960 = dma.done [#allocation8], 256
    $region113: #{tpu_custom_call.1} parent=1 // pred_fallthru
      _
    // Predicated region
    $region114: #{tpu_custom_call.1} parent=1 // pred_check
      _
    $region115: #{tpu_custom_call.1} parent=1 // pred_check_branch
      %2962 = sbr.rel (0) target = $region117
    $region116: #{tpu_custom_call.1} parent=1 // pred_region
      %2963 = dma.done [#allocation20], 96
    $region117: #{tpu_custom_call.1} parent=1 // pred_fallthru
      _
    // Predicated region
    $region118: #{tpu_custom_call.1} parent=1 // pred_check
      _
    $region119: #{tpu_custom_call.1} parent=1 // pred_check_branch
      %2965 = sbr.rel (0) target = $region121
    $region120: #{tpu_custom_call.1} parent=1 // pred_region
      %2966 = dma.done [#allocation20], 96
    $region121: #{tpu_custom_call.1} parent=1 // pred_fallthru
      _
    %2967 = vsyncpa [#allocation7], 1
    %2968 = vsyncpa [#allocation10], 1
    %2969 = vsyncpa [#allocation13], 1
    %2970 = vsyncpa [#allocation16], 1
    %2971 = vsyncpa [#allocation8], 1
    %2972 = vsyncpa [#allocation20], 1

</llo_original>
